<compile_context>
chip_gen: v5e
topology: v5e:2x2
jax: 0.10.0
libtpu: 0.0.40
codegen_flags: <defaults>
</compile_context>

<pallas_src>
import functools

import jax
import jax.numpy as jnp
from jax import lax
from jax.experimental import pallas as pl
from jax.experimental.pallas import tpu as pltpu


# -----------------------------------------------------------------------------
# Fused kernel: bi-LSTM (time-chunked) + max-pool + 3-layer tanh MLP head.
# -----------------------------------------------------------------------------
def bilstm_classifier_kernel(
        emb_f_ref, emb_b_ref,                    # (Tc, 2Bp, E) bf16 chunks
        wih_f_ref, wih_b_ref,                    # (E, 4H)      bf16
        b_f_ref, b_b_ref,                        # (1, 4H)      f32
        whh_ref,                                 # (2H, 8H)     bf16 block-diag
        w1_ref, b1_ref, w2_ref, b2_ref, w3_ref, b3_ref,
        out_ref,                                 # (Bp, C_pad)  f32
        gx_f_scr, gx_b_scr,                      # (Tc, 2Bp, 4H) f32 scratch
        h_scr, c_scr, mx_scr):                   # (2Bp, 2H)     f32 scratch
    chunk = pl.program_id(0)
    n_chunks = pl.num_programs(0)
    Tc, nB, E = emb_f_ref.shape                  # nB = 2 * Bp (both sentences)
    H = whh_ref.shape[0] // 2
    H4 = 4 * H

    # ---- init carried state on the first chunk ------------------------------
    @pl.when(chunk == 0)
    def _():
        h_scr[...] = jnp.zeros_like(h_scr)
        c_scr[...] = jnp.zeros_like(c_scr)
        mx_scr[...] = jnp.full_like(mx_scr, -jnp.inf)

    # ---- hoisted input projections for this chunk (biases folded in) --------
    x_f = emb_f_ref[...].reshape(Tc * nB, E)
    x_b = emb_b_ref[...].reshape(Tc * nB, E)
    gx_f = jnp.dot(x_f, wih_f_ref[...],
                   preferred_element_type=jnp.float32) + b_f_ref[...]
    gx_b = jnp.dot(x_b, wih_b_ref[...],
                   preferred_element_type=jnp.float32) + b_b_ref[...]
    gx_f_scr[...] = gx_f.reshape(Tc, nB, H4)
    gx_b_scr[...] = gx_b.reshape(Tc, nB, H4)

    whh = whh_ref[...]                           # (2H, 8H) bf16 block-diagonal

    def cell(gates, c_prev):                     # PyTorch LSTM gate order i,f,g,o
        i = jax.nn.sigmoid(gates[:, 0 * H:1 * H])
        f = jax.nn.sigmoid(gates[:, 1 * H:2 * H])
        g = jnp.tanh(gates[:, 2 * H:3 * H])
        o = jax.nn.sigmoid(gates[:, 3 * H:4 * H])
        c_new = f * c_prev + i * g
        return o * jnp.tanh(c_new), c_new

    def step(t, carry):
        h_cat, c_cat, mx = carry                 # (2Bp, 2H) f32 each
        # One fused recurrent matmul for both directions (block-diag whh).
        rec = jnp.dot(h_cat.astype(whh.dtype), whh,
                      preferred_element_type=jnp.float32)          # (2Bp, 8H)
        # Forward dir consumes local step t of the forward-ordered chunk;
        # backward dir consumes local step Tc-1-t of the reverse-ordered chunk
        # (== global time T-1-s for global recurrence step s).
        gates_f = gx_f_scr[t] + rec[:, :H4]
        gates_b = gx_b_scr[Tc - 1 - t] + rec[:, H4:]
        h_f, c_f = cell(gates_f, c_cat[:, :H])
        h_b, c_b = cell(gates_b, c_cat[:, H:])
        h_cat = jnp.concatenate([h_f, h_b], axis=1)
        c_cat = jnp.concatenate([c_f, c_b], axis=1)
        return h_cat, c_cat, jnp.maximum(mx, h_cat)

    carry = (h_scr[...], c_scr[...], mx_scr[...])
    h_cat, c_cat, mx = lax.fori_loop(0, Tc, step, carry, unroll=True)
    h_scr[...] = h_cat
    c_scr[...] = c_cat
    mx_scr[...] = mx

    # ---- fused FFNN head on the last chunk (nonlinear_fc=True) --------------
    @pl.when(chunk == n_chunks - 1)
    def _():
        Bp = nB // 2
        e1 = mx[:Bp, :]                          # pooled sentence-1 batch
        e2 = mx[Bp:, :]                          # pooled sentence-2 batch
        combined = jnp.concatenate(
            [e1, e2, e1 * e2, jnp.abs(e1 - e2)], axis=1)           # (Bp, 8H)
        h1 = jnp.tanh(jnp.dot(combined.astype(w1_ref.dtype), w1_ref[...],
                              preferred_element_type=jnp.float32) + b1_ref[...])
        h2 = jnp.tanh(jnp.dot(h1.astype(w2_ref.dtype), w2_ref[...],
                              preferred_element_type=jnp.float32) + b2_ref[...])
        out_ref[...] = (jnp.dot(h2.astype(w3_ref.dtype), w3_ref[...],
                                preferred_element_type=jnp.float32)
                        + b3_ref[...])


def _round_up(x, m):
    return (x + m - 1) // m * m


def sentence_classifier_forward(params, sent1, sent_len1, sent2, sent_len2,
                                *, nhid, seq_chunk=None):
    """Full forward pass. sent1/sent2: (B, T) int32 token ids."""
    del sent_len1, sent_len2  # TODO(synk): length masking not applied (see header).
    f32, bf16 = jnp.float32, jnp.bfloat16
    B, T = sent1.shape
    H = nhid
    if seq_chunk is None:
        seq_chunk = T
    assert T % seq_chunk == 0, "seq_chunk must divide T"
    n_chunks = T // seq_chunk

    num_classes = params["w3"].shape[1]
    C_pad = _round_up(num_classes, 128)
    Bp = _round_up(B, 8)
    nB = 2 * Bp                                   # both sentences, padded

    # --- ids: pad batch, fuse sentences along batch, go time-major directly.
    ids1 = jnp.pad(sent1, ((0, Bp - B), (0, 0)))
    ids2 = jnp.pad(sent2, ((0, Bp - B), (0, 0)))
    ids = jnp.concatenate([ids1, ids2], axis=0).T          # (T, 2Bp)

    emb_table = params["embedding"].astype(bf16)
    emb = emb_table[ids]                                    # (T, 2Bp, E) bf16
    E = emb.shape[-1]

    # --- fused / padded weights: bf16 weights, f32 biases.
    wih_f = params["wih_f"].astype(bf16)
    wih_b = params["wih_b"].astype(bf16)
    b_f = params["b_f"].astype(f32)
    b_b = params["b_b"].astype(f32)
    zero = jnp.zeros((H, 4 * H), f32)
    whh_blk = jnp.concatenate(
        [jnp.concatenate([params["whh_f"], zero], axis=1),
         jnp.concatenate([zero, params["whh_b"]], axis=1)], axis=0).astype(bf16)
    w1 = params["w1"].astype(bf16)
    b1 = params["b1"].astype(f32)
    w2 = params["w2"].astype(bf16)
    b2 = params["b2"].astype(f32)
    w3 = jnp.pad(params["w3"], ((0, 0), (0, C_pad - num_classes))).astype(bf16)
    b3 = jnp.pad(params["b3"], ((0, 0), (0, C_pad - num_classes))).astype(f32)
    F = w1.shape[1]

    def full(shape):                                        # weight resident once
        return pl.BlockSpec(shape, lambda c: (0,) * len(shape))

    grid_spec = pltpu.PrefetchScalarGridSpec(
        num_scalar_prefetch=0,
        grid=(n_chunks,),
        in_specs=[
            # same embedding array twice: forward-ordered and reverse-ordered chunks
            pl.BlockSpec((seq_chunk, nB, E), lambda c: (c, 0, 0)),
            pl.BlockSpec((seq_chunk, nB, E), lambda c: (n_chunks - 1 - c, 0, 0)),
            full((E, 4 * H)), full((E, 4 * H)),
            full((1, 4 * H)), full((1, 4 * H)),
            full((2 * H, 8 * H)),
            full((8 * H, F)), full((1, F)),
            full((F, F)), full((1, F)),
            full((F, C_pad)), full((1, C_pad)),
        ],
        out_specs=pl.BlockSpec((Bp, C_pad), lambda c: (0, 0)),
        scratch_shapes=[
            pltpu.VMEM((seq_chunk, nB, 4 * H), f32),   # gx forward
            pltpu.VMEM((seq_chunk, nB, 4 * H), f32),   # gx backward
            pltpu.VMEM((nB, 2 * H), f32),              # h carry
            pltpu.VMEM((nB, 2 * H), f32),              # c carry
            pltpu.VMEM((nB, 2 * H), f32),              # running max
        ],
    )

    logits = pl.pallas_call(
        bilstm_classifier_kernel,
        out_shape=jax.ShapeDtypeStruct((Bp, C_pad), f32),
        grid_spec=grid_spec,
        compiler_params=pltpu.CompilerParams(
            dimension_semantics=("arbitrary",),
            vmem_limit_bytes=32 * 1024 * 1024),
    )(emb, emb, wih_f, wih_b, b_f, b_b, whh_blk,
      w1, b1, w2, b2, w3, b3)

    return logits[:B, :num_classes]


# -----------------------------------------------------------------------------
# Pure-JAX reference (mirrors the kernel's bf16 weight / matmul-input rounding,
# with f32 gate math and accumulation — i.e. the original model up to bf16).
# -----------------------------------------------------------------------------
def _reference_forward(params, sent1, sent2, nhid):
    f32, bf16 = jnp.float32, jnp.bfloat16
    q = lambda x: x.astype(bf16).astype(f32)
    H = nhid
    emb_table = q(params["embedding"])

    def lstm_dir(emb_tbe, wih, whh, b):
        Bn = emb_tbe.shape[1]

        def step(carry, x):
            h, c = carry
            gates = x @ wih + q(h) @ whh + b
            i = jax.nn.sigmoid(gates[:, 0 * H:1 * H])
            f = jax.nn.sigmoid(gates[:, 1 * H:2 * H])
            g = jnp.tanh(gates[:, 2 * H:3 * H])
            o = jax.nn.sigmoid(gates[:, 3 * H:4 * H])
            c = f * c + i * g
            h = o * jnp.tanh(c)
            return (h, c), h

        init = (jnp.zeros((Bn, H), f32), jnp.zeros((Bn, H), f32))
        _, hs = lax.scan(step, init, emb_tbe)
        return hs                                           # (T, B, H)

    def encode(sent):
        emb = emb_table[sent.T]                             # (T, B, E)
        hs_f = lstm_dir(emb, q(params["wih_f"]), q(params["whh_f"]), params["b_f"])
        hs_b = lstm_dir(emb[::-1], q(params["wih_b"]), q(params["whh_b"]), params["b_b"])
        return jnp.concatenate([hs_f.max(axis=0), hs_b.max(axis=0)], axis=1)

    e1, e2 = encode(sent1), encode(sent2)
    combined = jnp.concatenate([e1, e2, e1 * e2, jnp.abs(e1 - e2)], axis=1)
    h1 = jnp.tanh(q(combined) @ q(params["w1"]) + params["b1"])
    h2 = jnp.tanh(q(h1) @ q(params["w2"]) + params["b2"])
    return q(h2) @ q(params["w3"]) + params["b3"]


# -----------------------------------------------------------------------------
# Parameter init + demo run.
# -----------------------------------------------------------------------------
def init_params(key, vocab, emsize, nhid, fc_dim, num_classes):
    ks = jax.random.split(key, 12)
    scale = 0.1
    feat_in = 2 * nhid * 4  # nhid * num_directions * 4

    def rnd(k, shape):
        return (scale * jax.random.normal(k, shape)).astype(jnp.float32)

    return {
        "embedding": rnd(ks[0], (vocab, emsize)),
        # forward-direction LSTM (gate order i,f,g,o; b = b_ih + b_hh)
        "wih_f": rnd(ks[1], (emsize, 4 * nhid)),
        "whh_f": rnd(ks[2], (nhid, 4 * nhid)),
        "b_f":   rnd(ks[3], (1, 4 * nhid)),
        # backward-direction LSTM
        "wih_b": rnd(ks[4], (emsize, 4 * nhid)),
        "whh_b": rnd(ks[5], (nhid, 4 * nhid)),
        "b_b":   rnd(ks[6], (1, 4 * nhid)),
        # FFNN head
        "w1": rnd(ks[7], (feat_in, fc_dim)),
        "b1": rnd(ks[8], (1, fc_dim)),
        "w2": rnd(ks[9], (fc_dim, fc_dim)),
        "b2": rnd(ks[10], (1, fc_dim)),
        "w3": rnd(ks[11], (fc_dim, num_classes)),
        "b3": jnp.zeros((1, num_classes), jnp.float32),
    }


if __name__ == "__main__":
    B, T = 2, 8
    VOCAB, EMSIZE, NHID, FC_DIM, NUM_CLASSES = 50, 128, 128, 128, 3
    SEQ_CHUNK = 4   # 2 grid steps -> exercises the scratch-carried recurrence

    key = jax.random.PRNGKey(0)
    k_p, k_s1, k_s2 = jax.random.split(key, 3)
    params = init_params(k_p, VOCAB, EMSIZE, NHID, FC_DIM, NUM_CLASSES)

    sent1 = jax.random.randint(k_s1, (B, T), 0, VOCAB, dtype=jnp.int32)
    sent2 = jax.random.randint(k_s2, (B, T), 0, VOCAB, dtype=jnp.int32)
    sent_len1 = jnp.full((B,), T, jnp.int32)
    sent_len2 = jnp.full((B,), T, jnp.int32)

    fwd = jax.jit(functools.partial(sentence_classifier_forward,
                                    nhid=NHID, seq_chunk=SEQ_CHUNK))
    logits = jax.block_until_ready(fwd(params, sent1, sent_len1, sent2, sent_len2))

    ref = _reference_forward(params, sent1, sent2, NHID)
    assert logits.shape == (B, NUM_CLASSES), logits.shape
    assert jnp.allclose(logits, ref, rtol=5e-3, atol=5e-3), (
        f"mismatch:\n{logits}\nvs\n{ref}")

    print("KERNEL_OK")
</pallas_src>

<mosaic_0001>
module attributes {stable_mosaic.version = 11 : i64} {
  func.func @bilstm_classifier_kernel(%arg0: i32, %arg1: memref<4x16x128xbf16, #tpu.memory_space<vmem>>, %arg2: memref<4x16x128xbf16, #tpu.memory_space<vmem>>, %arg3: memref<128x512xbf16, #tpu.memory_space<vmem>>, %arg4: memref<128x512xbf16, #tpu.memory_space<vmem>>, %arg5: memref<1x512xf32, #tpu.memory_space<vmem>>, %arg6: memref<1x512xf32, #tpu.memory_space<vmem>>, %arg7: memref<256x1024xbf16, #tpu.memory_space<vmem>>, %arg8: memref<1024x128xbf16, #tpu.memory_space<vmem>>, %arg9: memref<1x128xf32, #tpu.memory_space<vmem>>, %arg10: memref<128x128xbf16, #tpu.memory_space<vmem>>, %arg11: memref<1x128xf32, #tpu.memory_space<vmem>>, %arg12: memref<128x128xbf16, #tpu.memory_space<vmem>>, %arg13: memref<1x128xf32, #tpu.memory_space<vmem>>, %arg14: memref<8x128xf32, #tpu.memory_space<vmem>>, %arg15: memref<4x16x512xf32, #tpu.memory_space<vmem>>, %arg16: memref<4x16x512xf32, #tpu.memory_space<vmem>>, %arg17: memref<16x256xf32, #tpu.memory_space<vmem>>, %arg18: memref<16x256xf32, #tpu.memory_space<vmem>>, %arg19: memref<16x256xf32, #tpu.memory_space<vmem>>) attributes {dimension_semantics = [#tpu.dimension_semantics<arbitrary>], iteration_bounds = array<i64: 2>, scalar_prefetch = 0 : i64, scratch_operands = 5 : i64, tpu.core_type = #tpu.core_type<tc>, window_params = [{transform_indices = @transform_0, window_bounds = array<i64: 4, 16, 128>}, {transform_indices = @transform_1, window_bounds = array<i64: 4, 16, 128>}, {pipeline_mode = #tpu.pipeline_mode<synchronous>, transform_indices = @transform_2, window_bounds = array<i64: 128, 512>}, {pipeline_mode = #tpu.pipeline_mode<synchronous>, transform_indices = @transform_3, window_bounds = array<i64: 128, 512>}, {pipeline_mode = #tpu.pipeline_mode<synchronous>, transform_indices = @transform_4, window_bounds = array<i64: 1, 512>}, {pipeline_mode = #tpu.pipeline_mode<synchronous>, transform_indices = @transform_5, window_bounds = array<i64: 1, 512>}, {pipeline_mode = #tpu.pipeline_mode<synchronous>, transform_indices = @transform_6, window_bounds = array<i64: 256, 1024>}, {pipeline_mode = #tpu.pipeline_mode<synchronous>, transform_indices = @transform_7, window_bounds = array<i64: 1024, 128>}, {pipeline_mode = #tpu.pipeline_mode<synchronous>, transform_indices = @transform_8, window_bounds = array<i64: 1, 128>}, {pipeline_mode = #tpu.pipeline_mode<synchronous>, transform_indices = @transform_9, window_bounds = array<i64: 128, 128>}, {pipeline_mode = #tpu.pipeline_mode<synchronous>, transform_indices = @transform_10, window_bounds = array<i64: 1, 128>}, {pipeline_mode = #tpu.pipeline_mode<synchronous>, transform_indices = @transform_11, window_bounds = array<i64: 128, 128>}, {pipeline_mode = #tpu.pipeline_mode<synchronous>, transform_indices = @transform_12, window_bounds = array<i64: 1, 128>}, {pipeline_mode = #tpu.pipeline_mode<synchronous>, transform_indices = @transform_13, window_bounds = array<i64: 8, 128>}]} {
    %c0_i32 = arith.constant 0 : i32
    %0 = arith.cmpi eq, %arg0, %c0_i32 : i32
    %1 = arith.extui %0 : i1 to i32
    %c0_i32_0 = arith.constant 0 : i32
    %2 = arith.cmpi ne, %1, %c0_i32_0 : i32
    scf.if %2 {
      %cst_86 = arith.constant 0.000000e+00 : f32
      %303 = vector.broadcast %cst_86 : f32 to vector<16x256xf32>
      %c0_87 = arith.constant 0 : index
      %c0_88 = arith.constant 0 : index
      %304 = vector.load %arg17[%c0_87, %c0_88] : memref<16x256xf32, #tpu.memory_space<vmem>>, vector<16x256xf32>
      tpu.vector_store %arg17[%c0_87, %c0_88], %303 {strides = array<i32>} : memref<16x256xf32, #tpu.memory_space<vmem>>, vector<16x256xf32>,
      %cst_89 = arith.constant 0.000000e+00 : f32
      %305 = vector.broadcast %cst_89 : f32 to vector<16x256xf32>
      %c0_90 = arith.constant 0 : index
      %c0_91 = arith.constant 0 : index
      %306 = vector.load %arg18[%c0_90, %c0_91] : memref<16x256xf32, #tpu.memory_space<vmem>>, vector<16x256xf32>
      tpu.vector_store %arg18[%c0_90, %c0_91], %305 {strides = array<i32>} : memref<16x256xf32, #tpu.memory_space<vmem>>, vector<16x256xf32>,
      %cst_92 = arith.constant 0xFF800000 : f32
      %307 = vector.broadcast %cst_92 : f32 to vector<16x256xf32>
      %c0_93 = arith.constant 0 : index
      %c0_94 = arith.constant 0 : index
      %308 = vector.load %arg19[%c0_93, %c0_94] : memref<16x256xf32, #tpu.memory_space<vmem>>, vector<16x256xf32>
      tpu.vector_store %arg19[%c0_93, %c0_94], %307 {strides = array<i32>} : memref<16x256xf32, #tpu.memory_space<vmem>>, vector<16x256xf32>,
    } else {
    }
    %c0 = arith.constant 0 : index
    %c0_1 = arith.constant 0 : index
    %c0_2 = arith.constant 0 : index
    %3 = vector.load %arg1[%c0, %c0_1, %c0_2] : memref<4x16x128xbf16, #tpu.memory_space<vmem>>, vector<4x16x128xbf16>
    %4 = vector.shape_cast %3 : vector<4x16x128xbf16> to vector<64x128xbf16>
    %c0_3 = arith.constant 0 : index
    %c0_4 = arith.constant 0 : index
    %c0_5 = arith.constant 0 : index
    %5 = vector.load %arg2[%c0_3, %c0_4, %c0_5] : memref<4x16x128xbf16, #tpu.memory_space<vmem>>, vector<4x16x128xbf16>
    %6 = vector.shape_cast %5 : vector<4x16x128xbf16> to vector<64x128xbf16>
    %c0_6 = arith.constant 0 : index
    %c0_7 = arith.constant 0 : index
    %7 = vector.load %arg3[%c0_6, %c0_7] : memref<128x512xbf16, #tpu.memory_space<vmem>>, vector<128x512xbf16>
    %cst = arith.constant dense<0.000000e+00> : vector<64x512xf32>
    %8 = tpu.matmul %4, %7, %cst {dimension_numbers = #tpu.dot_dimension_numbers<[1], [0], [0], [1], [0, 0, 1, 1], [], []>} : vector<64x128xbf16>, vector<128x512xbf16>, vector<64x512xf32> -> vector<64x512xf32>
    %c0_8 = arith.constant 0 : index
    %c0_9 = arith.constant 0 : index
    %9 = vector.load %arg5[%c0_8, %c0_9] : memref<1x512xf32, #tpu.memory_space<vmem>>, vector<1x512xf32>
    %10 = vector.broadcast %9 : vector<1x512xf32> to vector<64x512xf32>
    %11 = arith.addf %8, %10 : vector<64x512xf32>
    %c0_10 = arith.constant 0 : index
    %c0_11 = arith.constant 0 : index
    %12 = vector.load %arg4[%c0_10, %c0_11] : memref<128x512xbf16, #tpu.memory_space<vmem>>, vector<128x512xbf16>
    %cst_12 = arith.constant dense<0.000000e+00> : vector<64x512xf32>
    %13 = tpu.matmul %6, %12, %cst_12 {dimension_numbers = #tpu.dot_dimension_numbers<[1], [0], [0], [1], [0, 0, 1, 1], [], []>} : vector<64x128xbf16>, vector<128x512xbf16>, vector<64x512xf32> -> vector<64x512xf32>
    %c0_13 = arith.constant 0 : index
    %c0_14 = arith.constant 0 : index
    %14 = vector.load %arg6[%c0_13, %c0_14] : memref<1x512xf32, #tpu.memory_space<vmem>>, vector<1x512xf32>
    %15 = vector.broadcast %14 : vector<1x512xf32> to vector<64x512xf32>
    %16 = arith.addf %13, %15 : vector<64x512xf32>
    %17 = vector.shape_cast %11 : vector<64x512xf32> to vector<4x16x512xf32>
    %c0_15 = arith.constant 0 : index
    %c0_16 = arith.constant 0 : index
    %c0_17 = arith.constant 0 : index
    %18 = vector.load %arg15[%c0_15, %c0_16, %c0_17] : memref<4x16x512xf32, #tpu.memory_space<vmem>>, vector<4x16x512xf32>
    tpu.vector_store %arg15[%c0_15, %c0_16, %c0_17], %17 {strides = array<i32>} : memref<4x16x512xf32, #tpu.memory_space<vmem>>, vector<4x16x512xf32>,
    %19 = vector.shape_cast %16 : vector<64x512xf32> to vector<4x16x512xf32>
    %c0_18 = arith.constant 0 : index
    %c0_19 = arith.constant 0 : index
    %c0_20 = arith.constant 0 : index
    %20 = vector.load %arg16[%c0_18, %c0_19, %c0_20] : memref<4x16x512xf32, #tpu.memory_space<vmem>>, vector<4x16x512xf32>
    tpu.vector_store %arg16[%c0_18, %c0_19, %c0_20], %19 {strides = array<i32>} : memref<4x16x512xf32, #tpu.memory_space<vmem>>, vector<4x16x512xf32>,
    %c0_21 = arith.constant 0 : index
    %c0_22 = arith.constant 0 : index
    %21 = vector.load %arg7[%c0_21, %c0_22] : memref<256x1024xbf16, #tpu.memory_space<vmem>>, vector<256x1024xbf16>
    %c0_23 = arith.constant 0 : index
    %c0_24 = arith.constant 0 : index
    %22 = vector.load %arg17[%c0_23, %c0_24] : memref<16x256xf32, #tpu.memory_space<vmem>>, vector<16x256xf32>
    %c0_25 = arith.constant 0 : index
    %c0_26 = arith.constant 0 : index
    %23 = vector.load %arg18[%c0_25, %c0_26] : memref<16x256xf32, #tpu.memory_space<vmem>>, vector<16x256xf32>
    %c0_27 = arith.constant 0 : index
    %c0_28 = arith.constant 0 : index
    %24 = vector.load %arg19[%c0_27, %c0_28] : memref<16x256xf32, #tpu.memory_space<vmem>>, vector<16x256xf32>
    %c0_i32_29 = arith.constant 0 : i32
    %25 = arith.truncf %22 : vector<16x256xf32> to vector<16x256xbf16>
    %cst_30 = arith.constant dense<0.000000e+00> : vector<16x1024xf32>
    %26 = tpu.matmul %25, %21, %cst_30 {dimension_numbers = #tpu.dot_dimension_numbers<[1], [0], [0], [1], [0, 0, 1, 1], [], []>} : vector<16x256xbf16>, vector<256x1024xbf16>, vector<16x1024xf32> -> vector<16x1024xf32>
    %27 = arith.index_cast %c0_i32_29 : i32 to index
    %c0_31 = arith.constant 0 : index
    %c0_32 = arith.constant 0 : index
    %28 = vector.load %arg15[%27, %c0_31, %c0_32] : memref<4x16x512xf32, #tpu.memory_space<vmem>>, vector<1x16x512xf32>
    %29 = vector.shape_cast %28 : vector<1x16x512xf32> to vector<16x512xf32>
    %30 = vector.extract_strided_slice %26 {offsets = [0, 0], sizes = [16, 512], strides = [1, 1]} : vector<16x1024xf32> to vector<16x512xf32>
    %31 = arith.addf %29, %30 : vector<16x512xf32>
    %c3_i32 = arith.constant 3 : i32
    %32 = arith.subi %c3_i32, %c0_i32_29 : i32
    %33 = arith.index_cast %32 : i32 to index
    %c0_33 = arith.constant 0 : index
    %c0_34 = arith.constant 0 : index
    %34 = vector.load %arg16[%33, %c0_33, %c0_34] : memref<4x16x512xf32, #tpu.memory_space<vmem>>, vector<1x16x512xf32>
    %35 = vector.shape_cast %34 : vector<1x16x512xf32> to vector<16x512xf32>
    %36 = vector.extract_strided_slice %26 {offsets = [0, 512], sizes = [16, 512], strides = [1, 1]} : vector<16x1024xf32> to vector<16x512xf32>
    %37 = arith.addf %35, %36 : vector<16x512xf32>
    %38 = vector.extract_strided_slice %23 {offsets = [0, 0], sizes = [16, 128], strides = [1, 1]} : vector<16x256xf32> to vector<16x128xf32>
    %39 = vector.extract_strided_slice %31 {offsets = [0, 0], sizes = [16, 128], strides = [1, 1]} : vector<16x512xf32> to vector<16x128xf32>
    %40 = arith.negf %39 : vector<16x128xf32>
    %41 = math.exp %40 : vector<16x128xf32>
    %cst_35 = arith.constant 1.000000e+00 : f32
    %42 = vector.broadcast %cst_35 : f32 to vector<16x128xf32>
    %43 = arith.addf %42, %41 : vector<16x128xf32>
    %44 = arith.divf %42, %43 : vector<16x128xf32>
    %45 = vector.extract_strided_slice %31 {offsets = [0, 128], sizes = [16, 128], strides = [1, 1]} : vector<16x512xf32> to vector<16x128xf32>
    %46 = arith.negf %45 : vector<16x128xf32>
    %47 = math.exp %46 : vector<16x128xf32>
    %cst_36 = arith.constant 1.000000e+00 : f32
    %48 = vector.broadcast %cst_36 : f32 to vector<16x128xf32>
    %49 = arith.addf %48, %47 : vector<16x128xf32>
    %50 = arith.divf %48, %49 : vector<16x128xf32>
    %51 = vector.extract_strided_slice %31 {offsets = [0, 256], sizes = [16, 128], strides = [1, 1]} : vector<16x512xf32> to vector<16x128xf32>
    %52 = math.tanh %51 : vector<16x128xf32>
    %53 = vector.extract_strided_slice %31 {offsets = [0, 384], sizes = [16, 128], strides = [1, 1]} : vector<16x512xf32> to vector<16x128xf32>
    %54 = arith.negf %53 : vector<16x128xf32>
    %55 = math.exp %54 : vector<16x128xf32>
    %cst_37 = arith.constant 1.000000e+00 : f32
    %56 = vector.broadcast %cst_37 : f32 to vector<16x128xf32>
    %57 = arith.addf %56, %55 : vector<16x128xf32>
    %58 = arith.divf %56, %57 : vector<16x128xf32>
    %59 = arith.mulf %50, %38 : vector<16x128xf32>
    %60 = arith.mulf %44, %52 : vector<16x128xf32>
    %61 = arith.addf %59, %60 : vector<16x128xf32>
    %62 = math.tanh %61 : vector<16x128xf32>
    %63 = arith.mulf %58, %62 : vector<16x128xf32>
    %64 = vector.extract_strided_slice %23 {offsets = [0, 128], sizes = [16, 128], strides = [1, 1]} : vector<16x256xf32> to vector<16x128xf32>
    %65 = vector.extract_strided_slice %37 {offsets = [0, 0], sizes = [16, 128], strides = [1, 1]} : vector<16x512xf32> to vector<16x128xf32>
    %66 = arith.negf %65 : vector<16x128xf32>
    %67 = math.exp %66 : vector<16x128xf32>
    %cst_38 = arith.constant 1.000000e+00 : f32
    %68 = vector.broadcast %cst_38 : f32 to vector<16x128xf32>
    %69 = arith.addf %68, %67 : vector<16x128xf32>
    %70 = arith.divf %68, %69 : vector<16x128xf32>
    %71 = vector.extract_strided_slice %37 {offsets = [0, 128], sizes = [16, 128], strides = [1, 1]} : vector<16x512xf32> to vector<16x128xf32>
    %72 = arith.negf %71 : vector<16x128xf32>
    %73 = math.exp %72 : vector<16x128xf32>
    %cst_39 = arith.constant 1.000000e+00 : f32
    %74 = vector.broadcast %cst_39 : f32 to vector<16x128xf32>
    %75 = arith.addf %74, %73 : vector<16x128xf32>
    %76 = arith.divf %74, %75 : vector<16x128xf32>
    %77 = vector.extract_strided_slice %37 {offsets = [0, 256], sizes = [16, 128], strides = [1, 1]} : vector<16x512xf32> to vector<16x128xf32>
    %78 = math.tanh %77 : vector<16x128xf32>
    %79 = vector.extract_strided_slice %37 {offsets = [0, 384], sizes = [16, 128], strides = [1, 1]} : vector<16x512xf32> to vector<16x128xf32>
    %80 = arith.negf %79 : vector<16x128xf32>
    %81 = math.exp %80 : vector<16x128xf32>
    %cst_40 = arith.constant 1.000000e+00 : f32
    %82 = vector.broadcast %cst_40 : f32 to vector<16x128xf32>
    %83 = arith.addf %82, %81 : vector<16x128xf32>
    %84 = arith.divf %82, %83 : vector<16x128xf32>
    %85 = arith.mulf %76, %64 : vector<16x128xf32>
    %86 = arith.mulf %70, %78 : vector<16x128xf32>
    %87 = arith.addf %85, %86 : vector<16x128xf32>
    %88 = math.tanh %87 : vector<16x128xf32>
    %89 = arith.mulf %84, %88 : vector<16x128xf32>
    %90 = tpu.concatenate %63, %89 in 1 : vector<16x128xf32>, vector<16x128xf32> -> vector<16x256xf32>
    %91 = tpu.concatenate %61, %87 in 1 : vector<16x128xf32>, vector<16x128xf32> -> vector<16x256xf32>
    %92 = arith.maximumf %24, %90 : vector<16x256xf32>
    %c1_i32 = arith.constant 1 : i32
    %93 = arith.truncf %90 : vector<16x256xf32> to vector<16x256xbf16>
    %cst_41 = arith.constant dense<0.000000e+00> : vector<16x1024xf32>
    %94 = tpu.matmul %93, %21, %cst_41 {dimension_numbers = #tpu.dot_dimension_numbers<[1], [0], [0], [1], [0, 0, 1, 1], [], []>} : vector<16x256xbf16>, vector<256x1024xbf16>, vector<16x1024xf32> -> vector<16x1024xf32>
    %95 = arith.index_cast %c1_i32 : i32 to index
    %c0_42 = arith.constant 0 : index
    %c0_43 = arith.constant 0 : index
    %96 = vector.load %arg15[%95, %c0_42, %c0_43] : memref<4x16x512xf32, #tpu.memory_space<vmem>>, vector<1x16x512xf32>
    %97 = vector.shape_cast %96 : vector<1x16x512xf32> to vector<16x512xf32>
    %98 = vector.extract_strided_slice %94 {offsets = [0, 0], sizes = [16, 512], strides = [1, 1]} : vector<16x1024xf32> to vector<16x512xf32>
    %99 = arith.addf %97, %98 : vector<16x512xf32>
    %c3_i32_44 = arith.constant 3 : i32
    %100 = arith.subi %c3_i32_44, %c1_i32 : i32
    %101 = arith.index_cast %100 : i32 to index
    %c0_45 = arith.constant 0 : index
    %c0_46 = arith.constant 0 : index
    %102 = vector.load %arg16[%101, %c0_45, %c0_46] : memref<4x16x512xf32, #tpu.memory_space<vmem>>, vector<1x16x512xf32>
    %103 = vector.shape_cast %102 : vector<1x16x512xf32> to vector<16x512xf32>
    %104 = vector.extract_strided_slice %94 {offsets = [0, 512], sizes = [16, 512], strides = [1, 1]} : vector<16x1024xf32> to vector<16x512xf32>
    %105 = arith.addf %103, %104 : vector<16x512xf32>
    %106 = vector.extract_strided_slice %91 {offsets = [0, 0], sizes = [16, 128], strides = [1, 1]} : vector<16x256xf32> to vector<16x128xf32>
    %107 = vector.extract_strided_slice %99 {offsets = [0, 0], sizes = [16, 128], strides = [1, 1]} : vector<16x512xf32> to vector<16x128xf32>
    %108 = arith.negf %107 : vector<16x128xf32>
    %109 = math.exp %108 : vector<16x128xf32>
    %cst_47 = arith.constant 1.000000e+00 : f32
    %110 = vector.broadcast %cst_47 : f32 to vector<16x128xf32>
    %111 = arith.addf %110, %109 : vector<16x128xf32>
    %112 = arith.divf %110, %111 : vector<16x128xf32>
    %113 = vector.extract_strided_slice %99 {offsets = [0, 128], sizes = [16, 128], strides = [1, 1]} : vector<16x512xf32> to vector<16x128xf32>
    %114 = arith.negf %113 : vector<16x128xf32>
    %115 = math.exp %114 : vector<16x128xf32>
    %cst_48 = arith.constant 1.000000e+00 : f32
    %116 = vector.broadcast %cst_48 : f32 to vector<16x128xf32>
    %117 = arith.addf %116, %115 : vector<16x128xf32>
    %118 = arith.divf %116, %117 : vector<16x128xf32>
    %119 = vector.extract_strided_slice %99 {offsets = [0, 256], sizes = [16, 128], strides = [1, 1]} : vector<16x512xf32> to vector<16x128xf32>
    %120 = math.tanh %119 : vector<16x128xf32>
    %121 = vector.extract_strided_slice %99 {offsets = [0, 384], sizes = [16, 128], strides = [1, 1]} : vector<16x512xf32> to vector<16x128xf32>
    %122 = arith.negf %121 : vector<16x128xf32>
    %123 = math.exp %122 : vector<16x128xf32>
    %cst_49 = arith.constant 1.000000e+00 : f32
    %124 = vector.broadcast %cst_49 : f32 to vector<16x128xf32>
    %125 = arith.addf %124, %123 : vector<16x128xf32>
    %126 = arith.divf %124, %125 : vector<16x128xf32>
    %127 = arith.mulf %118, %106 : vector<16x128xf32>
    %128 = arith.mulf %112, %120 : vector<16x128xf32>
    %129 = arith.addf %127, %128 : vector<16x128xf32>
    %130 = math.tanh %129 : vector<16x128xf32>
    %131 = arith.mulf %126, %130 : vector<16x128xf32>
    %132 = vector.extract_strided_slice %91 {offsets = [0, 128], sizes = [16, 128], strides = [1, 1]} : vector<16x256xf32> to vector<16x128xf32>
    %133 = vector.extract_strided_slice %105 {offsets = [0, 0], sizes = [16, 128], strides = [1, 1]} : vector<16x512xf32> to vector<16x128xf32>
    %134 = arith.negf %133 : vector<16x128xf32>
    %135 = math.exp %134 : vector<16x128xf32>
    %cst_50 = arith.constant 1.000000e+00 : f32
    %136 = vector.broadcast %cst_50 : f32 to vector<16x128xf32>
    %137 = arith.addf %136, %135 : vector<16x128xf32>
    %138 = arith.divf %136, %137 : vector<16x128xf32>
    %139 = vector.extract_strided_slice %105 {offsets = [0, 128], sizes = [16, 128], strides = [1, 1]} : vector<16x512xf32> to vector<16x128xf32>
    %140 = arith.negf %139 : vector<16x128xf32>
    %141 = math.exp %140 : vector<16x128xf32>
    %cst_51 = arith.constant 1.000000e+00 : f32
    %142 = vector.broadcast %cst_51 : f32 to vector<16x128xf32>
    %143 = arith.addf %142, %141 : vector<16x128xf32>
    %144 = arith.divf %142, %143 : vector<16x128xf32>
    %145 = vector.extract_strided_slice %105 {offsets = [0, 256], sizes = [16, 128], strides = [1, 1]} : vector<16x512xf32> to vector<16x128xf32>
    %146 = math.tanh %145 : vector<16x128xf32>
    %147 = vector.extract_strided_slice %105 {offsets = [0, 384], sizes = [16, 128], strides = [1, 1]} : vector<16x512xf32> to vector<16x128xf32>
    %148 = arith.negf %147 : vector<16x128xf32>
    %149 = math.exp %148 : vector<16x128xf32>
    %cst_52 = arith.constant 1.000000e+00 : f32
    %150 = vector.broadcast %cst_52 : f32 to vector<16x128xf32>
    %151 = arith.addf %150, %149 : vector<16x128xf32>
    %152 = arith.divf %150, %151 : vector<16x128xf32>
    %153 = arith.mulf %144, %132 : vector<16x128xf32>
    %154 = arith.mulf %138, %146 : vector<16x128xf32>
    %155 = arith.addf %153, %154 : vector<16x128xf32>
    %156 = math.tanh %155 : vector<16x128xf32>
    %157 = arith.mulf %152, %156 : vector<16x128xf32>
    %158 = tpu.concatenate %131, %157 in 1 : vector<16x128xf32>, vector<16x128xf32> -> vector<16x256xf32>
    %159 = tpu.concatenate %129, %155 in 1 : vector<16x128xf32>, vector<16x128xf32> -> vector<16x256xf32>
    %160 = arith.maximumf %92, %158 : vector<16x256xf32>
    %c2_i32 = arith.constant 2 : i32
    %161 = arith.truncf %158 : vector<16x256xf32> to vector<16x256xbf16>
    %cst_53 = arith.constant dense<0.000000e+00> : vector<16x1024xf32>
    %162 = tpu.matmul %161, %21, %cst_53 {dimension_numbers = #tpu.dot_dimension_numbers<[1], [0], [0], [1], [0, 0, 1, 1], [], []>} : vector<16x256xbf16>, vector<256x1024xbf16>, vector<16x1024xf32> -> vector<16x1024xf32>
    %163 = arith.index_cast %c2_i32 : i32 to index
    %c0_54 = arith.constant 0 : index
    %c0_55 = arith.constant 0 : index
    %164 = vector.load %arg15[%163, %c0_54, %c0_55] : memref<4x16x512xf32, #tpu.memory_space<vmem>>, vector<1x16x512xf32>
    %165 = vector.shape_cast %164 : vector<1x16x512xf32> to vector<16x512xf32>
    %166 = vector.extract_strided_slice %162 {offsets = [0, 0], sizes = [16, 512], strides = [1, 1]} : vector<16x1024xf32> to vector<16x512xf32>
    %167 = arith.addf %165, %166 : vector<16x512xf32>
    %c3_i32_56 = arith.constant 3 : i32
    %168 = arith.subi %c3_i32_56, %c2_i32 : i32
    %169 = arith.index_cast %168 : i32 to index
    %c0_57 = arith.constant 0 : index
    %c0_58 = arith.constant 0 : index
    %170 = vector.load %arg16[%169, %c0_57, %c0_58] : memref<4x16x512xf32, #tpu.memory_space<vmem>>, vector<1x16x512xf32>
    %171 = vector.shape_cast %170 : vector<1x16x512xf32> to vector<16x512xf32>
    %172 = vector.extract_strided_slice %162 {offsets = [0, 512], sizes = [16, 512], strides = [1, 1]} : vector<16x1024xf32> to vector<16x512xf32>
    %173 = arith.addf %171, %172 : vector<16x512xf32>
    %174 = vector.extract_strided_slice %159 {offsets = [0, 0], sizes = [16, 128], strides = [1, 1]} : vector<16x256xf32> to vector<16x128xf32>
    %175 = vector.extract_strided_slice %167 {offsets = [0, 0], sizes = [16, 128], strides = [1, 1]} : vector<16x512xf32> to vector<16x128xf32>
    %176 = arith.negf %175 : vector<16x128xf32>
    %177 = math.exp %176 : vector<16x128xf32>
    %cst_59 = arith.constant 1.000000e+00 : f32
    %178 = vector.broadcast %cst_59 : f32 to vector<16x128xf32>
    %179 = arith.addf %178, %177 : vector<16x128xf32>
    %180 = arith.divf %178, %179 : vector<16x128xf32>
    %181 = vector.extract_strided_slice %167 {offsets = [0, 128], sizes = [16, 128], strides = [1, 1]} : vector<16x512xf32> to vector<16x128xf32>
    %182 = arith.negf %181 : vector<16x128xf32>
    %183 = math.exp %182 : vector<16x128xf32>
    %cst_60 = arith.constant 1.000000e+00 : f32
    %184 = vector.broadcast %cst_60 : f32 to vector<16x128xf32>
    %185 = arith.addf %184, %183 : vector<16x128xf32>
    %186 = arith.divf %184, %185 : vector<16x128xf32>
    %187 = vector.extract_strided_slice %167 {offsets = [0, 256], sizes = [16, 128], strides = [1, 1]} : vector<16x512xf32> to vector<16x128xf32>
    %188 = math.tanh %187 : vector<16x128xf32>
    %189 = vector.extract_strided_slice %167 {offsets = [0, 384], sizes = [16, 128], strides = [1, 1]} : vector<16x512xf32> to vector<16x128xf32>
    %190 = arith.negf %189 : vector<16x128xf32>
    %191 = math.exp %190 : vector<16x128xf32>
    %cst_61 = arith.constant 1.000000e+00 : f32
    %192 = vector.broadcast %cst_61 : f32 to vector<16x128xf32>
    %193 = arith.addf %192, %191 : vector<16x128xf32>
    %194 = arith.divf %192, %193 : vector<16x128xf32>
    %195 = arith.mulf %186, %174 : vector<16x128xf32>
    %196 = arith.mulf %180, %188 : vector<16x128xf32>
    %197 = arith.addf %195, %196 : vector<16x128xf32>
    %198 = math.tanh %197 : vector<16x128xf32>
    %199 = arith.mulf %194, %198 : vector<16x128xf32>
    %200 = vector.extract_strided_slice %159 {offsets = [0, 128], sizes = [16, 128], strides = [1, 1]} : vector<16x256xf32> to vector<16x128xf32>
    %201 = vector.extract_strided_slice %173 {offsets = [0, 0], sizes = [16, 128], strides = [1, 1]} : vector<16x512xf32> to vector<16x128xf32>
    %202 = arith.negf %201 : vector<16x128xf32>
    %203 = math.exp %202 : vector<16x128xf32>
    %cst_62 = arith.constant 1.000000e+00 : f32
    %204 = vector.broadcast %cst_62 : f32 to vector<16x128xf32>
    %205 = arith.addf %204, %203 : vector<16x128xf32>
    %206 = arith.divf %204, %205 : vector<16x128xf32>
    %207 = vector.extract_strided_slice %173 {offsets = [0, 128], sizes = [16, 128], strides = [1, 1]} : vector<16x512xf32> to vector<16x128xf32>
    %208 = arith.negf %207 : vector<16x128xf32>
    %209 = math.exp %208 : vector<16x128xf32>
    %cst_63 = arith.constant 1.000000e+00 : f32
    %210 = vector.broadcast %cst_63 : f32 to vector<16x128xf32>
    %211 = arith.addf %210, %209 : vector<16x128xf32>
    %212 = arith.divf %210, %211 : vector<16x128xf32>
    %213 = vector.extract_strided_slice %173 {offsets = [0, 256], sizes = [16, 128], strides = [1, 1]} : vector<16x512xf32> to vector<16x128xf32>
    %214 = math.tanh %213 : vector<16x128xf32>
    %215 = vector.extract_strided_slice %173 {offsets = [0, 384], sizes = [16, 128], strides = [1, 1]} : vector<16x512xf32> to vector<16x128xf32>
    %216 = arith.negf %215 : vector<16x128xf32>
    %217 = math.exp %216 : vector<16x128xf32>
    %cst_64 = arith.constant 1.000000e+00 : f32
    %218 = vector.broadcast %cst_64 : f32 to vector<16x128xf32>
    %219 = arith.addf %218, %217 : vector<16x128xf32>
    %220 = arith.divf %218, %219 : vector<16x128xf32>
    %221 = arith.mulf %212, %200 : vector<16x128xf32>
    %222 = arith.mulf %206, %214 : vector<16x128xf32>
    %223 = arith.addf %221, %222 : vector<16x128xf32>
    %224 = math.tanh %223 : vector<16x128xf32>
    %225 = arith.mulf %220, %224 : vector<16x128xf32>
    %226 = tpu.concatenate %199, %225 in 1 : vector<16x128xf32>, vector<16x128xf32> -> vector<16x256xf32>
    %227 = tpu.concatenate %197, %223 in 1 : vector<16x128xf32>, vector<16x128xf32> -> vector<16x256xf32>
    %228 = arith.maximumf %160, %226 : vector<16x256xf32>
    %c3_i32_65 = arith.constant 3 : i32
    %229 = arith.truncf %226 : vector<16x256xf32> to vector<16x256xbf16>
    %cst_66 = arith.constant dense<0.000000e+00> : vector<16x1024xf32>
    %230 = tpu.matmul %229, %21, %cst_66 {dimension_numbers = #tpu.dot_dimension_numbers<[1], [0], [0], [1], [0, 0, 1, 1], [], []>} : vector<16x256xbf16>, vector<256x1024xbf16>, vector<16x1024xf32> -> vector<16x1024xf32>
    %231 = arith.index_cast %c3_i32_65 : i32 to index
    %c0_67 = arith.constant 0 : index
    %c0_68 = arith.constant 0 : index
    %232 = vector.load %arg15[%231, %c0_67, %c0_68] : memref<4x16x512xf32, #tpu.memory_space<vmem>>, vector<1x16x512xf32>
    %233 = vector.shape_cast %232 : vector<1x16x512xf32> to vector<16x512xf32>
    %234 = vector.extract_strided_slice %230 {offsets = [0, 0], sizes = [16, 512], strides = [1, 1]} : vector<16x1024xf32> to vector<16x512xf32>
    %235 = arith.addf %233, %234 : vector<16x512xf32>
    %c3_i32_69 = arith.constant 3 : i32
    %236 = arith.subi %c3_i32_69, %c3_i32_65 : i32
    %237 = arith.index_cast %236 : i32 to index
    %c0_70 = arith.constant 0 : index
    %c0_71 = arith.constant 0 : index
    %238 = vector.load %arg16[%237, %c0_70, %c0_71] : memref<4x16x512xf32, #tpu.memory_space<vmem>>, vector<1x16x512xf32>
    %239 = vector.shape_cast %238 : vector<1x16x512xf32> to vector<16x512xf32>
    %240 = vector.extract_strided_slice %230 {offsets = [0, 512], sizes = [16, 512], strides = [1, 1]} : vector<16x1024xf32> to vector<16x512xf32>
    %241 = arith.addf %239, %240 : vector<16x512xf32>
    %242 = vector.extract_strided_slice %227 {offsets = [0, 0], sizes = [16, 128], strides = [1, 1]} : vector<16x256xf32> to vector<16x128xf32>
    %243 = vector.extract_strided_slice %235 {offsets = [0, 0], sizes = [16, 128], strides = [1, 1]} : vector<16x512xf32> to vector<16x128xf32>
    %244 = arith.negf %243 : vector<16x128xf32>
    %245 = math.exp %244 : vector<16x128xf32>
    %cst_72 = arith.constant 1.000000e+00 : f32
    %246 = vector.broadcast %cst_72 : f32 to vector<16x128xf32>
    %247 = arith.addf %246, %245 : vector<16x128xf32>
    %248 = arith.divf %246, %247 : vector<16x128xf32>
    %249 = vector.extract_strided_slice %235 {offsets = [0, 128], sizes = [16, 128], strides = [1, 1]} : vector<16x512xf32> to vector<16x128xf32>
    %250 = arith.negf %249 : vector<16x128xf32>
    %251 = math.exp %250 : vector<16x128xf32>
    %cst_73 = arith.constant 1.000000e+00 : f32
    %252 = vector.broadcast %cst_73 : f32 to vector<16x128xf32>
    %253 = arith.addf %252, %251 : vector<16x128xf32>
    %254 = arith.divf %252, %253 : vector<16x128xf32>
    %255 = vector.extract_strided_slice %235 {offsets = [0, 256], sizes = [16, 128], strides = [1, 1]} : vector<16x512xf32> to vector<16x128xf32>
    %256 = math.tanh %255 : vector<16x128xf32>
    %257 = vector.extract_strided_slice %235 {offsets = [0, 384], sizes = [16, 128], strides = [1, 1]} : vector<16x512xf32> to vector<16x128xf32>
    %258 = arith.negf %257 : vector<16x128xf32>
    %259 = math.exp %258 : vector<16x128xf32>
    %cst_74 = arith.constant 1.000000e+00 : f32
    %260 = vector.broadcast %cst_74 : f32 to vector<16x128xf32>
    %261 = arith.addf %260, %259 : vector<16x128xf32>
    %262 = arith.divf %260, %261 : vector<16x128xf32>
    %263 = arith.mulf %254, %242 : vector<16x128xf32>
    %264 = arith.mulf %248, %256 : vector<16x128xf32>
    %265 = arith.addf %263, %264 : vector<16x128xf32>
    %266 = math.tanh %265 : vector<16x128xf32>
    %267 = arith.mulf %262, %266 : vector<16x128xf32>
    %268 = vector.extract_strided_slice %227 {offsets = [0, 128], sizes = [16, 128], strides = [1, 1]} : vector<16x256xf32> to vector<16x128xf32>
    %269 = vector.extract_strided_slice %241 {offsets = [0, 0], sizes = [16, 128], strides = [1, 1]} : vector<16x512xf32> to vector<16x128xf32>
    %270 = arith.negf %269 : vector<16x128xf32>
    %271 = math.exp %270 : vector<16x128xf32>
    %cst_75 = arith.constant 1.000000e+00 : f32
    %272 = vector.broadcast %cst_75 : f32 to vector<16x128xf32>
    %273 = arith.addf %272, %271 : vector<16x128xf32>
    %274 = arith.divf %272, %273 : vector<16x128xf32>
    %275 = vector.extract_strided_slice %241 {offsets = [0, 128], sizes = [16, 128], strides = [1, 1]} : vector<16x512xf32> to vector<16x128xf32>
    %276 = arith.negf %275 : vector<16x128xf32>
    %277 = math.exp %276 : vector<16x128xf32>
    %cst_76 = arith.constant 1.000000e+00 : f32
    %278 = vector.broadcast %cst_76 : f32 to vector<16x128xf32>
    %279 = arith.addf %278, %277 : vector<16x128xf32>
    %280 = arith.divf %278, %279 : vector<16x128xf32>
    %281 = vector.extract_strided_slice %241 {offsets = [0, 256], sizes = [16, 128], strides = [1, 1]} : vector<16x512xf32> to vector<16x128xf32>
    %282 = math.tanh %281 : vector<16x128xf32>
    %283 = vector.extract_strided_slice %241 {offsets = [0, 384], sizes = [16, 128], strides = [1, 1]} : vector<16x512xf32> to vector<16x128xf32>
    %284 = arith.negf %283 : vector<16x128xf32>
    %285 = math.exp %284 : vector<16x128xf32>
    %cst_77 = arith.constant 1.000000e+00 : f32
    %286 = vector.broadcast %cst_77 : f32 to vector<16x128xf32>
    %287 = arith.addf %286, %285 : vector<16x128xf32>
    %288 = arith.divf %286, %287 : vector<16x128xf32>
    %289 = arith.mulf %280, %268 : vector<16x128xf32>
    %290 = arith.mulf %274, %282 : vector<16x128xf32>
    %291 = arith.addf %289, %290 : vector<16x128xf32>
    %292 = math.tanh %291 : vector<16x128xf32>
    %293 = arith.mulf %288, %292 : vector<16x128xf32>
    %294 = tpu.concatenate %267, %293 in 1 : vector<16x128xf32>, vector<16x128xf32> -> vector<16x256xf32>
    %295 = tpu.concatenate %265, %291 in 1 : vector<16x128xf32>, vector<16x128xf32> -> vector<16x256xf32>
    %296 = arith.maximumf %228, %294 : vector<16x256xf32>
    %c4_i32 = arith.constant 4 : i32
    %c0_78 = arith.constant 0 : index
    %c0_79 = arith.constant 0 : index
    %297 = vector.load %arg17[%c0_78, %c0_79] : memref<16x256xf32, #tpu.memory_space<vmem>>, vector<16x256xf32>
    tpu.vector_store %arg17[%c0_78, %c0_79], %294 {strides = array<i32>} : memref<16x256xf32, #tpu.memory_space<vmem>>, vector<16x256xf32>,
    %c0_80 = arith.constant 0 : index
    %c0_81 = arith.constant 0 : index
    %298 = vector.load %arg18[%c0_80, %c0_81] : memref<16x256xf32, #tpu.memory_space<vmem>>, vector<16x256xf32>
    tpu.vector_store %arg18[%c0_80, %c0_81], %295 {strides = array<i32>} : memref<16x256xf32, #tpu.memory_space<vmem>>, vector<16x256xf32>,
    %c0_82 = arith.constant 0 : index
    %c0_83 = arith.constant 0 : index
    %299 = vector.load %arg19[%c0_82, %c0_83] : memref<16x256xf32, #tpu.memory_space<vmem>>, vector<16x256xf32>
    tpu.vector_store %arg19[%c0_82, %c0_83], %296 {strides = array<i32>} : memref<16x256xf32, #tpu.memory_space<vmem>>, vector<16x256xf32>,
    %c1_i32_84 = arith.constant 1 : i32
    %300 = arith.cmpi eq, %arg0, %c1_i32_84 : i32
    %301 = arith.extui %300 : i1 to i32
    %c0_i32_85 = arith.constant 0 : i32
    %302 = arith.cmpi ne, %301, %c0_i32_85 : i32
    scf.if %302 {
      %303 = vector.extract_strided_slice %296 {offsets = [0, 0], sizes = [8, 256], strides = [1, 1]} : vector<16x256xf32> to vector<8x256xf32>
      %304 = vector.extract_strided_slice %296 {offsets = [8, 0], sizes = [8, 256], strides = [1, 1]} : vector<16x256xf32> to vector<8x256xf32>
      %305 = arith.mulf %303, %304 : vector<8x256xf32>
      %306 = arith.subf %303, %304 : vector<8x256xf32>
      %307 = math.absf %306 : vector<8x256xf32>
      %308 = tpu.concatenate %303, %304, %305, %307 in 1 : vector<8x256xf32>, vector<8x256xf32>, vector<8x256xf32>, vector<8x256xf32> -> vector<8x1024xf32>
      %309 = arith.truncf %308 : vector<8x1024xf32> to vector<8x1024xbf16>
      %c0_86 = arith.constant 0 : index
      %c0_87 = arith.constant 0 : index
      %310 = vector.load %arg8[%c0_86, %c0_87] : memref<1024x128xbf16, #tpu.memory_space<vmem>>, vector<1024x128xbf16>
      %cst_88 = arith.constant dense<0.000000e+00> : vector<8x128xf32>
      %311 = tpu.matmul %309, %310, %cst_88 {dimension_numbers = #tpu.dot_dimension_numbers<[1], [0], [0], [1], [0, 0, 1, 1], [], []>} : vector<8x1024xbf16>, vector<1024x128xbf16>, vector<8x128xf32> -> vector<8x128xf32>
      %c0_89 = arith.constant 0 : index
      %c0_90 = arith.constant 0 : index
      %312 = vector.load %arg9[%c0_89, %c0_90] : memref<1x128xf32, #tpu.memory_space<vmem>>, vector<1x128xf32>
      %313 = vector.broadcast %312 : vector<1x128xf32> to vector<8x128xf32>
      %314 = arith.addf %311, %313 : vector<8x128xf32>
      %315 = math.tanh %314 : vector<8x128xf32>
      %316 = arith.truncf %315 : vector<8x128xf32> to vector<8x128xbf16>
      %c0_91 = arith.constant 0 : index
      %c0_92 = arith.constant 0 : index
      %317 = vector.load %arg10[%c0_91, %c0_92] : memref<128x128xbf16, #tpu.memory_space<vmem>>, vector<128x128xbf16>
      %cst_93 = arith.constant dense<0.000000e+00> : vector<8x128xf32>
      %318 = tpu.matmul %316, %317, %cst_93 {dimension_numbers = #tpu.dot_dimension_numbers<[1], [0], [0], [1], [0, 0, 1, 1], [], []>} : vector<8x128xbf16>, vector<128x128xbf16>, vector<8x128xf32> -> vector<8x128xf32>
      %c0_94 = arith.constant 0 : index
      %c0_95 = arith.constant 0 : index
      %319 = vector.load %arg11[%c0_94, %c0_95] : memref<1x128xf32, #tpu.memory_space<vmem>>, vector<1x128xf32>
      %320 = vector.broadcast %319 : vector<1x128xf32> to vector<8x128xf32>
      %321 = arith.addf %318, %320 : vector<8x128xf32>
      %322 = math.tanh %321 : vector<8x128xf32>
      %323 = arith.truncf %322 : vector<8x128xf32> to vector<8x128xbf16>
      %c0_96 = arith.constant 0 : index
      %c0_97 = arith.constant 0 : index
      %324 = vector.load %arg12[%c0_96, %c0_97] : memref<128x128xbf16, #tpu.memory_space<vmem>>, vector<128x128xbf16>
      %cst_98 = arith.constant dense<0.000000e+00> : vector<8x128xf32>
      %325 = tpu.matmul %323, %324, %cst_98 {dimension_numbers = #tpu.dot_dimension_numbers<[1], [0], [0], [1], [0, 0, 1, 1], [], []>} : vector<8x128xbf16>, vector<128x128xbf16>, vector<8x128xf32> -> vector<8x128xf32>
      %c0_99 = arith.constant 0 : index
      %c0_100 = arith.constant 0 : index
      %326 = vector.load %arg13[%c0_99, %c0_100] : memref<1x128xf32, #tpu.memory_space<vmem>>, vector<1x128xf32>
      %327 = vector.broadcast %326 : vector<1x128xf32> to vector<8x128xf32>
      %328 = arith.addf %325, %327 : vector<8x128xf32>
      %c0_101 = arith.constant 0 : index
      %c0_102 = arith.constant 0 : index
      %329 = vector.load %arg14[%c0_101, %c0_102] : memref<8x128xf32, #tpu.memory_space<vmem>>, vector<8x128xf32>
      tpu.vector_store %arg14[%c0_101, %c0_102], %328 {strides = array<i32>} : memref<8x128xf32, #tpu.memory_space<vmem>>, vector<8x128xf32>,
    } else {
    }
    return
  }
  func.func @transform_0(%arg0: i32) -> (i32, i32, i32) {
    %c0_i32 = arith.constant 0 : i32
    %c0_i32_0 = arith.constant 0 : i32
    %c0_i32_1 = arith.constant 0 : i32
    return %arg0, %c0_i32, %c0_i32_0 : i32, i32, i32
  }
  func.func @transform_1(%arg0: i32) -> (i32, i32, i32) {
    %c1_i32 = arith.constant 1 : i32
    %0 = arith.subi %c1_i32, %arg0 : i32
    %c0_i32 = arith.constant 0 : i32
    %c0_i32_0 = arith.constant 0 : i32
    %c0_i32_1 = arith.constant 0 : i32
    return %0, %c0_i32, %c0_i32_0 : i32, i32, i32
  }
  func.func @transform_2(%arg0: i32) -> (i32, i32) {
    %c0_i32 = arith.constant 0 : i32
    %c0_i32_0 = arith.constant 0 : i32
    %c0_i32_1 = arith.constant 0 : i32
    return %c0_i32, %c0_i32_0 : i32, i32
  }
  func.func @transform_3(%arg0: i32) -> (i32, i32) {
    %c0_i32 = arith.constant 0 : i32
    %c0_i32_0 = arith.constant 0 : i32
    %c0_i32_1 = arith.constant 0 : i32
    return %c0_i32, %c0_i32_0 : i32, i32
  }
  func.func @transform_4(%arg0: i32) -> (i32, i32) {
    %c0_i32 = arith.constant 0 : i32
    %c0_i32_0 = arith.constant 0 : i32
    %c0_i32_1 = arith.constant 0 : i32
    return %c0_i32, %c0_i32_0 : i32, i32
  }
  func.func @transform_5(%arg0: i32) -> (i32, i32) {
    %c0_i32 = arith.constant 0 : i32
    %c0_i32_0 = arith.constant 0 : i32
    %c0_i32_1 = arith.constant 0 : i32
    return %c0_i32, %c0_i32_0 : i32, i32
  }
  func.func @transform_6(%arg0: i32) -> (i32, i32) {
    %c0_i32 = arith.constant 0 : i32
    %c0_i32_0 = arith.constant 0 : i32
    %c0_i32_1 = arith.constant 0 : i32
    return %c0_i32, %c0_i32_0 : i32, i32
  }
  func.func @transform_7(%arg0: i32) -> (i32, i32) {
    %c0_i32 = arith.constant 0 : i32
    %c0_i32_0 = arith.constant 0 : i32
    %c0_i32_1 = arith.constant 0 : i32
    return %c0_i32, %c0_i32_0 : i32, i32
  }
  func.func @transform_8(%arg0: i32) -> (i32, i32) {
    %c0_i32 = arith.constant 0 : i32
    %c0_i32_0 = arith.constant 0 : i32
    %c0_i32_1 = arith.constant 0 : i32
    return %c0_i32, %c0_i32_0 : i32, i32
  }
  func.func @transform_9(%arg0: i32) -> (i32, i32) {
    %c0_i32 = arith.constant 0 : i32
    %c0_i32_0 = arith.constant 0 : i32
    %c0_i32_1 = arith.constant 0 : i32
    return %c0_i32, %c0_i32_0 : i32, i32
  }
  func.func @transform_10(%arg0: i32) -> (i32, i32) {
    %c0_i32 = arith.constant 0 : i32
    %c0_i32_0 = arith.constant 0 : i32
    %c0_i32_1 = arith.constant 0 : i32
    return %c0_i32, %c0_i32_0 : i32, i32
  }
  func.func @transform_11(%arg0: i32) -> (i32, i32) {
    %c0_i32 = arith.constant 0 : i32
    %c0_i32_0 = arith.constant 0 : i32
    %c0_i32_1 = arith.constant 0 : i32
    return %c0_i32, %c0_i32_0 : i32, i32
  }
  func.func @transform_12(%arg0: i32) -> (i32, i32) {
    %c0_i32 = arith.constant 0 : i32
    %c0_i32_0 = arith.constant 0 : i32
    %c0_i32_1 = arith.constant 0 : i32
    return %c0_i32, %c0_i32_0 : i32, i32
  }
  func.func @transform_13(%arg0: i32) -> (i32, i32) {
    %c0_i32 = arith.constant 0 : i32
    %c0_i32_0 = arith.constant 0 : i32
    %c0_i32_1 = arith.constant 0 : i32
    return %c0_i32, %c0_i32_0 : i32, i32
  }
}

</mosaic_0001>

<llo_original>
// kernel: sentence_classifier_forward.1
$region0: #{sentence_classifier_forward.1}
  #allocation0 [shape = 'u32[]', space=smem, size = 0x4, offset = 0x4, fixed_abs, tag = 'smem constant byte address 0x4 - core index']
  #allocation1 [shape = 'u32[72,128]{1,0:T(1,128)}', space=vmem, size = 0x9000, scoped, tag = 'internal scratch']
  #allocation2 [shape = 'f32[4,16,512]{2,1,0:T(8,128)}', space=vmem, size = 0x20000, scoped, tag = 'scratch operand']
  #allocation3 [shape = 'f32[4,16,512]{2,1,0:T(8,128)}', space=vmem, size = 0x20000, scoped, tag = 'scratch operand']
  #allocation4 [shape = 'f32[16,256]{1,0:T(8,128)}', space=vmem, size = 0x4000, scoped, tag = 'scratch operand']
  #allocation5 [shape = 'f32[16,256]{1,0:T(8,128)}', space=vmem, size = 0x4000, scoped, tag = 'scratch operand']
  #allocation6 [shape = 'f32[16,256]{1,0:T(8,128)}', space=vmem, size = 0x4000, scoped, tag = 'scratch operand']
  %s0 = inlined_call_operand.vmem [shape: bf16[8,16,128], index: 0, kind: input, shape index: {}, may-alias: {0,1}]
  %s1 = inlined_call_operand.vmem [shape: bf16[8,16,128], index: 1, kind: input, shape index: {}, may-alias: {0,1}]
  %s2 = inlined_call_operand.vmem [shape: bf16[128,512], index: 2, kind: input, shape index: {}]
  %s3 = inlined_call_operand.vmem [shape: bf16[128,512], index: 3, kind: input, shape index: {}]
  %s4 = inlined_call_operand.vmem [shape: f32[1,512], index: 4, kind: input, shape index: {}]
  %s5 = inlined_call_operand.vmem [shape: f32[1,512], index: 5, kind: input, shape index: {}]
  %s6 = inlined_call_operand.vmem [shape: bf16[256,1024], index: 6, kind: input, shape index: {}]
  %s7 = inlined_call_operand.vmem [shape: bf16[1024,128], index: 7, kind: input, shape index: {}]
  %s8 = inlined_call_operand.vmem [shape: f32[1,128], index: 8, kind: input, shape index: {}]
  %s9 = inlined_call_operand.vmem [shape: bf16[128,128], index: 9, kind: input, shape index: {}]
  %s10 = inlined_call_operand.vmem [shape: f32[1,128], index: 10, kind: input, shape index: {}]
  %s11 = inlined_call_operand.vmem [shape: bf16[128,128], index: 11, kind: input, shape index: {}]
  %s12 = inlined_call_operand.vmem [shape: f32[1,128], index: 12, kind: input, shape index: {}]
  %s13 = inlined_call_operand.vmem [shape: f32[8,128], index: 13, kind: output, shape index: {}]
  %s14 = sld [smem:[#allocation0]]
  $region93: #{sentence_classifier_forward.1} parent=0
    _
  %s16 = ssub.s32 1, %s14
  %s17 = scalar_select 0, %s16, %s14
  loop: start=0, step=1, limit=4
  $region2: #{sentence_classifier_forward.1} parent=0 // loop_pre_header
    _
  $region3: #{sentence_classifier_forward.1} parent=0 // loop_header
    %s19 = sphi 0, %s23
    %p20 = scmp.ge.s32.totalorder %s19, 4
    %s29 = sphi 0, %s31
    %s32 = sphi 0, %s29
    %s33 = sphi 0, %s32
    %s49 = sphi 0, %s33
    %s57 = sphi 0, %s59
    %s60 = sphi 0, %s57
    %s61 = sphi 0, %s60
    %s77 = sphi 0, %s61
    %s81 = sphi 0, %s81
    %s83 = sphi 0, %s81
    %s84 = sphi 0, %s83
    %s98 = sphi 0, %s84
    %s102 = sphi 0, %s102
    %s104 = sphi 0, %s102
    %s105 = sphi 0, %s104
    %s119 = sphi 0, %s105
    %s123 = sphi 0, %s123
    %s125 = sphi 0, %s123
    %s126 = sphi 0, %s125
    %s140 = sphi 0, %s126
    %s144 = sphi 0, %s144
    %s146 = sphi 0, %s144
    %s147 = sphi 0, %s146
    %s161 = sphi 0, %s147
    %s165 = sphi 0, %s165
    %s167 = sphi 0, %s165
    %s168 = sphi 0, %s167
    %s182 = sphi 0, %s168
    %s186 = sphi 0, %s186
    %s188 = sphi 0, %s186
    %s189 = sphi 0, %s188
    %s203 = sphi 0, %s189
    %s207 = sphi 0, %s207
    %s209 = sphi 0, %s207
    %s210 = sphi 0, %s209
    %s224 = sphi 0, %s210
    %s228 = sphi 0, %s228
    %s230 = sphi 0, %s228
    %s231 = sphi 0, %s230
    %s245 = sphi 0, %s231
    %s249 = sphi 0, %s249
    %s251 = sphi 0, %s249
    %s252 = sphi 0, %s251
    %s266 = sphi 0, %s252
    %s270 = sphi 0, %s270
    %s272 = sphi 0, %s270
    %s273 = sphi 0, %s272
    %s287 = sphi 0, %s273
    %s291 = sphi 0, %s291
    %s293 = sphi 0, %s291
    %s294 = sphi 0, %s293
    %s308 = sphi 0, %s294
    %s312 = sphi 0, %s312
    %s314 = sphi 0, %s312
    %s315 = sphi 0, %s314
    %s329 = sphi 0, %s315
  $region4: #{sentence_classifier_forward.1} parent=0 // loop_header_branch
    %22 = sbr.rel (%p20) target = $region8
  $region5: #{sentence_classifier_forward.1} parent=0 // loop_body
    %s24 = ssub.s32 %s19, 1
    %s25 = ssub.s32 %s19, 2
    %s26 = sadd.s32 %s19, 1
    %s27 = ssub.s32 %s19, %s26
    %p28 = scmp.eq.s32.totalorder %s27, 0
    %s30 = sadd.s32 %s29, 1
    %s31 = scalar_select %p28, %s29, %s30
    %p34 = pneg %p28
    %p35 = scmp.eq.s32.totalorder %s19, 1
    %p36 = por %p34, %p35
    %p37 = scmp.ne.s32.totalorder %s29, %s32
    %p38 = scmp.eq.s32.totalorder %s19, 0
    %p39 = por %p37, %p38
    %p40 = scmp.ne.s32.totalorder %s29, %s32
    %p41 = scmp.eq.s32.totalorder %s24, 1
    %p42 = por %p40, %p41
    %p43 = scmp.ne.s32.totalorder %s32, %s33
    %p44 = scmp.eq.s32.totalorder %s24, 0
    %p45 = por %p43, %p44
    %p46 = scmp.ne.s32.totalorder %s32, %s33
    %p47 = scmp.eq.s32.totalorder %s25, 1
    %p48 = por %p46, %p47
    %p50 = scmp.ne.s32.totalorder %s33, %s49
    %p51 = scmp.eq.s32.totalorder %s25, 0
    %p52 = por %p50, %p51
    %s53 = ssub.s32 1, %s19
    %s54 = ssub.s32 1, %s26
    %s55 = ssub.s32 %s53, %s54
    %p56 = scmp.eq.s32.totalorder %s55, 0
    %s58 = sadd.s32 %s57, 1
    %s59 = scalar_select %p56, %s57, %s58
    %p62 = pneg %p56
    %p63 = scmp.eq.s32.totalorder %s19, 1
    %p64 = por %p62, %p63
    %p65 = scmp.ne.s32.totalorder %s57, %s60
    %p66 = scmp.eq.s32.totalorder %s19, 0
    %p67 = por %p65, %p66
    %p68 = scmp.ne.s32.totalorder %s57, %s60
    %p69 = scmp.eq.s32.totalorder %s24, 1
    %p70 = por %p68, %p69
    %p71 = scmp.ne.s32.totalorder %s60, %s61
    %p72 = scmp.eq.s32.totalorder %s24, 0
    %p73 = por %p71, %p72
    %p74 = scmp.ne.s32.totalorder %s60, %s61
    %p75 = scmp.eq.s32.totalorder %s25, 1
    %p76 = por %p74, %p75
    %p78 = scmp.ne.s32.totalorder %s61, %s77
    %p79 = scmp.eq.s32.totalorder %s25, 0
    %p80 = por %p78, %p79
    %s82 = sadd.s32 %s81, 1
    %p85 = scmp.eq.s32.totalorder %s19, 1
    %p86 = scmp.ne.s32.totalorder %s81, %s83
    %p87 = scmp.eq.s32.totalorder %s19, 0
    %p88 = por %p86, %p87
    %p89 = scmp.ne.s32.totalorder %s81, %s83
    %p90 = scmp.eq.s32.totalorder %s24, 1
    %p91 = por %p89, %p90
    %p92 = scmp.ne.s32.totalorder %s83, %s84
    %p93 = scmp.eq.s32.totalorder %s24, 0
    %p94 = por %p92, %p93
    %p95 = scmp.ne.s32.totalorder %s83, %s84
    %p96 = scmp.eq.s32.totalorder %s25, 1
    %p97 = por %p95, %p96
    %p99 = scmp.ne.s32.totalorder %s84, %s98
    %p100 = scmp.eq.s32.totalorder %s25, 0
    %p101 = por %p99, %p100
    %s103 = sadd.s32 %s102, 1
    %p106 = scmp.eq.s32.totalorder %s19, 1
    %p107 = scmp.ne.s32.totalorder %s102, %s104
    %p108 = scmp.eq.s32.totalorder %s19, 0
    %p109 = por %p107, %p108
    %p110 = scmp.ne.s32.totalorder %s102, %s104
    %p111 = scmp.eq.s32.totalorder %s24, 1
    %p112 = por %p110, %p111
    %p113 = scmp.ne.s32.totalorder %s104, %s105
    %p114 = scmp.eq.s32.totalorder %s24, 0
    %p115 = por %p113, %p114
    %p116 = scmp.ne.s32.totalorder %s104, %s105
    %p117 = scmp.eq.s32.totalorder %s25, 1
    %p118 = por %p116, %p117
    %p120 = scmp.ne.s32.totalorder %s105, %s119
    %p121 = scmp.eq.s32.totalorder %s25, 0
    %p122 = por %p120, %p121
    %s124 = sadd.s32 %s123, 1
    %p127 = scmp.eq.s32.totalorder %s19, 1
    %p128 = scmp.ne.s32.totalorder %s123, %s125
    %p129 = scmp.eq.s32.totalorder %s19, 0
    %p130 = por %p128, %p129
    %p131 = scmp.ne.s32.totalorder %s123, %s125
    %p132 = scmp.eq.s32.totalorder %s24, 1
    %p133 = por %p131, %p132
    %p134 = scmp.ne.s32.totalorder %s125, %s126
    %p135 = scmp.eq.s32.totalorder %s24, 0
    %p136 = por %p134, %p135
    %p137 = scmp.ne.s32.totalorder %s125, %s126
    %p138 = scmp.eq.s32.totalorder %s25, 1
    %p139 = por %p137, %p138
    %p141 = scmp.ne.s32.totalorder %s126, %s140
    %p142 = scmp.eq.s32.totalorder %s25, 0
    %p143 = por %p141, %p142
    %s145 = sadd.s32 %s144, 1
    %p148 = scmp.eq.s32.totalorder %s19, 1
    %p149 = scmp.ne.s32.totalorder %s144, %s146
    %p150 = scmp.eq.s32.totalorder %s19, 0
    %p151 = por %p149, %p150
    %p152 = scmp.ne.s32.totalorder %s144, %s146
    %p153 = scmp.eq.s32.totalorder %s24, 1
    %p154 = por %p152, %p153
    %p155 = scmp.ne.s32.totalorder %s146, %s147
    %p156 = scmp.eq.s32.totalorder %s24, 0
    %p157 = por %p155, %p156
    %p158 = scmp.ne.s32.totalorder %s146, %s147
    %p159 = scmp.eq.s32.totalorder %s25, 1
    %p160 = por %p158, %p159
    %p162 = scmp.ne.s32.totalorder %s147, %s161
    %p163 = scmp.eq.s32.totalorder %s25, 0
    %p164 = por %p162, %p163
    %s166 = sadd.s32 %s165, 1
    %p169 = scmp.eq.s32.totalorder %s19, 1
    %p170 = scmp.ne.s32.totalorder %s165, %s167
    %p171 = scmp.eq.s32.totalorder %s19, 0
    %p172 = por %p170, %p171
    %p173 = scmp.ne.s32.totalorder %s165, %s167
    %p174 = scmp.eq.s32.totalorder %s24, 1
    %p175 = por %p173, %p174
    %p176 = scmp.ne.s32.totalorder %s167, %s168
    %p177 = scmp.eq.s32.totalorder %s24, 0
    %p178 = por %p176, %p177
    %p179 = scmp.ne.s32.totalorder %s167, %s168
    %p180 = scmp.eq.s32.totalorder %s25, 1
    %p181 = por %p179, %p180
    %p183 = scmp.ne.s32.totalorder %s168, %s182
    %p184 = scmp.eq.s32.totalorder %s25, 0
    %p185 = por %p183, %p184
    %s187 = sadd.s32 %s186, 1
    %p190 = scmp.eq.s32.totalorder %s19, 1
    %p191 = scmp.ne.s32.totalorder %s186, %s188
    %p192 = scmp.eq.s32.totalorder %s19, 0
    %p193 = por %p191, %p192
    %p194 = scmp.ne.s32.totalorder %s186, %s188
    %p195 = scmp.eq.s32.totalorder %s24, 1
    %p196 = por %p194, %p195
    %p197 = scmp.ne.s32.totalorder %s188, %s189
    %p198 = scmp.eq.s32.totalorder %s24, 0
    %p199 = por %p197, %p198
    %p200 = scmp.ne.s32.totalorder %s188, %s189
    %p201 = scmp.eq.s32.totalorder %s25, 1
    %p202 = por %p200, %p201
    %p204 = scmp.ne.s32.totalorder %s189, %s203
    %p205 = scmp.eq.s32.totalorder %s25, 0
    %p206 = por %p204, %p205
    %s208 = sadd.s32 %s207, 1
    %p211 = scmp.eq.s32.totalorder %s19, 1
    %p212 = scmp.ne.s32.totalorder %s207, %s209
    %p213 = scmp.eq.s32.totalorder %s19, 0
    %p214 = por %p212, %p213
    %p215 = scmp.ne.s32.totalorder %s207, %s209
    %p216 = scmp.eq.s32.totalorder %s24, 1
    %p217 = por %p215, %p216
    %p218 = scmp.ne.s32.totalorder %s209, %s210
    %p219 = scmp.eq.s32.totalorder %s24, 0
    %p220 = por %p218, %p219
    %p221 = scmp.ne.s32.totalorder %s209, %s210
    %p222 = scmp.eq.s32.totalorder %s25, 1
    %p223 = por %p221, %p222
    %p225 = scmp.ne.s32.totalorder %s210, %s224
    %p226 = scmp.eq.s32.totalorder %s25, 0
    %p227 = por %p225, %p226
    %s229 = sadd.s32 %s228, 1
    %p232 = scmp.eq.s32.totalorder %s19, 1
    %p233 = scmp.ne.s32.totalorder %s228, %s230
    %p234 = scmp.eq.s32.totalorder %s19, 0
    %p235 = por %p233, %p234
    %p236 = scmp.ne.s32.totalorder %s228, %s230
    %p237 = scmp.eq.s32.totalorder %s24, 1
    %p238 = por %p236, %p237
    %p239 = scmp.ne.s32.totalorder %s230, %s231
    %p240 = scmp.eq.s32.totalorder %s24, 0
    %p241 = por %p239, %p240
    %p242 = scmp.ne.s32.totalorder %s230, %s231
    %p243 = scmp.eq.s32.totalorder %s25, 1
    %p244 = por %p242, %p243
    %p246 = scmp.ne.s32.totalorder %s231, %s245
    %p247 = scmp.eq.s32.totalorder %s25, 0
    %p248 = por %p246, %p247
    %s250 = sadd.s32 %s249, 1
    %p253 = scmp.eq.s32.totalorder %s19, 1
    %p254 = scmp.ne.s32.totalorder %s249, %s251
    %p255 = scmp.eq.s32.totalorder %s19, 0
    %p256 = por %p254, %p255
    %p257 = scmp.ne.s32.totalorder %s249, %s251
    %p258 = scmp.eq.s32.totalorder %s24, 1
    %p259 = por %p257, %p258
    %p260 = scmp.ne.s32.totalorder %s251, %s252
    %p261 = scmp.eq.s32.totalorder %s24, 0
    %p262 = por %p260, %p261
    %p263 = scmp.ne.s32.totalorder %s251, %s252
    %p264 = scmp.eq.s32.totalorder %s25, 1
    %p265 = por %p263, %p264
    %p267 = scmp.ne.s32.totalorder %s252, %s266
    %p268 = scmp.eq.s32.totalorder %s25, 0
    %p269 = por %p267, %p268
    %s271 = sadd.s32 %s270, 1
    %p274 = scmp.eq.s32.totalorder %s19, 1
    %p275 = scmp.ne.s32.totalorder %s270, %s272
    %p276 = scmp.eq.s32.totalorder %s19, 0
    %p277 = por %p275, %p276
    %p278 = scmp.ne.s32.totalorder %s270, %s272
    %p279 = scmp.eq.s32.totalorder %s24, 1
    %p280 = por %p278, %p279
    %p281 = scmp.ne.s32.totalorder %s272, %s273
    %p282 = scmp.eq.s32.totalorder %s24, 0
    %p283 = por %p281, %p282
    %p284 = scmp.ne.s32.totalorder %s272, %s273
    %p285 = scmp.eq.s32.totalorder %s25, 1
    %p286 = por %p284, %p285
    %p288 = scmp.ne.s32.totalorder %s273, %s287
    %p289 = scmp.eq.s32.totalorder %s25, 0
    %p290 = por %p288, %p289
    %s292 = sadd.s32 %s291, 1
    %p295 = scmp.eq.s32.totalorder %s19, 1
    %p296 = scmp.ne.s32.totalorder %s291, %s293
    %p297 = scmp.eq.s32.totalorder %s19, 0
    %p298 = por %p296, %p297
    %p299 = scmp.ne.s32.totalorder %s291, %s293
    %p300 = scmp.eq.s32.totalorder %s24, 1
    %p301 = por %p299, %p300
    %p302 = scmp.ne.s32.totalorder %s293, %s294
    %p303 = scmp.eq.s32.totalorder %s24, 0
    %p304 = por %p302, %p303
    %p305 = scmp.ne.s32.totalorder %s293, %s294
    %p306 = scmp.eq.s32.totalorder %s25, 1
    %p307 = por %p305, %p306
    %p309 = scmp.ne.s32.totalorder %s294, %s308
    %p310 = scmp.eq.s32.totalorder %s25, 0
    %p311 = por %p309, %p310
    %s313 = sadd.s32 %s312, 1
    %p316 = scmp.eq.s32.totalorder %s19, 1
    %p317 = scmp.ne.s32.totalorder %s312, %s314
    %p318 = scmp.eq.s32.totalorder %s19, 0
    %p319 = por %p317, %p318
    %p320 = scmp.ne.s32.totalorder %s312, %s314
    %p321 = scmp.eq.s32.totalorder %s24, 1
    %p322 = por %p320, %p321
    %p323 = scmp.ne.s32.totalorder %s314, %s315
    %p324 = scmp.eq.s32.totalorder %s24, 0
    %p325 = por %p323, %p324
    %p326 = scmp.ne.s32.totalorder %s314, %s315
    %p327 = scmp.eq.s32.totalorder %s25, 1
    %p328 = por %p326, %p327
    %p330 = scmp.ne.s32.totalorder %s315, %s329
    %p331 = scmp.eq.s32.totalorder %s25, 0
    %p332 = por %p330, %p331
    %p333 = scmp.le.s32.totalorder 1, %s19
    %p334 = scmp.lt.s32.totalorder %s19, 3
    %p335 = pnand %p333, %p334
    %p336 = pneg %p335
    // Predicated region
    $region9: #{sentence_classifier_forward.1} parent=5 // pred_check
      _
    $region10: #{sentence_classifier_forward.1} parent=5 // pred_check_branch
      %338 = sbr.rel (%p335) target = $region12
    $region11: #{sentence_classifier_forward.1} parent=5 // pred_region
      %s339 = ssub.s32 %s19, 1
      // Predicated region
      $region13: #{sentence_classifier_forward.1} parent=11 // pred_check
        %p340 = pneg %p94
      $region14: #{sentence_classifier_forward.1} parent=11 // pred_check_branch
        %342 = sbr.rel (%p340) target = $region16
      $region15: #{sentence_classifier_forward.1} parent=11 // pred_region
        _
      $region16: #{sentence_classifier_forward.1} parent=11 // pred_fallthru
        _
      // Predicated region
      $region17: #{sentence_classifier_forward.1} parent=11 // pred_check
        %p343 = pneg %p115
      $region18: #{sentence_classifier_forward.1} parent=11 // pred_check_branch
        %345 = sbr.rel (%p343) target = $region20
      $region19: #{sentence_classifier_forward.1} parent=11 // pred_region
        _
      $region20: #{sentence_classifier_forward.1} parent=11 // pred_fallthru
        _
      // Predicated region
      $region21: #{sentence_classifier_forward.1} parent=11 // pred_check
        %p346 = pneg %p136
      $region22: #{sentence_classifier_forward.1} parent=11 // pred_check_branch
        %348 = sbr.rel (%p346) target = $region24
      $region23: #{sentence_classifier_forward.1} parent=11 // pred_region
        _
      $region24: #{sentence_classifier_forward.1} parent=11 // pred_fallthru
        _
      // Predicated region
      $region25: #{sentence_classifier_forward.1} parent=11 // pred_check
        %p349 = pneg %p157
      $region26: #{sentence_classifier_forward.1} parent=11 // pred_check_branch
        %351 = sbr.rel (%p349) target = $region28
      $region27: #{sentence_classifier_forward.1} parent=11 // pred_region
        _
      $region28: #{sentence_classifier_forward.1} parent=11 // pred_fallthru
        _
      // Predicated region
      $region29: #{sentence_classifier_forward.1} parent=11 // pred_check
        %p352 = pneg %p178
      $region30: #{sentence_classifier_forward.1} parent=11 // pred_check_branch
        %354 = sbr.rel (%p352) target = $region32
      $region31: #{sentence_classifier_forward.1} parent=11 // pred_region
        _
      $region32: #{sentence_classifier_forward.1} parent=11 // pred_fallthru
        _
      // Predicated region
      $region33: #{sentence_classifier_forward.1} parent=11 // pred_check
        %p355 = pneg %p199
      $region34: #{sentence_classifier_forward.1} parent=11 // pred_check_branch
        %357 = sbr.rel (%p355) target = $region36
      $region35: #{sentence_classifier_forward.1} parent=11 // pred_region
        _
      $region36: #{sentence_classifier_forward.1} parent=11 // pred_fallthru
        _
      // Predicated region
      $region37: #{sentence_classifier_forward.1} parent=11 // pred_check
        %p358 = pneg %p220
      $region38: #{sentence_classifier_forward.1} parent=11 // pred_check_branch
        %360 = sbr.rel (%p358) target = $region40
      $region39: #{sentence_classifier_forward.1} parent=11 // pred_region
        _
      $region40: #{sentence_classifier_forward.1} parent=11 // pred_fallthru
        _
      // Predicated region
      $region41: #{sentence_classifier_forward.1} parent=11 // pred_check
        %p361 = pneg %p241
      $region42: #{sentence_classifier_forward.1} parent=11 // pred_check_branch
        %363 = sbr.rel (%p361) target = $region44
      $region43: #{sentence_classifier_forward.1} parent=11 // pred_region
        _
      $region44: #{sentence_classifier_forward.1} parent=11 // pred_fallthru
        _
      // Predicated region
      $region45: #{sentence_classifier_forward.1} parent=11 // pred_check
        %p364 = pneg %p262
      $region46: #{sentence_classifier_forward.1} parent=11 // pred_check_branch
        %366 = sbr.rel (%p364) target = $region48
      $region47: #{sentence_classifier_forward.1} parent=11 // pred_region
        _
      $region48: #{sentence_classifier_forward.1} parent=11 // pred_fallthru
        _
      // Predicated region
      $region49: #{sentence_classifier_forward.1} parent=11 // pred_check
        %p367 = pneg %p283
      $region50: #{sentence_classifier_forward.1} parent=11 // pred_check_branch
        %369 = sbr.rel (%p367) target = $region52
      $region51: #{sentence_classifier_forward.1} parent=11 // pred_region
        _
      $region52: #{sentence_classifier_forward.1} parent=11 // pred_fallthru
        _
      // Predicated region
      $region53: #{sentence_classifier_forward.1} parent=11 // pred_check
        %p370 = pneg %p304
      $region54: #{sentence_classifier_forward.1} parent=11 // pred_check_branch
        %372 = sbr.rel (%p370) target = $region56
      $region55: #{sentence_classifier_forward.1} parent=11 // pred_region
        _
      $region56: #{sentence_classifier_forward.1} parent=11 // pred_fallthru
        _
    $region12: #{sentence_classifier_forward.1} parent=5 // pred_fallthru
      _
    %p373 = scmp.lt.s32.totalorder %s19, 2
    // Predicated region
    $region57: #{sentence_classifier_forward.1} parent=5 // pred_check
      %p374 = pneg %p373
    $region58: #{sentence_classifier_forward.1} parent=5 // pred_check_branch
      %376 = sbr.rel (%p374) target = $region60
    $region59: #{sentence_classifier_forward.1} parent=5 // pred_region
      // Predicated region
      $region61: #{sentence_classifier_forward.1} parent=59 // pred_check
        %p377 = pneg %p39
      $region62: #{sentence_classifier_forward.1} parent=59 // pred_check_branch
        %379 = sbr.rel (%p377) target = $region64
      $region63: #{sentence_classifier_forward.1} parent=59 // pred_region
        %s380 = smul.u32 4, %s19
        %p381 = scmp.lt.s32.totalorder %s380, 7
        %s382 = scalar_select %p381, %s380, 7
        %s383 = smul.addr %s382, 2
        %s384 = smul.addr %s383, 4
        %s385 = scalar_lea.vmem %s0, %s384
        %s386 = smul.u32 4, %s19
      $region64: #{sentence_classifier_forward.1} parent=59 // pred_fallthru
        _
      // Predicated region
      $region65: #{sentence_classifier_forward.1} parent=59 // pred_check
        %p387 = pneg %p67
      $region66: #{sentence_classifier_forward.1} parent=59 // pred_check_branch
        %389 = sbr.rel (%p387) target = $region68
      $region67: #{sentence_classifier_forward.1} parent=59 // pred_region
        %s390 = ssub.s32 1, %s19
        %s391 = smul.u32 4, %s390
        %p392 = scmp.lt.s32.totalorder %s391, 7
        %s393 = scalar_select %p392, %s391, 7
        %s394 = smul.addr %s393, 2
        %s395 = smul.addr %s394, 4
        %s396 = scalar_lea.vmem %s1, %s395
        %s397 = ssub.s32 1, %s19
        %s398 = smul.u32 4, %s397
      $region68: #{sentence_classifier_forward.1} parent=59 // pred_fallthru
        _
    $region60: #{sentence_classifier_forward.1} parent=5 // pred_fallthru
      _
    %p399 = scmp.le.s32.totalorder 1, %s19
    %p400 = scmp.lt.s32.totalorder %s19, 3
    %p401 = pnand %p399, %p400
    %p402 = pneg %p401
    // Predicated region
    $region69: #{sentence_classifier_forward.1} parent=5 // pred_check
      _
    $region70: #{sentence_classifier_forward.1} parent=5 // pred_check_branch
      %404 = sbr.rel (%p401) target = $region72
    $region71: #{sentence_classifier_forward.1} parent=5 // pred_region
      %s405 = ssub.s32 %s19, 1
      %s406 = smul.u32 4, %s24
      %p407 = scmp.lt.s32.totalorder %s406, 7
      %s408 = scalar_select %p407, %s406, 7
      %s409 = smul.addr %s408, 2
      %s410 = smul.addr %s409, 4
      %s411 = scalar_lea.vmem %s0, %s410
      %p412 = pneg %p45
      %p413 = pneg %p42
      %s414 = ssub.s32 1, %s24
      %s415 = smul.u32 4, %s414
      %p416 = scmp.lt.s32.totalorder %s415, 7
      %s417 = scalar_select %p416, %s415, 7
      %s418 = smul.addr %s417, 2
      %s419 = smul.addr %s418, 4
      %s420 = scalar_lea.vmem %s1, %s419
      %p421 = pneg %p73
      %p422 = pneg %p70
      %p423 = pneg %p94
      %p424 = pneg %p91
      %p425 = pneg %p115
      %p426 = pneg %p112
      %p427 = pneg %p136
      %p428 = pneg %p133
      %p429 = pneg %p157
      %p430 = pneg %p154
      %p431 = pneg %p178
      %p432 = pneg %p175
      %p433 = pneg %p199
      %p434 = pneg %p196
      %p435 = pneg %p220
      %p436 = pneg %p217
      %p437 = pneg %p241
      %p438 = pneg %p238
      %p439 = pneg %p262
      %p440 = pneg %p259
      %p441 = pneg %p283
      %p442 = pneg %p280
      %p443 = pneg %p304
      %p444 = pneg %p301
      %p445 = pneg %p325
      %p446 = pneg %p322
      %s447 = smul.u32 4, %s24
      %p448 = scmp.lt.s32.totalorder %s447, 7
      %s449 = scalar_select %p448, %s447, 7
      %s450 = smul.addr %s449, 2
      %s451 = smul.addr %s450, 4
      %s452 = scalar_lea.vmem %s0, %s451
      %s453 = smul.u32 4, %s24
      %s454 = ssub.s32 1, %s24
      %s455 = smul.u32 4, %s454
      %p456 = scmp.lt.s32.totalorder %s455, 7
      %s457 = scalar_select %p456, %s455, 7
      %s458 = smul.addr %s457, 2
      %s459 = smul.addr %s458, 4
      %s460 = scalar_lea.vmem %s1, %s459
      %s461 = ssub.s32 1, %s24
      %s462 = smul.u32 4, %s461
      %p463 = scmp.eq.s32.totalorder %s24, 0
      // Predicated region
      $region73: #{sentence_classifier_forward.1} parent=71 // pred_check
        %p464 = pneg %p463
      $region74: #{sentence_classifier_forward.1} parent=71 // pred_check_branch
        %466 = sbr.rel (%p464) target = $region76
      $region75: #{sentence_classifier_forward.1} parent=71 // pred_region
        %467 = vst [vmem:[#allocation4] sm:$0xff] 0.0
        %468 = vst [vmem:[#allocation4 + $0x8] sm:$0xff] 0.0
        %469 = vst [vmem:[#allocation4 + $0x10] sm:$0xff] 0.0
        %470 = vst [vmem:[#allocation4 + $0x18] sm:$0xff] 0.0
        %471 = vst [vmem:[#allocation5] sm:$0xff] 0.0
        %472 = vst [vmem:[#allocation5 + $0x8] sm:$0xff] 0.0
        %473 = vst [vmem:[#allocation5 + $0x10] sm:$0xff] 0.0
        %474 = vst [vmem:[#allocation5 + $0x18] sm:$0xff] 0.0
        %475 = vst [vmem:[#allocation6] sm:$0xff] -inf
        %476 = vst [vmem:[#allocation6 + $0x8] sm:$0xff] -inf
        %477 = vst [vmem:[#allocation6 + $0x10] sm:$0xff] -inf
        %478 = vst [vmem:[#allocation6 + $0x18] sm:$0xff] -inf
      $region76: #{sentence_classifier_forward.1} parent=71 // pred_fallthru
        _
      %v479 = vld [vmem:[%s452] sm:$0xf]
      %v480 = vld [vmem:[%s452 + $0x4] sm:$0xf]
      %v481 = vld [vmem:[%s452 + $0x8] sm:$0xf]
      %v482 = vld [vmem:[%s452 + $0xc] sm:$0xf]
      %v483 = vld [vmem:[%s452 + $0x10] sm:$0xf]
      %v484 = vld [vmem:[%s452 + $0x14] sm:$0xf]
      %v485 = vld [vmem:[%s452 + $0x18] sm:$0xf]
      %v486 = vld [vmem:[%s452 + $0x1c] sm:$0xf]
      %v487 = vld [vmem:[%s460] sm:$0xf]
      %v488 = vld [vmem:[%s460 + $0x4] sm:$0xf]
      %v489 = vld [vmem:[%s460 + $0x8] sm:$0xf]
      %v490 = vld [vmem:[%s460 + $0xc] sm:$0xf]
      %v491 = vld [vmem:[%s460 + $0x10] sm:$0xf]
      %v492 = vld [vmem:[%s460 + $0x14] sm:$0xf]
      %v493 = vld [vmem:[%s460 + $0x18] sm:$0xf]
      %v494 = vld [vmem:[%s460 + $0x1c] sm:$0xf]
      %v495 = vld [vmem:[%s2] sm:$0xff]
      %v496 = vld [vmem:[%s2 + $0x8] sm:$0xff]
      %v497 = vld [vmem:[%s2 + $0x10] sm:$0xff]
      %v498 = vld [vmem:[%s2 + $0x18] sm:$0xff]
      %v499 = vld [vmem:[%s2 + $0x20] sm:$0xff]
      %v500 = vld [vmem:[%s2 + $0x28] sm:$0xff]
      %v501 = vld [vmem:[%s2 + $0x30] sm:$0xff]
      %v502 = vld [vmem:[%s2 + $0x38] sm:$0xff]
      %v503 = vld [vmem:[%s2 + $0x40] sm:$0xff]
      %v504 = vld [vmem:[%s2 + $0x48] sm:$0xff]
      %v505 = vld [vmem:[%s2 + $0x50] sm:$0xff]
      %v506 = vld [vmem:[%s2 + $0x58] sm:$0xff]
      %v507 = vld [vmem:[%s2 + $0x60] sm:$0xff]
      %v508 = vld [vmem:[%s2 + $0x68] sm:$0xff]
      %v509 = vld [vmem:[%s2 + $0x70] sm:$0xff]
      %v510 = vld [vmem:[%s2 + $0x78] sm:$0xff]
      %v511 = vld [vmem:[%s2 + $0x80] sm:$0xff]
      %v512 = vld [vmem:[%s2 + $0x88] sm:$0xff]
      %v513 = vld [vmem:[%s2 + $0x90] sm:$0xff]
      %v514 = vld [vmem:[%s2 + $0x98] sm:$0xff]
      %v515 = vld [vmem:[%s2 + $0xa0] sm:$0xff]
      %v516 = vld [vmem:[%s2 + $0xa8] sm:$0xff]
      %v517 = vld [vmem:[%s2 + $0xb0] sm:$0xff]
      %v518 = vld [vmem:[%s2 + $0xb8] sm:$0xff]
      %v519 = vld [vmem:[%s2 + $0xc0] sm:$0xff]
      %v520 = vld [vmem:[%s2 + $0xc8] sm:$0xff]
      %v521 = vld [vmem:[%s2 + $0xd0] sm:$0xff]
      %v522 = vld [vmem:[%s2 + $0xd8] sm:$0xff]
      %v523 = vld [vmem:[%s2 + $0xe0] sm:$0xff]
      %v524 = vld [vmem:[%s2 + $0xe8] sm:$0xff]
      %v525 = vld [vmem:[%s2 + $0xf0] sm:$0xff]
      %v526 = vld [vmem:[%s2 + $0xf8] sm:$0xff]
      %v527 = vld [vmem:[%s4] sm:$0xf]
      %v529 = vperm.slane %v527, 0
      %v530 = vperm.slane %v527, 1
      %v531 = vperm.slane %v527, 2
      %v532 = vperm.slane %v527, 3
      %v545 = vunpack.c.l.b16 %v479
      %v546 = vunpack.c.l.b16 %v480
      %v547 = vunpack.c.l.b16 %v481
      %v548 = vunpack.c.l.b16 %v482
      %v549 = vunpack.c.l.b16 %v483
      %v550 = vunpack.c.l.b16 %v484
      %v551 = vunpack.c.l.b16 %v485
      %v552 = vunpack.c.l.b16 %v486
      %v553 = vpack.c.b16 %v546, %v545
      %v554 = vpack.c.b16 %v548, %v547
      %v555 = vpack.c.b16 %v550, %v549
      %v556 = vpack.c.b16 %v552, %v551
      %v593 = vunpack.c.l.b16 %v495
      %v594 = vunpack.c.h.b16 %v495
      %v595 = vunpack.c.l.b16 %v496
      %v596 = vunpack.c.h.b16 %v496
      %v597 = vunpack.c.l.b16 %v497
      %v598 = vunpack.c.h.b16 %v497
      %v599 = vunpack.c.l.b16 %v498
      %v600 = vunpack.c.h.b16 %v498
      %v601 = vunpack.c.l.b16 %v499
      %v602 = vunpack.c.h.b16 %v499
      %v603 = vunpack.c.l.b16 %v500
      %v604 = vunpack.c.h.b16 %v500
      %v605 = vunpack.c.l.b16 %v501
      %v606 = vunpack.c.h.b16 %v501
      %v607 = vunpack.c.l.b16 %v502
      %v608 = vunpack.c.h.b16 %v502
      %v609 = vunpack.c.l.b16 %v503
      %v610 = vunpack.c.h.b16 %v503
      %v611 = vunpack.c.l.b16 %v504
      %v612 = vunpack.c.h.b16 %v504
      %v613 = vunpack.c.l.b16 %v505
      %v614 = vunpack.c.h.b16 %v505
      %v615 = vunpack.c.l.b16 %v506
      %v616 = vunpack.c.h.b16 %v506
      %v617 = vunpack.c.l.b16 %v507
      %v618 = vunpack.c.h.b16 %v507
      %v619 = vunpack.c.l.b16 %v508
      %v620 = vunpack.c.h.b16 %v508
      %v621 = vunpack.c.l.b16 %v509
      %v622 = vunpack.c.h.b16 %v509
      %v623 = vunpack.c.l.b16 %v510
      %v624 = vunpack.c.h.b16 %v510
      %v625 = vunpack.c.l.b16 %v511
      %v626 = vunpack.c.h.b16 %v511
      %v627 = vunpack.c.l.b16 %v512
      %v628 = vunpack.c.h.b16 %v512
      %v629 = vunpack.c.l.b16 %v513
      %v630 = vunpack.c.h.b16 %v513
      %v631 = vunpack.c.l.b16 %v514
      %v632 = vunpack.c.h.b16 %v514
      %v633 = vunpack.c.l.b16 %v515
      %v634 = vunpack.c.h.b16 %v515
      %v635 = vunpack.c.l.b16 %v516
      %v636 = vunpack.c.h.b16 %v516
      %v637 = vunpack.c.l.b16 %v517
      %v638 = vunpack.c.h.b16 %v517
      %v639 = vunpack.c.l.b16 %v518
      %v640 = vunpack.c.h.b16 %v518
      %v641 = vunpack.c.l.b16 %v519
      %v642 = vunpack.c.h.b16 %v519
      %v643 = vunpack.c.l.b16 %v520
      %v644 = vunpack.c.h.b16 %v520
      %v645 = vunpack.c.l.b16 %v521
      %v646 = vunpack.c.h.b16 %v521
      %v647 = vunpack.c.l.b16 %v522
      %v648 = vunpack.c.h.b16 %v522
      %v649 = vunpack.c.l.b16 %v523
      %v650 = vunpack.c.h.b16 %v523
      %v651 = vunpack.c.l.b16 %v524
      %v652 = vunpack.c.h.b16 %v524
      %v653 = vunpack.c.l.b16 %v525
      %v654 = vunpack.c.h.b16 %v525
      %v655 = vunpack.c.l.b16 %v526
      %v656 = vunpack.c.h.b16 %v526
      %v657 = vpack.c.b16 %v597, %v593
      %v658 = vpack.c.b16 %v598, %v594
      %v659 = vpack.c.b16 %v599, %v595
      %v660 = vpack.c.b16 %v600, %v596
      %v661 = vpack.c.b16 %v605, %v601
      %v662 = vpack.c.b16 %v606, %v602
      %v663 = vpack.c.b16 %v607, %v603
      %v664 = vpack.c.b16 %v608, %v604
      %v665 = vpack.c.b16 %v613, %v609
      %v666 = vpack.c.b16 %v614, %v610
      %v667 = vpack.c.b16 %v615, %v611
      %v668 = vpack.c.b16 %v616, %v612
      %v669 = vpack.c.b16 %v621, %v617
      %v670 = vpack.c.b16 %v622, %v618
      %v671 = vpack.c.b16 %v623, %v619
      %v672 = vpack.c.b16 %v624, %v620
      %v673 = vpack.c.b16 %v629, %v625
      %v674 = vpack.c.b16 %v630, %v626
      %v675 = vpack.c.b16 %v631, %v627
      %v676 = vpack.c.b16 %v632, %v628
      %v677 = vpack.c.b16 %v637, %v633
      %v678 = vpack.c.b16 %v638, %v634
      %v679 = vpack.c.b16 %v639, %v635
      %v680 = vpack.c.b16 %v640, %v636
      %v681 = vpack.c.b16 %v645, %v641
      %v682 = vpack.c.b16 %v646, %v642
      %v683 = vpack.c.b16 %v647, %v643
      %v684 = vpack.c.b16 %v648, %v644
      %v685 = vpack.c.b16 %v653, %v649
      %v686 = vpack.c.b16 %v654, %v650
      %v687 = vpack.c.b16 %v655, %v651
      %v688 = vpack.c.b16 %v656, %v652
      %721 = vmatpush.bf16.msra.mxu0 %v685
      %722 = vmatpush.bf16.msra.mxu0 %v681
      %723 = vmatpush.bf16.msra.mxu0 %v677
      %724 = vmatpush.bf16.msra.mxu0 %v673
      %725 = vmatpush.bf16.msra.mxu0 %v669
      %726 = vmatpush.bf16.msra.mxu0 %v665
      %727 = vmatpush.bf16.msra.mxu0 %v661
      %728 = vmatpush.bf16.msra.mxu0 %v657
      %729 = vmatmul.bf16.gmra.mxu0 %v553
      %v730 = vpop.f32.mrf.mxu0
      %v731 = vadd.f32 %v529, %v730
      %v732 = vpop.f32.mrf.mxu0
      %v733 = vadd.f32 %v529, %v732
      %734 = vmatmul.bf16.gmra.mxu0 %v554
      %v735 = vpop.f32.mrf.mxu0
      %v736 = vadd.f32 %v529, %v735
      %v737 = vpop.f32.mrf.mxu0
      %v738 = vadd.f32 %v529, %v737
      %739 = vmatmul.bf16.gmra.mxu0 %v555
      %v740 = vpop.f32.mrf.mxu0
      %v741 = vadd.f32 %v529, %v740
      %v742 = vpop.f32.mrf.mxu0
      %v743 = vadd.f32 %v529, %v742
      %744 = vmatmul.bf16.gmra.mxu0 %v556
      %v745 = vpop.f32.mrf.mxu0
      %v746 = vadd.f32 %v529, %v745
      %v747 = vpop.f32.mrf.mxu0
      %v748 = vadd.f32 %v529, %v747
      %749 = vdwg.mxu0
      %750 = vmatpush.bf16.msra.mxu0 %v686
      %751 = vmatpush.bf16.msra.mxu0 %v682
      %752 = vmatpush.bf16.msra.mxu0 %v678
      %753 = vmatpush.bf16.msra.mxu0 %v674
      %754 = vmatpush.bf16.msra.mxu0 %v670
      %755 = vmatpush.bf16.msra.mxu0 %v666
      %756 = vmatpush.bf16.msra.mxu0 %v662
      %757 = vmatpush.bf16.msra.mxu0 %v658
      %758 = vmatmul.bf16.gmra.mxu0 %v553
      %v759 = vpop.f32.mrf.mxu0
      %v760 = vadd.f32 %v530, %v759
      %v761 = vpop.f32.mrf.mxu0
      %v762 = vadd.f32 %v530, %v761
      %763 = vmatmul.bf16.gmra.mxu0 %v554
      %v764 = vpop.f32.mrf.mxu0
      %v765 = vadd.f32 %v530, %v764
      %v766 = vpop.f32.mrf.mxu0
      %v767 = vadd.f32 %v530, %v766
      %768 = vmatmul.bf16.gmra.mxu0 %v555
      %v769 = vpop.f32.mrf.mxu0
      %v770 = vadd.f32 %v530, %v769
      %v771 = vpop.f32.mrf.mxu0
      %v772 = vadd.f32 %v530, %v771
      %773 = vmatmul.bf16.gmra.mxu0 %v556
      %v774 = vpop.f32.mrf.mxu0
      %v775 = vadd.f32 %v530, %v774
      %v776 = vpop.f32.mrf.mxu0
      %v777 = vadd.f32 %v530, %v776
      %778 = vdwg.mxu0
      %779 = vmatpush.bf16.msra.mxu0 %v687
      %780 = vmatpush.bf16.msra.mxu0 %v683
      %781 = vmatpush.bf16.msra.mxu0 %v679
      %782 = vmatpush.bf16.msra.mxu0 %v675
      %783 = vmatpush.bf16.msra.mxu0 %v671
      %784 = vmatpush.bf16.msra.mxu0 %v667
      %785 = vmatpush.bf16.msra.mxu0 %v663
      %786 = vmatpush.bf16.msra.mxu0 %v659
      %787 = vmatmul.bf16.gmra.mxu0 %v553
      %v788 = vpop.f32.mrf.mxu0
      %v789 = vadd.f32 %v531, %v788
      %v790 = vpop.f32.mrf.mxu0
      %v791 = vadd.f32 %v531, %v790
      %792 = vmatmul.bf16.gmra.mxu0 %v554
      %v793 = vpop.f32.mrf.mxu0
      %v794 = vadd.f32 %v531, %v793
      %v795 = vpop.f32.mrf.mxu0
      %v796 = vadd.f32 %v531, %v795
      %797 = vmatmul.bf16.gmra.mxu0 %v555
      %v798 = vpop.f32.mrf.mxu0
      %v799 = vadd.f32 %v531, %v798
      %v800 = vpop.f32.mrf.mxu0
      %v801 = vadd.f32 %v531, %v800
      %802 = vmatmul.bf16.gmra.mxu0 %v556
      %v803 = vpop.f32.mrf.mxu0
      %v804 = vadd.f32 %v531, %v803
      %v805 = vpop.f32.mrf.mxu0
      %v806 = vadd.f32 %v531, %v805
      %807 = vdwg.mxu0
      %808 = vmatpush.bf16.msra.mxu0 %v688
      %809 = vmatpush.bf16.msra.mxu0 %v684
      %810 = vmatpush.bf16.msra.mxu0 %v680
      %811 = vmatpush.bf16.msra.mxu0 %v676
      %812 = vmatpush.bf16.msra.mxu0 %v672
      %813 = vmatpush.bf16.msra.mxu0 %v668
      %814 = vmatpush.bf16.msra.mxu0 %v664
      %815 = vmatpush.bf16.msra.mxu0 %v660
      %816 = vmatmul.bf16.gmra.mxu0 %v553
      %v817 = vpop.f32.mrf.mxu0
      %v818 = vadd.f32 %v532, %v817
      %v819 = vpop.f32.mrf.mxu0
      %v820 = vadd.f32 %v532, %v819
      %821 = vmatmul.bf16.gmra.mxu0 %v554
      %v822 = vpop.f32.mrf.mxu0
      %v823 = vadd.f32 %v532, %v822
      %v824 = vpop.f32.mrf.mxu0
      %v825 = vadd.f32 %v532, %v824
      %826 = vmatmul.bf16.gmra.mxu0 %v555
      %v827 = vpop.f32.mrf.mxu0
      %v828 = vadd.f32 %v532, %v827
      %v829 = vpop.f32.mrf.mxu0
      %v830 = vadd.f32 %v532, %v829
      %831 = vmatmul.bf16.gmra.mxu0 %v556
      %v832 = vpop.f32.mrf.mxu0
      %v833 = vadd.f32 %v532, %v832
      %v834 = vpop.f32.mrf.mxu0
      %v835 = vadd.f32 %v532, %v834
      %836 = vdwg.mxu0
      %v837 = vld [vmem:[%s3] sm:$0xff]
      %v838 = vld [vmem:[%s3 + $0x8] sm:$0xff]
      %v839 = vld [vmem:[%s3 + $0x10] sm:$0xff]
      %v840 = vld [vmem:[%s3 + $0x18] sm:$0xff]
      %v841 = vld [vmem:[%s3 + $0x20] sm:$0xff]
      %v842 = vld [vmem:[%s3 + $0x28] sm:$0xff]
      %v843 = vld [vmem:[%s3 + $0x30] sm:$0xff]
      %v844 = vld [vmem:[%s3 + $0x38] sm:$0xff]
      %v845 = vld [vmem:[%s3 + $0x40] sm:$0xff]
      %v846 = vld [vmem:[%s3 + $0x48] sm:$0xff]
      %v847 = vld [vmem:[%s3 + $0x50] sm:$0xff]
      %v848 = vld [vmem:[%s3 + $0x58] sm:$0xff]
      %v849 = vld [vmem:[%s3 + $0x60] sm:$0xff]
      %v850 = vld [vmem:[%s3 + $0x68] sm:$0xff]
      %v851 = vld [vmem:[%s3 + $0x70] sm:$0xff]
      %v852 = vld [vmem:[%s3 + $0x78] sm:$0xff]
      %v853 = vld [vmem:[%s3 + $0x80] sm:$0xff]
      %v854 = vld [vmem:[%s3 + $0x88] sm:$0xff]
      %v855 = vld [vmem:[%s3 + $0x90] sm:$0xff]
      %v856 = vld [vmem:[%s3 + $0x98] sm:$0xff]
      %v857 = vld [vmem:[%s3 + $0xa0] sm:$0xff]
      %v858 = vld [vmem:[%s3 + $0xa8] sm:$0xff]
      %v859 = vld [vmem:[%s3 + $0xb0] sm:$0xff]
      %v860 = vld [vmem:[%s3 + $0xb8] sm:$0xff]
      %v861 = vld [vmem:[%s3 + $0xc0] sm:$0xff]
      %v862 = vld [vmem:[%s3 + $0xc8] sm:$0xff]
      %v863 = vld [vmem:[%s3 + $0xd0] sm:$0xff]
      %v864 = vld [vmem:[%s3 + $0xd8] sm:$0xff]
      %v865 = vld [vmem:[%s3 + $0xe0] sm:$0xff]
      %v866 = vld [vmem:[%s3 + $0xe8] sm:$0xff]
      %v867 = vld [vmem:[%s3 + $0xf0] sm:$0xff]
      %v868 = vld [vmem:[%s3 + $0xf8] sm:$0xff]
      %v869 = vld [vmem:[%s5] sm:$0xf]
      %v871 = vperm.slane %v869, 0
      %v872 = vperm.slane %v869, 1
      %v873 = vperm.slane %v869, 2
      %v874 = vperm.slane %v869, 3
      %v887 = vunpack.c.l.b16 %v487
      %v888 = vunpack.c.l.b16 %v488
      %v889 = vunpack.c.l.b16 %v489
      %v890 = vunpack.c.l.b16 %v490
      %v891 = vunpack.c.l.b16 %v491
      %v892 = vunpack.c.l.b16 %v492
      %v893 = vunpack.c.l.b16 %v493
      %v894 = vunpack.c.l.b16 %v494
      %v895 = vpack.c.b16 %v888, %v887
      %v896 = vpack.c.b16 %v890, %v889
      %v897 = vpack.c.b16 %v892, %v891
      %v898 = vpack.c.b16 %v894, %v893
      %v935 = vunpack.c.l.b16 %v837
      %v936 = vunpack.c.h.b16 %v837
      %v937 = vunpack.c.l.b16 %v838
      %v938 = vunpack.c.h.b16 %v838
      %v939 = vunpack.c.l.b16 %v839
      %v940 = vunpack.c.h.b16 %v839
      %v941 = vunpack.c.l.b16 %v840
      %v942 = vunpack.c.h.b16 %v840
      %v943 = vunpack.c.l.b16 %v841
      %v944 = vunpack.c.h.b16 %v841
      %v945 = vunpack.c.l.b16 %v842
      %v946 = vunpack.c.h.b16 %v842
      %v947 = vunpack.c.l.b16 %v843
      %v948 = vunpack.c.h.b16 %v843
      %v949 = vunpack.c.l.b16 %v844
      %v950 = vunpack.c.h.b16 %v844
      %v951 = vunpack.c.l.b16 %v845
      %v952 = vunpack.c.h.b16 %v845
      %v953 = vunpack.c.l.b16 %v846
      %v954 = vunpack.c.h.b16 %v846
      %v955 = vunpack.c.l.b16 %v847
      %v956 = vunpack.c.h.b16 %v847
      %v957 = vunpack.c.l.b16 %v848
      %v958 = vunpack.c.h.b16 %v848
      %v959 = vunpack.c.l.b16 %v849
      %v960 = vunpack.c.h.b16 %v849
      %v961 = vunpack.c.l.b16 %v850
      %v962 = vunpack.c.h.b16 %v850
      %v963 = vunpack.c.l.b16 %v851
      %v964 = vunpack.c.h.b16 %v851
      %v965 = vunpack.c.l.b16 %v852
      %v966 = vunpack.c.h.b16 %v852
      %v967 = vunpack.c.l.b16 %v853
      %v968 = vunpack.c.h.b16 %v853
      %v969 = vunpack.c.l.b16 %v854
      %v970 = vunpack.c.h.b16 %v854
      %v971 = vunpack.c.l.b16 %v855
      %v972 = vunpack.c.h.b16 %v855
      %v973 = vunpack.c.l.b16 %v856
      %v974 = vunpack.c.h.b16 %v856
      %v975 = vunpack.c.l.b16 %v857
      %v976 = vunpack.c.h.b16 %v857
      %v977 = vunpack.c.l.b16 %v858
      %v978 = vunpack.c.h.b16 %v858
      %v979 = vunpack.c.l.b16 %v859
      %v980 = vunpack.c.h.b16 %v859
      %v981 = vunpack.c.l.b16 %v860
      %v982 = vunpack.c.h.b16 %v860
      %v983 = vunpack.c.l.b16 %v861
      %v984 = vunpack.c.h.b16 %v861
      %v985 = vunpack.c.l.b16 %v862
      %v986 = vunpack.c.h.b16 %v862
      %v987 = vunpack.c.l.b16 %v863
      %v988 = vunpack.c.h.b16 %v863
      %v989 = vunpack.c.l.b16 %v864
      %v990 = vunpack.c.h.b16 %v864
      %v991 = vunpack.c.l.b16 %v865
      %v992 = vunpack.c.h.b16 %v865
      %v993 = vunpack.c.l.b16 %v866
      %v994 = vunpack.c.h.b16 %v866
      %v995 = vunpack.c.l.b16 %v867
      %v996 = vunpack.c.h.b16 %v867
      %v997 = vunpack.c.l.b16 %v868
      %v998 = vunpack.c.h.b16 %v868
      %v999 = vpack.c.b16 %v939, %v935
      %v1000 = vpack.c.b16 %v940, %v936
      %v1001 = vpack.c.b16 %v941, %v937
      %v1002 = vpack.c.b16 %v942, %v938
      %v1003 = vpack.c.b16 %v947, %v943
      %v1004 = vpack.c.b16 %v948, %v944
      %v1005 = vpack.c.b16 %v949, %v945
      %v1006 = vpack.c.b16 %v950, %v946
      %v1007 = vpack.c.b16 %v955, %v951
      %v1008 = vpack.c.b16 %v956, %v952
      %v1009 = vpack.c.b16 %v957, %v953
      %v1010 = vpack.c.b16 %v958, %v954
      %v1011 = vpack.c.b16 %v963, %v959
      %v1012 = vpack.c.b16 %v964, %v960
      %v1013 = vpack.c.b16 %v965, %v961
      %v1014 = vpack.c.b16 %v966, %v962
      %v1015 = vpack.c.b16 %v971, %v967
      %v1016 = vpack.c.b16 %v972, %v968
      %v1017 = vpack.c.b16 %v973, %v969
      %v1018 = vpack.c.b16 %v974, %v970
      %v1019 = vpack.c.b16 %v979, %v975
      %v1020 = vpack.c.b16 %v980, %v976
      %v1021 = vpack.c.b16 %v981, %v977
      %v1022 = vpack.c.b16 %v982, %v978
      %v1023 = vpack.c.b16 %v987, %v983
      %v1024 = vpack.c.b16 %v988, %v984
      %v1025 = vpack.c.b16 %v989, %v985
      %v1026 = vpack.c.b16 %v990, %v986
      %v1027 = vpack.c.b16 %v995, %v991
      %v1028 = vpack.c.b16 %v996, %v992
      %v1029 = vpack.c.b16 %v997, %v993
      %v1030 = vpack.c.b16 %v998, %v994
      %1063 = vmatpush.bf16.msra.mxu0 %v1027
      %1064 = vmatpush.bf16.msra.mxu0 %v1023
      %1065 = vmatpush.bf16.msra.mxu0 %v1019
      %1066 = vmatpush.bf16.msra.mxu0 %v1015
      %1067 = vmatpush.bf16.msra.mxu0 %v1011
      %1068 = vmatpush.bf16.msra.mxu0 %v1007
      %1069 = vmatpush.bf16.msra.mxu0 %v1003
      %1070 = vmatpush.bf16.msra.mxu0 %v999
      %1071 = vmatmul.bf16.gmra.mxu0 %v895
      %v1072 = vpop.f32.mrf.mxu0
      %v1073 = vadd.f32 %v871, %v1072
      %v1074 = vpop.f32.mrf.mxu0
      %v1075 = vadd.f32 %v871, %v1074
      %1076 = vmatmul.bf16.gmra.mxu0 %v896
      %v1077 = vpop.f32.mrf.mxu0
      %v1078 = vadd.f32 %v871, %v1077
      %v1079 = vpop.f32.mrf.mxu0
      %v1080 = vadd.f32 %v871, %v1079
      %1081 = vmatmul.bf16.gmra.mxu0 %v897
      %v1082 = vpop.f32.mrf.mxu0
      %v1083 = vadd.f32 %v871, %v1082
      %v1084 = vpop.f32.mrf.mxu0
      %v1085 = vadd.f32 %v871, %v1084
      %1086 = vmatmul.bf16.gmra.mxu0 %v898
      %v1087 = vpop.f32.mrf.mxu0
      %v1088 = vadd.f32 %v871, %v1087
      %v1089 = vpop.f32.mrf.mxu0
      %v1090 = vadd.f32 %v871, %v1089
      %1091 = vdwg.mxu0
      %1092 = vmatpush.bf16.msra.mxu0 %v1028
      %1093 = vmatpush.bf16.msra.mxu0 %v1024
      %1094 = vmatpush.bf16.msra.mxu0 %v1020
      %1095 = vmatpush.bf16.msra.mxu0 %v1016
      %1096 = vmatpush.bf16.msra.mxu0 %v1012
      %1097 = vmatpush.bf16.msra.mxu0 %v1008
      %1098 = vmatpush.bf16.msra.mxu0 %v1004
      %1099 = vmatpush.bf16.msra.mxu0 %v1000
      %1100 = vmatmul.bf16.gmra.mxu0 %v895
      %v1101 = vpop.f32.mrf.mxu0
      %v1102 = vadd.f32 %v872, %v1101
      %v1103 = vpop.f32.mrf.mxu0
      %v1104 = vadd.f32 %v872, %v1103
      %1105 = vmatmul.bf16.gmra.mxu0 %v896
      %v1106 = vpop.f32.mrf.mxu0
      %v1107 = vadd.f32 %v872, %v1106
      %v1108 = vpop.f32.mrf.mxu0
      %v1109 = vadd.f32 %v872, %v1108
      %1110 = vmatmul.bf16.gmra.mxu0 %v897
      %v1111 = vpop.f32.mrf.mxu0
      %v1112 = vadd.f32 %v872, %v1111
      %v1113 = vpop.f32.mrf.mxu0
      %v1114 = vadd.f32 %v872, %v1113
      %1115 = vmatmul.bf16.gmra.mxu0 %v898
      %v1116 = vpop.f32.mrf.mxu0
      %v1117 = vadd.f32 %v872, %v1116
      %v1118 = vpop.f32.mrf.mxu0
      %v1119 = vadd.f32 %v872, %v1118
      %1120 = vdwg.mxu0
      %1121 = vmatpush.bf16.msra.mxu0 %v1029
      %1122 = vmatpush.bf16.msra.mxu0 %v1025
      %1123 = vmatpush.bf16.msra.mxu0 %v1021
      %1124 = vmatpush.bf16.msra.mxu0 %v1017
      %1125 = vmatpush.bf16.msra.mxu0 %v1013
      %1126 = vmatpush.bf16.msra.mxu0 %v1009
      %1127 = vmatpush.bf16.msra.mxu0 %v1005
      %1128 = vmatpush.bf16.msra.mxu0 %v1001
      %1129 = vmatmul.bf16.gmra.mxu0 %v895
      %v1130 = vpop.f32.mrf.mxu0
      %v1131 = vadd.f32 %v873, %v1130
      %v1132 = vpop.f32.mrf.mxu0
      %v1133 = vadd.f32 %v873, %v1132
      %1134 = vmatmul.bf16.gmra.mxu0 %v896
      %v1135 = vpop.f32.mrf.mxu0
      %v1136 = vadd.f32 %v873, %v1135
      %v1137 = vpop.f32.mrf.mxu0
      %v1138 = vadd.f32 %v873, %v1137
      %1139 = vmatmul.bf16.gmra.mxu0 %v897
      %v1140 = vpop.f32.mrf.mxu0
      %v1141 = vadd.f32 %v873, %v1140
      %v1142 = vpop.f32.mrf.mxu0
      %v1143 = vadd.f32 %v873, %v1142
      %1144 = vmatmul.bf16.gmra.mxu0 %v898
      %v1145 = vpop.f32.mrf.mxu0
      %v1146 = vadd.f32 %v873, %v1145
      %v1147 = vpop.f32.mrf.mxu0
      %v1148 = vadd.f32 %v873, %v1147
      %1149 = vdwg.mxu0
      %1150 = vmatpush.bf16.msra.mxu0 %v1030
      %1151 = vmatpush.bf16.msra.mxu0 %v1026
      %1152 = vmatpush.bf16.msra.mxu0 %v1022
      %1153 = vmatpush.bf16.msra.mxu0 %v1018
      %1154 = vmatpush.bf16.msra.mxu0 %v1014
      %1155 = vmatpush.bf16.msra.mxu0 %v1010
      %1156 = vmatpush.bf16.msra.mxu0 %v1006
      %1157 = vmatpush.bf16.msra.mxu0 %v1002
      %1158 = vmatmul.bf16.gmra.mxu0 %v895
      %v1159 = vpop.f32.mrf.mxu0
      %v1160 = vadd.f32 %v874, %v1159
      %v1161 = vpop.f32.mrf.mxu0
      %v1162 = vadd.f32 %v874, %v1161
      %1163 = vmatmul.bf16.gmra.mxu0 %v896
      %v1164 = vpop.f32.mrf.mxu0
      %v1165 = vadd.f32 %v874, %v1164
      %v1166 = vpop.f32.mrf.mxu0
      %v1167 = vadd.f32 %v874, %v1166
      %1168 = vmatmul.bf16.gmra.mxu0 %v897
      %v1169 = vpop.f32.mrf.mxu0
      %v1170 = vadd.f32 %v874, %v1169
      %v1171 = vpop.f32.mrf.mxu0
      %v1172 = vadd.f32 %v874, %v1171
      %1173 = vmatmul.bf16.gmra.mxu0 %v898
      %v1174 = vpop.f32.mrf.mxu0
      %v1175 = vadd.f32 %v874, %v1174
      %v1176 = vpop.f32.mrf.mxu0
      %v1177 = vadd.f32 %v874, %v1176
      %1178 = vdwg.mxu0
      %1179 = vst [vmem:[#allocation2] sm:$0xff] %v731
      %1180 = vst [vmem:[#allocation2 + $0x8] sm:$0xff] %v760
      %1181 = vst [vmem:[#allocation2 + $0x10] sm:$0xff] %v789
      %1182 = vst [vmem:[#allocation2 + $0x18] sm:$0xff] %v818
      %1183 = vst [vmem:[#allocation2 + $0x20] sm:$0xff] %v733
      %1184 = vst [vmem:[#allocation2 + $0x28] sm:$0xff] %v762
      %1185 = vst [vmem:[#allocation2 + $0x30] sm:$0xff] %v791
      %1186 = vst [vmem:[#allocation2 + $0x38] sm:$0xff] %v820
      %1187 = vst [vmem:[#allocation2 + $0x40] sm:$0xff] %v736
      %1188 = vst [vmem:[#allocation2 + $0x48] sm:$0xff] %v765
      %1189 = vst [vmem:[#allocation2 + $0x50] sm:$0xff] %v794
      %1190 = vst [vmem:[#allocation2 + $0x58] sm:$0xff] %v823
      %1191 = vst [vmem:[#allocation2 + $0x60] sm:$0xff] %v738
      %1192 = vst [vmem:[#allocation2 + $0x68] sm:$0xff] %v767
      %1193 = vst [vmem:[#allocation2 + $0x70] sm:$0xff] %v796
      %1194 = vst [vmem:[#allocation2 + $0x78] sm:$0xff] %v825
      %1195 = vst [vmem:[#allocation2 + $0x80] sm:$0xff] %v741
      %1196 = vst [vmem:[#allocation2 + $0x88] sm:$0xff] %v770
      %1197 = vst [vmem:[#allocation2 + $0x90] sm:$0xff] %v799
      %1198 = vst [vmem:[#allocation2 + $0x98] sm:$0xff] %v828
      %1199 = vst [vmem:[#allocation2 + $0xa0] sm:$0xff] %v743
      %1200 = vst [vmem:[#allocation2 + $0xa8] sm:$0xff] %v772
      %1201 = vst [vmem:[#allocation2 + $0xb0] sm:$0xff] %v801
      %1202 = vst [vmem:[#allocation2 + $0xb8] sm:$0xff] %v830
      %1203 = vst [vmem:[#allocation2 + $0xc0] sm:$0xff] %v746
      %1204 = vst [vmem:[#allocation2 + $0xc8] sm:$0xff] %v775
      %1205 = vst [vmem:[#allocation2 + $0xd0] sm:$0xff] %v804
      %1206 = vst [vmem:[#allocation2 + $0xd8] sm:$0xff] %v833
      %1207 = vst [vmem:[#allocation2 + $0xe0] sm:$0xff] %v748
      %1208 = vst [vmem:[#allocation2 + $0xe8] sm:$0xff] %v777
      %1209 = vst [vmem:[#allocation2 + $0xf0] sm:$0xff] %v806
      %1210 = vst [vmem:[#allocation2 + $0xf8] sm:$0xff] %v835
      %1211 = vst [vmem:[#allocation3] sm:$0xff] %v1073
      %1212 = vst [vmem:[#allocation3 + $0x8] sm:$0xff] %v1102
      %1213 = vst [vmem:[#allocation3 + $0x10] sm:$0xff] %v1131
      %1214 = vst [vmem:[#allocation3 + $0x18] sm:$0xff] %v1160
      %1215 = vst [vmem:[#allocation3 + $0x20] sm:$0xff] %v1075
      %1216 = vst [vmem:[#allocation3 + $0x28] sm:$0xff] %v1104
      %1217 = vst [vmem:[#allocation3 + $0x30] sm:$0xff] %v1133
      %1218 = vst [vmem:[#allocation3 + $0x38] sm:$0xff] %v1162
      %1219 = vst [vmem:[#allocation3 + $0x40] sm:$0xff] %v1078
      %1220 = vst [vmem:[#allocation3 + $0x48] sm:$0xff] %v1107
      %1221 = vst [vmem:[#allocation3 + $0x50] sm:$0xff] %v1136
      %1222 = vst [vmem:[#allocation3 + $0x58] sm:$0xff] %v1165
      %1223 = vst [vmem:[#allocation3 + $0x60] sm:$0xff] %v1080
      %1224 = vst [vmem:[#allocation3 + $0x68] sm:$0xff] %v1109
      %1225 = vst [vmem:[#allocation3 + $0x70] sm:$0xff] %v1138
      %1226 = vst [vmem:[#allocation3 + $0x78] sm:$0xff] %v1167
      %1227 = vst [vmem:[#allocation3 + $0x80] sm:$0xff] %v1083
      %1228 = vst [vmem:[#allocation3 + $0x88] sm:$0xff] %v1112
      %1229 = vst [vmem:[#allocation3 + $0x90] sm:$0xff] %v1141
      %1230 = vst [vmem:[#allocation3 + $0x98] sm:$0xff] %v1170
      %1231 = vst [vmem:[#allocation3 + $0xa0] sm:$0xff] %v1085
      %1232 = vst [vmem:[#allocation3 + $0xa8] sm:$0xff] %v1114
      %1233 = vst [vmem:[#allocation3 + $0xb0] sm:$0xff] %v1143
      %1234 = vst [vmem:[#allocation3 + $0xb8] sm:$0xff] %v1172
      %1235 = vst [vmem:[#allocation3 + $0xc0] sm:$0xff] %v1088
      %1236 = vst [vmem:[#allocation3 + $0xc8] sm:$0xff] %v1117
      %1237 = vst [vmem:[#allocation3 + $0xd0] sm:$0xff] %v1146
      %1238 = vst [vmem:[#allocation3 + $0xd8] sm:$0xff] %v1175
      %1239 = vst [vmem:[#allocation3 + $0xe0] sm:$0xff] %v1090
      %1240 = vst [vmem:[#allocation3 + $0xe8] sm:$0xff] %v1119
      %1241 = vst [vmem:[#allocation3 + $0xf0] sm:$0xff] %v1148
      %1242 = vst [vmem:[#allocation3 + $0xf8] sm:$0xff] %v1177
      %v1243 = vld [vmem:[%s6] sm:$0xff]
      %v1244 = vld [vmem:[%s6 + $0x8] sm:$0xff]
      %v1245 = vld [vmem:[%s6 + $0x10] sm:$0xff]
      %v1246 = vld [vmem:[%s6 + $0x18] sm:$0xff]
      %v1247 = vld [vmem:[%s6 + $0x20] sm:$0xff]
      %v1248 = vld [vmem:[%s6 + $0x28] sm:$0xff]
      %v1249 = vld [vmem:[%s6 + $0x30] sm:$0xff]
      %v1250 = vld [vmem:[%s6 + $0x38] sm:$0xff]
      %v1251 = vld [vmem:[%s6 + $0x40] sm:$0xff]
      %v1252 = vld [vmem:[%s6 + $0x48] sm:$0xff]
      %v1253 = vld [vmem:[%s6 + $0x50] sm:$0xff]
      %v1254 = vld [vmem:[%s6 + $0x58] sm:$0xff]
      %v1255 = vld [vmem:[%s6 + $0x60] sm:$0xff]
      %v1256 = vld [vmem:[%s6 + $0x68] sm:$0xff]
      %v1257 = vld [vmem:[%s6 + $0x70] sm:$0xff]
      %v1258 = vld [vmem:[%s6 + $0x78] sm:$0xff]
      %v1259 = vld [vmem:[%s6 + $0x80] sm:$0xff]
      %v1260 = vld [vmem:[%s6 + $0x88] sm:$0xff]
      %v1261 = vld [vmem:[%s6 + $0x90] sm:$0xff]
      %v1262 = vld [vmem:[%s6 + $0x98] sm:$0xff]
      %v1263 = vld [vmem:[%s6 + $0xa0] sm:$0xff]
      %v1264 = vld [vmem:[%s6 + $0xa8] sm:$0xff]
      %v1265 = vld [vmem:[%s6 + $0xb0] sm:$0xff]
      %v1266 = vld [vmem:[%s6 + $0xb8] sm:$0xff]
      %v1267 = vld [vmem:[%s6 + $0xc0] sm:$0xff]
      %v1268 = vld [vmem:[%s6 + $0xc8] sm:$0xff]
      %v1269 = vld [vmem:[%s6 + $0xd0] sm:$0xff]
      %v1270 = vld [vmem:[%s6 + $0xd8] sm:$0xff]
      %v1271 = vld [vmem:[%s6 + $0xe0] sm:$0xff]
      %v1272 = vld [vmem:[%s6 + $0xe8] sm:$0xff]
      %v1273 = vld [vmem:[%s6 + $0xf0] sm:$0xff]
      %v1274 = vld [vmem:[%s6 + $0xf8] sm:$0xff]
      %v1275 = vld [vmem:[%s6 + $0x100] sm:$0xff]
      %v1276 = vld [vmem:[%s6 + $0x108] sm:$0xff]
      %v1277 = vld [vmem:[%s6 + $0x110] sm:$0xff]
      %v1278 = vld [vmem:[%s6 + $0x118] sm:$0xff]
      %v1279 = vld [vmem:[%s6 + $0x120] sm:$0xff]
      %v1280 = vld [vmem:[%s6 + $0x128] sm:$0xff]
      %v1281 = vld [vmem:[%s6 + $0x130] sm:$0xff]
      %v1282 = vld [vmem:[%s6 + $0x138] sm:$0xff]
      %v1283 = vld [vmem:[%s6 + $0x140] sm:$0xff]
      %v1284 = vld [vmem:[%s6 + $0x148] sm:$0xff]
      %v1285 = vld [vmem:[%s6 + $0x150] sm:$0xff]
      %v1286 = vld [vmem:[%s6 + $0x158] sm:$0xff]
      %v1287 = vld [vmem:[%s6 + $0x160] sm:$0xff]
      %v1288 = vld [vmem:[%s6 + $0x168] sm:$0xff]
      %v1289 = vld [vmem:[%s6 + $0x170] sm:$0xff]
      %v1290 = vld [vmem:[%s6 + $0x178] sm:$0xff]
      %v1291 = vld [vmem:[%s6 + $0x180] sm:$0xff]
      %v1292 = vld [vmem:[%s6 + $0x188] sm:$0xff]
      %v1293 = vld [vmem:[%s6 + $0x190] sm:$0xff]
      %v1294 = vld [vmem:[%s6 + $0x198] sm:$0xff]
      %v1295 = vld [vmem:[%s6 + $0x1a0] sm:$0xff]
      %v1296 = vld [vmem:[%s6 + $0x1a8] sm:$0xff]
      %v1297 = vld [vmem:[%s6 + $0x1b0] sm:$0xff]
      %v1298 = vld [vmem:[%s6 + $0x1b8] sm:$0xff]
      %v1299 = vld [vmem:[%s6 + $0x1c0] sm:$0xff]
      %v1300 = vld [vmem:[%s6 + $0x1c8] sm:$0xff]
      %v1301 = vld [vmem:[%s6 + $0x1d0] sm:$0xff]
      %v1302 = vld [vmem:[%s6 + $0x1d8] sm:$0xff]
      %v1303 = vld [vmem:[%s6 + $0x1e0] sm:$0xff]
      %v1304 = vld [vmem:[%s6 + $0x1e8] sm:$0xff]
      %v1305 = vld [vmem:[%s6 + $0x1f0] sm:$0xff]
      %v1306 = vld [vmem:[%s6 + $0x1f8] sm:$0xff]
      %v1307 = vld [vmem:[%s6 + $0x200] sm:$0xff]
      %v1308 = vld [vmem:[%s6 + $0x208] sm:$0xff]
      %v1309 = vld [vmem:[%s6 + $0x210] sm:$0xff]
      %v1310 = vld [vmem:[%s6 + $0x218] sm:$0xff]
      %v1311 = vld [vmem:[%s6 + $0x220] sm:$0xff]
      %v1312 = vld [vmem:[%s6 + $0x228] sm:$0xff]
      %v1313 = vld [vmem:[%s6 + $0x230] sm:$0xff]
      %v1314 = vld [vmem:[%s6 + $0x238] sm:$0xff]
      %v1315 = vld [vmem:[%s6 + $0x240] sm:$0xff]
      %v1316 = vld [vmem:[%s6 + $0x248] sm:$0xff]
      %v1317 = vld [vmem:[%s6 + $0x250] sm:$0xff]
      %v1318 = vld [vmem:[%s6 + $0x258] sm:$0xff]
      %v1319 = vld [vmem:[%s6 + $0x260] sm:$0xff]
      %v1320 = vld [vmem:[%s6 + $0x268] sm:$0xff]
      %v1321 = vld [vmem:[%s6 + $0x270] sm:$0xff]
      %v1322 = vld [vmem:[%s6 + $0x278] sm:$0xff]
      %v1323 = vld [vmem:[%s6 + $0x280] sm:$0xff]
      %v1324 = vld [vmem:[%s6 + $0x288] sm:$0xff]
      %v1325 = vld [vmem:[%s6 + $0x290] sm:$0xff]
      %v1326 = vld [vmem:[%s6 + $0x298] sm:$0xff]
      %v1327 = vld [vmem:[%s6 + $0x2a0] sm:$0xff]
      %v1328 = vld [vmem:[%s6 + $0x2a8] sm:$0xff]
      %v1329 = vld [vmem:[%s6 + $0x2b0] sm:$0xff]
      %v1330 = vld [vmem:[%s6 + $0x2b8] sm:$0xff]
      %v1331 = vld [vmem:[%s6 + $0x2c0] sm:$0xff]
      %v1332 = vld [vmem:[%s6 + $0x2c8] sm:$0xff]
      %v1333 = vld [vmem:[%s6 + $0x2d0] sm:$0xff]
      %v1334 = vld [vmem:[%s6 + $0x2d8] sm:$0xff]
      %v1335 = vld [vmem:[%s6 + $0x2e0] sm:$0xff]
      %v1336 = vld [vmem:[%s6 + $0x2e8] sm:$0xff]
      %v1337 = vld [vmem:[%s6 + $0x2f0] sm:$0xff]
      %v1338 = vld [vmem:[%s6 + $0x2f8] sm:$0xff]
      %v1339 = vld [vmem:[%s6 + $0x300] sm:$0xff]
      %v1340 = vld [vmem:[%s6 + $0x308] sm:$0xff]
      %v1341 = vld [vmem:[%s6 + $0x310] sm:$0xff]
      %v1342 = vld [vmem:[%s6 + $0x318] sm:$0xff]
      %v1343 = vld [vmem:[%s6 + $0x320] sm:$0xff]
      %v1344 = vld [vmem:[%s6 + $0x328] sm:$0xff]
      %v1345 = vld [vmem:[%s6 + $0x330] sm:$0xff]
      %v1346 = vld [vmem:[%s6 + $0x338] sm:$0xff]
      %v1347 = vld [vmem:[%s6 + $0x340] sm:$0xff]
      %v1348 = vld [vmem:[%s6 + $0x348] sm:$0xff]
      %v1349 = vld [vmem:[%s6 + $0x350] sm:$0xff]
      %v1350 = vld [vmem:[%s6 + $0x358] sm:$0xff]
      %v1351 = vld [vmem:[%s6 + $0x360] sm:$0xff]
      %v1352 = vld [vmem:[%s6 + $0x368] sm:$0xff]
      %v1353 = vld [vmem:[%s6 + $0x370] sm:$0xff]
      %v1354 = vld [vmem:[%s6 + $0x378] sm:$0xff]
      %v1355 = vld [vmem:[%s6 + $0x380] sm:$0xff]
      %v1356 = vld [vmem:[%s6 + $0x388] sm:$0xff]
      %v1357 = vld [vmem:[%s6 + $0x390] sm:$0xff]
      %v1358 = vld [vmem:[%s6 + $0x398] sm:$0xff]
      %v1359 = vld [vmem:[%s6 + $0x3a0] sm:$0xff]
      %v1360 = vld [vmem:[%s6 + $0x3a8] sm:$0xff]
      %v1361 = vld [vmem:[%s6 + $0x3b0] sm:$0xff]
      %v1362 = vld [vmem:[%s6 + $0x3b8] sm:$0xff]
      %v1363 = vld [vmem:[%s6 + $0x3c0] sm:$0xff]
      %v1364 = vld [vmem:[%s6 + $0x3c8] sm:$0xff]
      %v1365 = vld [vmem:[%s6 + $0x3d0] sm:$0xff]
      %v1366 = vld [vmem:[%s6 + $0x3d8] sm:$0xff]
      %v1367 = vld [vmem:[%s6 + $0x3e0] sm:$0xff]
      %v1368 = vld [vmem:[%s6 + $0x3e8] sm:$0xff]
      %v1369 = vld [vmem:[%s6 + $0x3f0] sm:$0xff]
      %v1370 = vld [vmem:[%s6 + $0x3f8] sm:$0xff]
      %v1371 = vld [vmem:[#allocation4] sm:$0xff]
      %v1372 = vld [vmem:[#allocation4 + $0x8] sm:$0xff]
      %v1373 = vld [vmem:[#allocation4 + $0x10] sm:$0xff]
      %v1374 = vld [vmem:[#allocation4 + $0x18] sm:$0xff]
      %v1375 = vld [vmem:[#allocation5] sm:$0xff]
      %v1376 = vld [vmem:[#allocation5 + $0x8] sm:$0xff]
      %v1377 = vld [vmem:[#allocation5 + $0x10] sm:$0xff]
      %v1378 = vld [vmem:[#allocation5 + $0x18] sm:$0xff]
      %v1379 = vld [vmem:[#allocation6] sm:$0xff]
      %v1380 = vld [vmem:[#allocation6 + $0x8] sm:$0xff]
      %v1381 = vld [vmem:[#allocation6 + $0x10] sm:$0xff]
      %v1382 = vld [vmem:[#allocation6 + $0x18] sm:$0xff]
      %v1383 = vpack.c.bf16 %v1373, %v1371
      %v1384 = vpack.c.bf16 %v1374, %v1372
      %v1513 = vunpack.c.l.b16 %v1243
      %v1514 = vunpack.c.h.b16 %v1243
      %v1515 = vunpack.c.l.b16 %v1244
      %v1516 = vunpack.c.h.b16 %v1244
      %v1517 = vunpack.c.l.b16 %v1245
      %v1518 = vunpack.c.h.b16 %v1245
      %v1519 = vunpack.c.l.b16 %v1246
      %v1520 = vunpack.c.h.b16 %v1246
      %v1521 = vunpack.c.l.b16 %v1247
      %v1522 = vunpack.c.h.b16 %v1247
      %v1523 = vunpack.c.l.b16 %v1248
      %v1524 = vunpack.c.h.b16 %v1248
      %v1525 = vunpack.c.l.b16 %v1249
      %v1526 = vunpack.c.h.b16 %v1249
      %v1527 = vunpack.c.l.b16 %v1250
      %v1528 = vunpack.c.h.b16 %v1250
      %v1529 = vunpack.c.l.b16 %v1251
      %v1530 = vunpack.c.h.b16 %v1251
      %v1531 = vunpack.c.l.b16 %v1252
      %v1532 = vunpack.c.h.b16 %v1252
      %v1533 = vunpack.c.l.b16 %v1253
      %v1534 = vunpack.c.h.b16 %v1253
      %v1535 = vunpack.c.l.b16 %v1254
      %v1536 = vunpack.c.h.b16 %v1254
      %v1537 = vunpack.c.l.b16 %v1255
      %v1538 = vunpack.c.h.b16 %v1255
      %v1539 = vunpack.c.l.b16 %v1256
      %v1540 = vunpack.c.h.b16 %v1256
      %v1541 = vunpack.c.l.b16 %v1257
      %v1542 = vunpack.c.h.b16 %v1257
      %v1543 = vunpack.c.l.b16 %v1258
      %v1544 = vunpack.c.h.b16 %v1258
      %v1545 = vunpack.c.l.b16 %v1259
      %v1546 = vunpack.c.h.b16 %v1259
      %v1547 = vunpack.c.l.b16 %v1260
      %v1548 = vunpack.c.h.b16 %v1260
      %v1549 = vunpack.c.l.b16 %v1261
      %v1550 = vunpack.c.h.b16 %v1261
      %v1551 = vunpack.c.l.b16 %v1262
      %v1552 = vunpack.c.h.b16 %v1262
      %v1553 = vunpack.c.l.b16 %v1263
      %v1554 = vunpack.c.h.b16 %v1263
      %v1555 = vunpack.c.l.b16 %v1264
      %v1556 = vunpack.c.h.b16 %v1264
      %v1557 = vunpack.c.l.b16 %v1265
      %v1558 = vunpack.c.h.b16 %v1265
      %v1559 = vunpack.c.l.b16 %v1266
      %v1560 = vunpack.c.h.b16 %v1266
      %v1561 = vunpack.c.l.b16 %v1267
      %v1562 = vunpack.c.h.b16 %v1267
      %v1563 = vunpack.c.l.b16 %v1268
      %v1564 = vunpack.c.h.b16 %v1268
      %v1565 = vunpack.c.l.b16 %v1269
      %v1566 = vunpack.c.h.b16 %v1269
      %v1567 = vunpack.c.l.b16 %v1270
      %v1568 = vunpack.c.h.b16 %v1270
      %v1569 = vunpack.c.l.b16 %v1271
      %v1570 = vunpack.c.h.b16 %v1271
      %v1571 = vunpack.c.l.b16 %v1272
      %v1572 = vunpack.c.h.b16 %v1272
      %v1573 = vunpack.c.l.b16 %v1273
      %v1574 = vunpack.c.h.b16 %v1273
      %v1575 = vunpack.c.l.b16 %v1274
      %v1576 = vunpack.c.h.b16 %v1274
      %v1577 = vunpack.c.l.b16 %v1275
      %v1578 = vunpack.c.h.b16 %v1275
      %v1579 = vunpack.c.l.b16 %v1276
      %v1580 = vunpack.c.h.b16 %v1276
      %v1581 = vunpack.c.l.b16 %v1277
      %v1582 = vunpack.c.h.b16 %v1277
      %v1583 = vunpack.c.l.b16 %v1278
      %v1584 = vunpack.c.h.b16 %v1278
      %v1585 = vunpack.c.l.b16 %v1279
      %v1586 = vunpack.c.h.b16 %v1279
      %v1587 = vunpack.c.l.b16 %v1280
      %v1588 = vunpack.c.h.b16 %v1280
      %v1589 = vunpack.c.l.b16 %v1281
      %v1590 = vunpack.c.h.b16 %v1281
      %v1591 = vunpack.c.l.b16 %v1282
      %v1592 = vunpack.c.h.b16 %v1282
      %v1593 = vunpack.c.l.b16 %v1283
      %v1594 = vunpack.c.h.b16 %v1283
      %v1595 = vunpack.c.l.b16 %v1284
      %v1596 = vunpack.c.h.b16 %v1284
      %v1597 = vunpack.c.l.b16 %v1285
      %v1598 = vunpack.c.h.b16 %v1285
      %v1599 = vunpack.c.l.b16 %v1286
      %v1600 = vunpack.c.h.b16 %v1286
      %v1601 = vunpack.c.l.b16 %v1287
      %v1602 = vunpack.c.h.b16 %v1287
      %v1603 = vunpack.c.l.b16 %v1288
      %v1604 = vunpack.c.h.b16 %v1288
      %v1605 = vunpack.c.l.b16 %v1289
      %v1606 = vunpack.c.h.b16 %v1289
      %v1607 = vunpack.c.l.b16 %v1290
      %v1608 = vunpack.c.h.b16 %v1290
      %v1609 = vunpack.c.l.b16 %v1291
      %v1610 = vunpack.c.h.b16 %v1291
      %v1611 = vunpack.c.l.b16 %v1292
      %v1612 = vunpack.c.h.b16 %v1292
      %v1613 = vunpack.c.l.b16 %v1293
      %v1614 = vunpack.c.h.b16 %v1293
      %v1615 = vunpack.c.l.b16 %v1294
      %v1616 = vunpack.c.h.b16 %v1294
      %v1617 = vunpack.c.l.b16 %v1295
      %v1618 = vunpack.c.h.b16 %v1295
      %v1619 = vunpack.c.l.b16 %v1296
      %v1620 = vunpack.c.h.b16 %v1296
      %v1621 = vunpack.c.l.b16 %v1297
      %v1622 = vunpack.c.h.b16 %v1297
      %v1623 = vunpack.c.l.b16 %v1298
      %v1624 = vunpack.c.h.b16 %v1298
      %v1625 = vunpack.c.l.b16 %v1299
      %v1626 = vunpack.c.h.b16 %v1299
      %v1627 = vunpack.c.l.b16 %v1300
      %v1628 = vunpack.c.h.b16 %v1300
      %v1629 = vunpack.c.l.b16 %v1301
      %v1630 = vunpack.c.h.b16 %v1301
      %v1631 = vunpack.c.l.b16 %v1302
      %v1632 = vunpack.c.h.b16 %v1302
      %v1633 = vunpack.c.l.b16 %v1303
      %v1634 = vunpack.c.h.b16 %v1303
      %v1635 = vunpack.c.l.b16 %v1304
      %v1636 = vunpack.c.h.b16 %v1304
      %v1637 = vunpack.c.l.b16 %v1305
      %v1638 = vunpack.c.h.b16 %v1305
      %v1639 = vunpack.c.l.b16 %v1306
      %v1640 = vunpack.c.h.b16 %v1306
      %v1641 = vunpack.c.l.b16 %v1307
      %v1642 = vunpack.c.h.b16 %v1307
      %v1643 = vunpack.c.l.b16 %v1308
      %v1644 = vunpack.c.h.b16 %v1308
      %v1645 = vunpack.c.l.b16 %v1309
      %v1646 = vunpack.c.h.b16 %v1309
      %v1647 = vunpack.c.l.b16 %v1310
      %v1648 = vunpack.c.h.b16 %v1310
      %v1649 = vunpack.c.l.b16 %v1311
      %v1650 = vunpack.c.h.b16 %v1311
      %v1651 = vunpack.c.l.b16 %v1312
      %v1652 = vunpack.c.h.b16 %v1312
      %v1653 = vunpack.c.l.b16 %v1313
      %v1654 = vunpack.c.h.b16 %v1313
      %v1655 = vunpack.c.l.b16 %v1314
      %v1656 = vunpack.c.h.b16 %v1314
      %v1657 = vunpack.c.l.b16 %v1315
      %v1658 = vunpack.c.h.b16 %v1315
      %v1659 = vunpack.c.l.b16 %v1316
      %v1660 = vunpack.c.h.b16 %v1316
      %v1661 = vunpack.c.l.b16 %v1317
      %v1662 = vunpack.c.h.b16 %v1317
      %v1663 = vunpack.c.l.b16 %v1318
      %v1664 = vunpack.c.h.b16 %v1318
      %v1665 = vunpack.c.l.b16 %v1319
      %v1666 = vunpack.c.h.b16 %v1319
      %v1667 = vunpack.c.l.b16 %v1320
      %v1668 = vunpack.c.h.b16 %v1320
      %v1669 = vunpack.c.l.b16 %v1321
      %v1670 = vunpack.c.h.b16 %v1321
      %v1671 = vunpack.c.l.b16 %v1322
      %v1672 = vunpack.c.h.b16 %v1322
      %v1673 = vunpack.c.l.b16 %v1323
      %v1674 = vunpack.c.h.b16 %v1323
      %v1675 = vunpack.c.l.b16 %v1324
      %v1676 = vunpack.c.h.b16 %v1324
      %v1677 = vunpack.c.l.b16 %v1325
      %v1678 = vunpack.c.h.b16 %v1325
      %v1679 = vunpack.c.l.b16 %v1326
      %v1680 = vunpack.c.h.b16 %v1326
      %v1681 = vunpack.c.l.b16 %v1327
      %v1682 = vunpack.c.h.b16 %v1327
      %v1683 = vunpack.c.l.b16 %v1328
      %v1684 = vunpack.c.h.b16 %v1328
      %v1685 = vunpack.c.l.b16 %v1329
      %v1686 = vunpack.c.h.b16 %v1329
      %v1687 = vunpack.c.l.b16 %v1330
      %v1688 = vunpack.c.h.b16 %v1330
      %v1689 = vunpack.c.l.b16 %v1331
      %v1690 = vunpack.c.h.b16 %v1331
      %v1691 = vunpack.c.l.b16 %v1332
      %v1692 = vunpack.c.h.b16 %v1332
      %v1693 = vunpack.c.l.b16 %v1333
      %v1694 = vunpack.c.h.b16 %v1333
      %v1695 = vunpack.c.l.b16 %v1334
      %v1696 = vunpack.c.h.b16 %v1334
      %v1697 = vunpack.c.l.b16 %v1335
      %v1698 = vunpack.c.h.b16 %v1335
      %v1699 = vunpack.c.l.b16 %v1336
      %v1700 = vunpack.c.h.b16 %v1336
      %v1701 = vunpack.c.l.b16 %v1337
      %v1702 = vunpack.c.h.b16 %v1337
      %v1703 = vunpack.c.l.b16 %v1338
      %v1704 = vunpack.c.h.b16 %v1338
      %v1705 = vunpack.c.l.b16 %v1339
      %v1706 = vunpack.c.h.b16 %v1339
      %v1707 = vunpack.c.l.b16 %v1340
      %v1708 = vunpack.c.h.b16 %v1340
      %v1709 = vunpack.c.l.b16 %v1341
      %v1710 = vunpack.c.h.b16 %v1341
      %v1711 = vunpack.c.l.b16 %v1342
      %v1712 = vunpack.c.h.b16 %v1342
      %v1713 = vunpack.c.l.b16 %v1343
      %v1714 = vunpack.c.h.b16 %v1343
      %v1715 = vunpack.c.l.b16 %v1344
      %v1716 = vunpack.c.h.b16 %v1344
      %v1717 = vunpack.c.l.b16 %v1345
      %v1718 = vunpack.c.h.b16 %v1345
      %v1719 = vunpack.c.l.b16 %v1346
      %v1720 = vunpack.c.h.b16 %v1346
      %v1721 = vunpack.c.l.b16 %v1347
      %v1722 = vunpack.c.h.b16 %v1347
      %v1723 = vunpack.c.l.b16 %v1348
      %v1724 = vunpack.c.h.b16 %v1348
      %v1725 = vunpack.c.l.b16 %v1349
      %v1726 = vunpack.c.h.b16 %v1349
      %v1727 = vunpack.c.l.b16 %v1350
      %v1728 = vunpack.c.h.b16 %v1350
      %v1729 = vunpack.c.l.b16 %v1351
      %v1730 = vunpack.c.h.b16 %v1351
      %v1731 = vunpack.c.l.b16 %v1352
      %v1732 = vunpack.c.h.b16 %v1352
      %v1733 = vunpack.c.l.b16 %v1353
      %v1734 = vunpack.c.h.b16 %v1353
      %v1735 = vunpack.c.l.b16 %v1354
      %v1736 = vunpack.c.h.b16 %v1354
      %v1737 = vunpack.c.l.b16 %v1355
      %v1738 = vunpack.c.h.b16 %v1355
      %v1739 = vunpack.c.l.b16 %v1356
      %v1740 = vunpack.c.h.b16 %v1356
      %v1741 = vunpack.c.l.b16 %v1357
      %v1742 = vunpack.c.h.b16 %v1357
      %v1743 = vunpack.c.l.b16 %v1358
      %v1744 = vunpack.c.h.b16 %v1358
      %v1745 = vunpack.c.l.b16 %v1359
      %v1746 = vunpack.c.h.b16 %v1359
      %v1747 = vunpack.c.l.b16 %v1360
      %v1748 = vunpack.c.h.b16 %v1360
      %v1749 = vunpack.c.l.b16 %v1361
      %v1750 = vunpack.c.h.b16 %v1361
      %v1751 = vunpack.c.l.b16 %v1362
      %v1752 = vunpack.c.h.b16 %v1362
      %v1753 = vunpack.c.l.b16 %v1363
      %v1754 = vunpack.c.h.b16 %v1363
      %v1755 = vunpack.c.l.b16 %v1364
      %v1756 = vunpack.c.h.b16 %v1364
      %v1757 = vunpack.c.l.b16 %v1365
      %v1758 = vunpack.c.h.b16 %v1365
      %v1759 = vunpack.c.l.b16 %v1366
      %v1760 = vunpack.c.h.b16 %v1366
      %v1761 = vunpack.c.l.b16 %v1367
      %v1762 = vunpack.c.h.b16 %v1367
      %v1763 = vunpack.c.l.b16 %v1368
      %v1764 = vunpack.c.h.b16 %v1368
      %v1765 = vunpack.c.l.b16 %v1369
      %v1766 = vunpack.c.h.b16 %v1369
      %v1767 = vunpack.c.l.b16 %v1370
      %v1768 = vunpack.c.h.b16 %v1370
      %v1769 = vpack.c.b16 %v1521, %v1513
      %v1770 = vpack.c.b16 %v1522, %v1514
      %v1771 = vpack.c.b16 %v1523, %v1515
      %v1772 = vpack.c.b16 %v1524, %v1516
      %v1773 = vpack.c.b16 %v1525, %v1517
      %v1774 = vpack.c.b16 %v1526, %v1518
      %v1775 = vpack.c.b16 %v1527, %v1519
      %v1776 = vpack.c.b16 %v1528, %v1520
      %v1777 = vpack.c.b16 %v1537, %v1529
      %v1778 = vpack.c.b16 %v1538, %v1530
      %v1779 = vpack.c.b16 %v1539, %v1531
      %v1780 = vpack.c.b16 %v1540, %v1532
      %v1781 = vpack.c.b16 %v1541, %v1533
      %v1782 = vpack.c.b16 %v1542, %v1534
      %v1783 = vpack.c.b16 %v1543, %v1535
      %v1784 = vpack.c.b16 %v1544, %v1536
      %v1785 = vpack.c.b16 %v1553, %v1545
      %v1786 = vpack.c.b16 %v1554, %v1546
      %v1787 = vpack.c.b16 %v1555, %v1547
      %v1788 = vpack.c.b16 %v1556, %v1548
      %v1789 = vpack.c.b16 %v1557, %v1549
      %v1790 = vpack.c.b16 %v1558, %v1550
      %v1791 = vpack.c.b16 %v1559, %v1551
      %v1792 = vpack.c.b16 %v1560, %v1552
      %v1793 = vpack.c.b16 %v1569, %v1561
      %v1794 = vpack.c.b16 %v1570, %v1562
      %v1795 = vpack.c.b16 %v1571, %v1563
      %v1796 = vpack.c.b16 %v1572, %v1564
      %v1797 = vpack.c.b16 %v1573, %v1565
      %v1798 = vpack.c.b16 %v1574, %v1566
      %v1799 = vpack.c.b16 %v1575, %v1567
      %v1800 = vpack.c.b16 %v1576, %v1568
      %v1801 = vpack.c.b16 %v1585, %v1577
      %v1802 = vpack.c.b16 %v1586, %v1578
      %v1803 = vpack.c.b16 %v1587, %v1579
      %v1804 = vpack.c.b16 %v1588, %v1580
      %v1805 = vpack.c.b16 %v1589, %v1581
      %v1806 = vpack.c.b16 %v1590, %v1582
      %v1807 = vpack.c.b16 %v1591, %v1583
      %v1808 = vpack.c.b16 %v1592, %v1584
      %v1809 = vpack.c.b16 %v1601, %v1593
      %v1810 = vpack.c.b16 %v1602, %v1594
      %v1811 = vpack.c.b16 %v1603, %v1595
      %v1812 = vpack.c.b16 %v1604, %v1596
      %v1813 = vpack.c.b16 %v1605, %v1597
      %v1814 = vpack.c.b16 %v1606, %v1598
      %v1815 = vpack.c.b16 %v1607, %v1599
      %v1816 = vpack.c.b16 %v1608, %v1600
      %v1817 = vpack.c.b16 %v1617, %v1609
      %v1818 = vpack.c.b16 %v1618, %v1610
      %v1819 = vpack.c.b16 %v1619, %v1611
      %v1820 = vpack.c.b16 %v1620, %v1612
      %v1821 = vpack.c.b16 %v1621, %v1613
      %v1822 = vpack.c.b16 %v1622, %v1614
      %v1823 = vpack.c.b16 %v1623, %v1615
      %v1824 = vpack.c.b16 %v1624, %v1616
      %v1825 = vpack.c.b16 %v1633, %v1625
      %v1826 = vpack.c.b16 %v1634, %v1626
      %v1827 = vpack.c.b16 %v1635, %v1627
      %v1828 = vpack.c.b16 %v1636, %v1628
      %v1829 = vpack.c.b16 %v1637, %v1629
      %v1830 = vpack.c.b16 %v1638, %v1630
      %v1831 = vpack.c.b16 %v1639, %v1631
      %v1832 = vpack.c.b16 %v1640, %v1632
      %v1833 = vpack.c.b16 %v1649, %v1641
      %v1834 = vpack.c.b16 %v1650, %v1642
      %v1835 = vpack.c.b16 %v1651, %v1643
      %v1836 = vpack.c.b16 %v1652, %v1644
      %v1837 = vpack.c.b16 %v1653, %v1645
      %v1838 = vpack.c.b16 %v1654, %v1646
      %v1839 = vpack.c.b16 %v1655, %v1647
      %v1840 = vpack.c.b16 %v1656, %v1648
      %v1841 = vpack.c.b16 %v1665, %v1657
      %v1842 = vpack.c.b16 %v1666, %v1658
      %v1843 = vpack.c.b16 %v1667, %v1659
      %v1844 = vpack.c.b16 %v1668, %v1660
      %v1845 = vpack.c.b16 %v1669, %v1661
      %v1846 = vpack.c.b16 %v1670, %v1662
      %v1847 = vpack.c.b16 %v1671, %v1663
      %v1848 = vpack.c.b16 %v1672, %v1664
      %v1849 = vpack.c.b16 %v1681, %v1673
      %v1850 = vpack.c.b16 %v1682, %v1674
      %v1851 = vpack.c.b16 %v1683, %v1675
      %v1852 = vpack.c.b16 %v1684, %v1676
      %v1853 = vpack.c.b16 %v1685, %v1677
      %v1854 = vpack.c.b16 %v1686, %v1678
      %v1855 = vpack.c.b16 %v1687, %v1679
      %v1856 = vpack.c.b16 %v1688, %v1680
      %v1857 = vpack.c.b16 %v1697, %v1689
      %v1858 = vpack.c.b16 %v1698, %v1690
      %v1859 = vpack.c.b16 %v1699, %v1691
      %v1860 = vpack.c.b16 %v1700, %v1692
      %v1861 = vpack.c.b16 %v1701, %v1693
      %v1862 = vpack.c.b16 %v1702, %v1694
      %v1863 = vpack.c.b16 %v1703, %v1695
      %v1864 = vpack.c.b16 %v1704, %v1696
      %v1865 = vpack.c.b16 %v1713, %v1705
      %v1866 = vpack.c.b16 %v1714, %v1706
      %v1867 = vpack.c.b16 %v1715, %v1707
      %v1868 = vpack.c.b16 %v1716, %v1708
      %v1869 = vpack.c.b16 %v1717, %v1709
      %v1870 = vpack.c.b16 %v1718, %v1710
      %v1871 = vpack.c.b16 %v1719, %v1711
      %v1872 = vpack.c.b16 %v1720, %v1712
      %v1873 = vpack.c.b16 %v1729, %v1721
      %v1874 = vpack.c.b16 %v1730, %v1722
      %v1875 = vpack.c.b16 %v1731, %v1723
      %v1876 = vpack.c.b16 %v1732, %v1724
      %v1877 = vpack.c.b16 %v1733, %v1725
      %v1878 = vpack.c.b16 %v1734, %v1726
      %v1879 = vpack.c.b16 %v1735, %v1727
      %v1880 = vpack.c.b16 %v1736, %v1728
      %v1881 = vpack.c.b16 %v1745, %v1737
      %v1882 = vpack.c.b16 %v1746, %v1738
      %v1883 = vpack.c.b16 %v1747, %v1739
      %v1884 = vpack.c.b16 %v1748, %v1740
      %v1885 = vpack.c.b16 %v1749, %v1741
      %v1886 = vpack.c.b16 %v1750, %v1742
      %v1887 = vpack.c.b16 %v1751, %v1743
      %v1888 = vpack.c.b16 %v1752, %v1744
      %v1889 = vpack.c.b16 %v1761, %v1753
      %v1890 = vpack.c.b16 %v1762, %v1754
      %v1891 = vpack.c.b16 %v1763, %v1755
      %v1892 = vpack.c.b16 %v1764, %v1756
      %v1893 = vpack.c.b16 %v1765, %v1757
      %v1894 = vpack.c.b16 %v1766, %v1758
      %v1895 = vpack.c.b16 %v1767, %v1759
      %v1896 = vpack.c.b16 %v1768, %v1760
      %2025 = vmatpush.bf16.msra.mxu0 %v1825
      %2026 = vmatpush.bf16.msra.mxu0 %v1817
      %2027 = vmatpush.bf16.msra.mxu0 %v1809
      %2028 = vmatpush.bf16.msra.mxu0 %v1801
      %2029 = vmatpush.bf16.msra.mxu0 %v1793
      %2030 = vmatpush.bf16.msra.mxu0 %v1785
      %2031 = vmatpush.bf16.msra.mxu0 %v1777
      %2032 = vmatpush.bf16.msra.mxu0 %v1769
      %2033 = vmatmul.bf16.gmra.mxu0 %v1383
      %v2034 = vpop.f32.mrf.mxu0
      %v2035 = vadd.f32 0.0, %v2034
      %v2036 = vpop.f32.mrf.mxu0
      %v2037 = vadd.f32 0.0, %v2036
      %2038 = vdwg.mxu0
      %2039 = vmatpush.bf16.msra.mxu0 %v1889
      %2040 = vmatpush.bf16.msra.mxu0 %v1881
      %2041 = vmatpush.bf16.msra.mxu0 %v1873
      %2042 = vmatpush.bf16.msra.mxu0 %v1865
      %2043 = vmatpush.bf16.msra.mxu0 %v1857
      %2044 = vmatpush.bf16.msra.mxu0 %v1849
      %2045 = vmatpush.bf16.msra.mxu0 %v1841
      %2046 = vmatpush.bf16.msra.mxu0 %v1833
      %2047 = vmatmul.bf16.gmra.mxu0 %v1384
      %v2048 = vpop.f32.mrf.mxu0
      %v2049 = vadd.f32 %v2035, %v2048
      %v2050 = vpop.f32.mrf.mxu0
      %v2051 = vadd.f32 %v2037, %v2050
      %2052 = vdwg.mxu0
      %2053 = vmatpush.bf16.msra.mxu0 %v1826
      %2054 = vmatpush.bf16.msra.mxu0 %v1818
      %2055 = vmatpush.bf16.msra.mxu0 %v1810
      %2056 = vmatpush.bf16.msra.mxu0 %v1802
      %2057 = vmatpush.bf16.msra.mxu0 %v1794
      %2058 = vmatpush.bf16.msra.mxu0 %v1786
      %2059 = vmatpush.bf16.msra.mxu0 %v1778
      %2060 = vmatpush.bf16.msra.mxu0 %v1770
      %2061 = vmatmul.bf16.gmra.mxu0 %v1383
      %v2062 = vpop.f32.mrf.mxu0
      %v2063 = vadd.f32 0.0, %v2062
      %v2064 = vpop.f32.mrf.mxu0
      %v2065 = vadd.f32 0.0, %v2064
      %2066 = vdwg.mxu0
      %2067 = vmatpush.bf16.msra.mxu0 %v1890
      %2068 = vmatpush.bf16.msra.mxu0 %v1882
      %2069 = vmatpush.bf16.msra.mxu0 %v1874
      %2070 = vmatpush.bf16.msra.mxu0 %v1866
      %2071 = vmatpush.bf16.msra.mxu0 %v1858
      %2072 = vmatpush.bf16.msra.mxu0 %v1850
      %2073 = vmatpush.bf16.msra.mxu0 %v1842
      %2074 = vmatpush.bf16.msra.mxu0 %v1834
      %2075 = vmatmul.bf16.gmra.mxu0 %v1384
      %v2076 = vpop.f32.mrf.mxu0
      %v2077 = vadd.f32 %v2063, %v2076
      %v2078 = vpop.f32.mrf.mxu0
      %v2079 = vadd.f32 %v2065, %v2078
      %2080 = vdwg.mxu0
      %2081 = vmatpush.bf16.msra.mxu0 %v1827
      %2082 = vmatpush.bf16.msra.mxu0 %v1819
      %2083 = vmatpush.bf16.msra.mxu0 %v1811
      %2084 = vmatpush.bf16.msra.mxu0 %v1803
      %2085 = vmatpush.bf16.msra.mxu0 %v1795
      %2086 = vmatpush.bf16.msra.mxu0 %v1787
      %2087 = vmatpush.bf16.msra.mxu0 %v1779
      %2088 = vmatpush.bf16.msra.mxu0 %v1771
      %2089 = vmatmul.bf16.gmra.mxu0 %v1383
      %v2090 = vpop.f32.mrf.mxu0
      %v2091 = vadd.f32 0.0, %v2090
      %v2092 = vpop.f32.mrf.mxu0
      %v2093 = vadd.f32 0.0, %v2092
      %2094 = vdwg.mxu0
      %2095 = vmatpush.bf16.msra.mxu0 %v1891
      %2096 = vmatpush.bf16.msra.mxu0 %v1883
      %2097 = vmatpush.bf16.msra.mxu0 %v1875
      %2098 = vmatpush.bf16.msra.mxu0 %v1867
      %2099 = vmatpush.bf16.msra.mxu0 %v1859
      %2100 = vmatpush.bf16.msra.mxu0 %v1851
      %2101 = vmatpush.bf16.msra.mxu0 %v1843
      %2102 = vmatpush.bf16.msra.mxu0 %v1835
      %2103 = vmatmul.bf16.gmra.mxu0 %v1384
      %v2104 = vpop.f32.mrf.mxu0
      %v2105 = vadd.f32 %v2091, %v2104
      %v2106 = vpop.f32.mrf.mxu0
      %v2107 = vadd.f32 %v2093, %v2106
      %2108 = vdwg.mxu0
      %2109 = vmatpush.bf16.msra.mxu0 %v1828
      %2110 = vmatpush.bf16.msra.mxu0 %v1820
      %2111 = vmatpush.bf16.msra.mxu0 %v1812
      %2112 = vmatpush.bf16.msra.mxu0 %v1804
      %2113 = vmatpush.bf16.msra.mxu0 %v1796
      %2114 = vmatpush.bf16.msra.mxu0 %v1788
      %2115 = vmatpush.bf16.msra.mxu0 %v1780
      %2116 = vmatpush.bf16.msra.mxu0 %v1772
      %2117 = vmatmul.bf16.gmra.mxu0 %v1383
      %v2118 = vpop.f32.mrf.mxu0
      %v2119 = vadd.f32 0.0, %v2118
      %v2120 = vpop.f32.mrf.mxu0
      %v2121 = vadd.f32 0.0, %v2120
      %2122 = vdwg.mxu0
      %2123 = vmatpush.bf16.msra.mxu0 %v1892
      %2124 = vmatpush.bf16.msra.mxu0 %v1884
      %2125 = vmatpush.bf16.msra.mxu0 %v1876
      %2126 = vmatpush.bf16.msra.mxu0 %v1868
      %2127 = vmatpush.bf16.msra.mxu0 %v1860
      %2128 = vmatpush.bf16.msra.mxu0 %v1852
      %2129 = vmatpush.bf16.msra.mxu0 %v1844
      %2130 = vmatpush.bf16.msra.mxu0 %v1836
      %2131 = vmatmul.bf16.gmra.mxu0 %v1384
      %v2132 = vpop.f32.mrf.mxu0
      %v2133 = vadd.f32 %v2119, %v2132
      %v2134 = vpop.f32.mrf.mxu0
      %v2135 = vadd.f32 %v2121, %v2134
      %2136 = vdwg.mxu0
      %2137 = vmatpush.bf16.msra.mxu0 %v1829
      %2138 = vmatpush.bf16.msra.mxu0 %v1821
      %2139 = vmatpush.bf16.msra.mxu0 %v1813
      %2140 = vmatpush.bf16.msra.mxu0 %v1805
      %2141 = vmatpush.bf16.msra.mxu0 %v1797
      %2142 = vmatpush.bf16.msra.mxu0 %v1789
      %2143 = vmatpush.bf16.msra.mxu0 %v1781
      %2144 = vmatpush.bf16.msra.mxu0 %v1773
      %2145 = vmatmul.bf16.gmra.mxu0 %v1383
      %v2146 = vpop.f32.mrf.mxu0
      %v2147 = vadd.f32 0.0, %v2146
      %v2148 = vpop.f32.mrf.mxu0
      %v2149 = vadd.f32 0.0, %v2148
      %2150 = vdwg.mxu0
      %2151 = vmatpush.bf16.msra.mxu0 %v1893
      %2152 = vmatpush.bf16.msra.mxu0 %v1885
      %2153 = vmatpush.bf16.msra.mxu0 %v1877
      %2154 = vmatpush.bf16.msra.mxu0 %v1869
      %2155 = vmatpush.bf16.msra.mxu0 %v1861
      %2156 = vmatpush.bf16.msra.mxu0 %v1853
      %2157 = vmatpush.bf16.msra.mxu0 %v1845
      %2158 = vmatpush.bf16.msra.mxu0 %v1837
      %2159 = vmatmul.bf16.gmra.mxu0 %v1384
      %v2160 = vpop.f32.mrf.mxu0
      %v2161 = vadd.f32 %v2147, %v2160
      %v2162 = vpop.f32.mrf.mxu0
      %v2163 = vadd.f32 %v2149, %v2162
      %2164 = vdwg.mxu0
      %2165 = vmatpush.bf16.msra.mxu0 %v1830
      %2166 = vmatpush.bf16.msra.mxu0 %v1822
      %2167 = vmatpush.bf16.msra.mxu0 %v1814
      %2168 = vmatpush.bf16.msra.mxu0 %v1806
      %2169 = vmatpush.bf16.msra.mxu0 %v1798
      %2170 = vmatpush.bf16.msra.mxu0 %v1790
      %2171 = vmatpush.bf16.msra.mxu0 %v1782
      %2172 = vmatpush.bf16.msra.mxu0 %v1774
      %2173 = vmatmul.bf16.gmra.mxu0 %v1383
      %v2174 = vpop.f32.mrf.mxu0
      %v2175 = vadd.f32 0.0, %v2174
      %v2176 = vpop.f32.mrf.mxu0
      %v2177 = vadd.f32 0.0, %v2176
      %2178 = vdwg.mxu0
      %2179 = vmatpush.bf16.msra.mxu0 %v1894
      %2180 = vmatpush.bf16.msra.mxu0 %v1886
      %2181 = vmatpush.bf16.msra.mxu0 %v1878
      %2182 = vmatpush.bf16.msra.mxu0 %v1870
      %2183 = vmatpush.bf16.msra.mxu0 %v1862
      %2184 = vmatpush.bf16.msra.mxu0 %v1854
      %2185 = vmatpush.bf16.msra.mxu0 %v1846
      %2186 = vmatpush.bf16.msra.mxu0 %v1838
      %2187 = vmatmul.bf16.gmra.mxu0 %v1384
      %v2188 = vpop.f32.mrf.mxu0
      %v2189 = vadd.f32 %v2175, %v2188
      %v2190 = vpop.f32.mrf.mxu0
      %v2191 = vadd.f32 %v2177, %v2190
      %2192 = vdwg.mxu0
      %2193 = vmatpush.bf16.msra.mxu0 %v1831
      %2194 = vmatpush.bf16.msra.mxu0 %v1823
      %2195 = vmatpush.bf16.msra.mxu0 %v1815
      %2196 = vmatpush.bf16.msra.mxu0 %v1807
      %2197 = vmatpush.bf16.msra.mxu0 %v1799
      %2198 = vmatpush.bf16.msra.mxu0 %v1791
      %2199 = vmatpush.bf16.msra.mxu0 %v1783
      %2200 = vmatpush.bf16.msra.mxu0 %v1775
      %2201 = vmatmul.bf16.gmra.mxu0 %v1383
      %v2202 = vpop.f32.mrf.mxu0
      %v2203 = vadd.f32 0.0, %v2202
      %v2204 = vpop.f32.mrf.mxu0
      %v2205 = vadd.f32 0.0, %v2204
      %2206 = vdwg.mxu0
      %2207 = vmatpush.bf16.msra.mxu0 %v1895
      %2208 = vmatpush.bf16.msra.mxu0 %v1887
      %2209 = vmatpush.bf16.msra.mxu0 %v1879
      %2210 = vmatpush.bf16.msra.mxu0 %v1871
      %2211 = vmatpush.bf16.msra.mxu0 %v1863
      %2212 = vmatpush.bf16.msra.mxu0 %v1855
      %2213 = vmatpush.bf16.msra.mxu0 %v1847
      %2214 = vmatpush.bf16.msra.mxu0 %v1839
      %2215 = vmatmul.bf16.gmra.mxu0 %v1384
      %v2216 = vpop.f32.mrf.mxu0
      %v2217 = vadd.f32 %v2203, %v2216
      %v2218 = vpop.f32.mrf.mxu0
      %v2219 = vadd.f32 %v2205, %v2218
      %2220 = vdwg.mxu0
      %2221 = vmatpush.bf16.msra.mxu0 %v1832
      %2222 = vmatpush.bf16.msra.mxu0 %v1824
      %2223 = vmatpush.bf16.msra.mxu0 %v1816
      %2224 = vmatpush.bf16.msra.mxu0 %v1808
      %2225 = vmatpush.bf16.msra.mxu0 %v1800
      %2226 = vmatpush.bf16.msra.mxu0 %v1792
      %2227 = vmatpush.bf16.msra.mxu0 %v1784
      %2228 = vmatpush.bf16.msra.mxu0 %v1776
      %2229 = vmatmul.bf16.gmra.mxu0 %v1383
      %v2230 = vpop.f32.mrf.mxu0
      %v2231 = vadd.f32 0.0, %v2230
      %v2232 = vpop.f32.mrf.mxu0
      %v2233 = vadd.f32 0.0, %v2232
      %2234 = vdwg.mxu0
      %2235 = vmatpush.bf16.msra.mxu0 %v1896
      %2236 = vmatpush.bf16.msra.mxu0 %v1888
      %2237 = vmatpush.bf16.msra.mxu0 %v1880
      %2238 = vmatpush.bf16.msra.mxu0 %v1872
      %2239 = vmatpush.bf16.msra.mxu0 %v1864
      %2240 = vmatpush.bf16.msra.mxu0 %v1856
      %2241 = vmatpush.bf16.msra.mxu0 %v1848
      %2242 = vmatpush.bf16.msra.mxu0 %v1840
      %2243 = vmatmul.bf16.gmra.mxu0 %v1384
      %v2244 = vpop.f32.mrf.mxu0
      %v2245 = vadd.f32 %v2231, %v2244
      %v2246 = vpop.f32.mrf.mxu0
      %v2247 = vadd.f32 %v2233, %v2246
      %2248 = vdwg.mxu0
      %v2249 = vld [vmem:[#allocation2] sm:$0xff]
      %v2250 = vld [vmem:[#allocation2 + $0x8] sm:$0xff]
      %v2251 = vld [vmem:[#allocation2 + $0x10] sm:$0xff]
      %v2252 = vld [vmem:[#allocation2 + $0x18] sm:$0xff]
      %v2253 = vld [vmem:[#allocation2 + $0x20] sm:$0xff]
      %v2254 = vld [vmem:[#allocation2 + $0x28] sm:$0xff]
      %v2255 = vld [vmem:[#allocation2 + $0x30] sm:$0xff]
      %v2256 = vld [vmem:[#allocation2 + $0x38] sm:$0xff]
      %v2257 = vadd.f32 %v2249, %v2049
      %v2258 = vadd.f32 %v2250, %v2077
      %v2259 = vadd.f32 %v2251, %v2105
      %v2260 = vadd.f32 %v2252, %v2133
      %v2261 = vadd.f32 %v2253, %v2051
      %v2262 = vadd.f32 %v2254, %v2079
      %v2263 = vadd.f32 %v2255, %v2107
      %v2264 = vadd.f32 %v2256, %v2135
      %s2265 = scalar_lea.vmem [#allocation3], 192
      %v2266 = vld [vmem:[%s2265] sm:$0xff]
      %v2267 = vld [vmem:[%s2265 + $0x8] sm:$0xff]
      %v2268 = vld [vmem:[%s2265 + $0x10] sm:$0xff]
      %v2269 = vld [vmem:[%s2265 + $0x18] sm:$0xff]
      %v2270 = vld [vmem:[%s2265 + $0x20] sm:$0xff]
      %v2271 = vld [vmem:[%s2265 + $0x28] sm:$0xff]
      %v2272 = vld [vmem:[%s2265 + $0x30] sm:$0xff]
      %v2273 = vld [vmem:[%s2265 + $0x38] sm:$0xff]
      %v2274 = vadd.f32 %v2266, %v2161
      %v2275 = vadd.f32 %v2267, %v2189
      %v2276 = vadd.f32 %v2268, %v2217
      %v2277 = vadd.f32 %v2269, %v2245
      %v2278 = vadd.f32 %v2270, %v2163
      %v2279 = vadd.f32 %v2271, %v2191
      %v2280 = vadd.f32 %v2272, %v2219
      %v2281 = vadd.f32 %v2273, %v2247
      %v2282 = vxor.u32 %v2257, 2147483648
      %v2283 = vxor.u32 %v2261, 2147483648
      %v2284 = vmul.f32 %v2282, 1.442695
      %v2285 = vpow.pop %v2284
      %v2286 = vmul.f32 %v2283, 1.442695
      %v2287 = vpow.pop %v2286
      %v2288 = vadd.f32 %v2285, 1.0
      %v2289 = vadd.f32 %v2287, 1.0
      %v2290 = vrcp.pop %v2288
      %v2291 = vmul.f32 %v2288, %v2290
      %v2292 = vsub.f32 1.0, %v2291
      %v2293 = vmul.f32 %v2290, %v2292
      %v2294 = vadd.f32 %v2290, %v2293
      %vm2295 = vweird.f32 %v2288
      %vm2296 = vweird.f32 %v2290
      %vm2297 = vmor %vm2295, %vm2296
      %v2298 = vsel %vm2297, %v2290, %v2294
      %v2299 = vand.u32 2147483647, %v2288
      %vm2300 = vcmp.eq.f32.partialorder %v2299, 8.507059e+37
      %v2301 = vand.u32 %v2288, 2147483648
      %v2302 = vor.u32 1.1754944e-38, %v2301
      %v2303 = vsel %vm2300, %v2302, %v2298
      %v2304 = vmul.f32 1.0, %v2303
      %v2305 = vrcp.pop %v2289
      %v2306 = vmul.f32 %v2289, %v2305
      %v2307 = vsub.f32 1.0, %v2306
      %v2308 = vmul.f32 %v2305, %v2307
      %v2309 = vadd.f32 %v2305, %v2308
      %vm2310 = vweird.f32 %v2289
      %vm2311 = vweird.f32 %v2305
      %vm2312 = vmor %vm2310, %vm2311
      %v2313 = vsel %vm2312, %v2305, %v2309
      %v2314 = vand.u32 2147483647, %v2289
      %vm2315 = vcmp.eq.f32.partialorder %v2314, 8.507059e+37
      %v2316 = vand.u32 %v2289, 2147483648
      %v2317 = vor.u32 1.1754944e-38, %v2316
      %v2318 = vsel %vm2315, %v2317, %v2313
      %v2319 = vmul.f32 1.0, %v2318
      %v2320 = vxor.u32 %v2258, 2147483648
      %v2321 = vxor.u32 %v2262, 2147483648
      %v2322 = vmul.f32 %v2320, 1.442695
      %v2323 = vpow.pop %v2322
      %v2324 = vmul.f32 %v2321, 1.442695
      %v2325 = vpow.pop %v2324
      %v2326 = vadd.f32 %v2323, 1.0
      %v2327 = vadd.f32 %v2325, 1.0
      %v2328 = vrcp.pop %v2326
      %v2329 = vmul.f32 %v2326, %v2328
      %v2330 = vsub.f32 1.0, %v2329
      %v2331 = vmul.f32 %v2328, %v2330
      %v2332 = vadd.f32 %v2328, %v2331
      %vm2333 = vweird.f32 %v2326
      %vm2334 = vweird.f32 %v2328
      %vm2335 = vmor %vm2333, %vm2334
      %v2336 = vsel %vm2335, %v2328, %v2332
      %v2337 = vand.u32 2147483647, %v2326
      %vm2338 = vcmp.eq.f32.partialorder %v2337, 8.507059e+37
      %v2339 = vand.u32 %v2326, 2147483648
      %v2340 = vor.u32 1.1754944e-38, %v2339
      %v2341 = vsel %vm2338, %v2340, %v2336
      %v2342 = vmul.f32 1.0, %v2341
      %v2343 = vrcp.pop %v2327
      %v2344 = vmul.f32 %v2327, %v2343
      %v2345 = vsub.f32 1.0, %v2344
      %v2346 = vmul.f32 %v2343, %v2345
      %v2347 = vadd.f32 %v2343, %v2346
      %vm2348 = vweird.f32 %v2327
      %vm2349 = vweird.f32 %v2343
      %vm2350 = vmor %vm2348, %vm2349
      %v2351 = vsel %vm2350, %v2343, %v2347
      %v2352 = vand.u32 2147483647, %v2327
      %vm2353 = vcmp.eq.f32.partialorder %v2352, 8.507059e+37
      %v2354 = vand.u32 %v2327, 2147483648
      %v2355 = vor.u32 1.1754944e-38, %v2354
      %v2356 = vsel %vm2353, %v2355, %v2351
      %v2357 = vmul.f32 1.0, %v2356
      %v2358 = vtanh.pop %v2259
      %v2359 = vtanh.pop %v2263
      %v2360 = vxor.u32 %v2260, 2147483648
      %v2361 = vxor.u32 %v2264, 2147483648
      %v2362 = vmul.f32 %v2360, 1.442695
      %v2363 = vpow.pop %v2362
      %v2364 = vmul.f32 %v2361, 1.442695
      %v2365 = vpow.pop %v2364
      %v2366 = vadd.f32 %v2363, 1.0
      %v2367 = vadd.f32 %v2365, 1.0
      %v2368 = vrcp.pop %v2366
      %v2369 = vmul.f32 %v2366, %v2368
      %v2370 = vsub.f32 1.0, %v2369
      %v2371 = vmul.f32 %v2368, %v2370
      %v2372 = vadd.f32 %v2368, %v2371
      %vm2373 = vweird.f32 %v2366
      %vm2374 = vweird.f32 %v2368
      %vm2375 = vmor %vm2373, %vm2374
      %v2376 = vsel %vm2375, %v2368, %v2372
      %v2377 = vand.u32 2147483647, %v2366
      %vm2378 = vcmp.eq.f32.partialorder %v2377, 8.507059e+37
      %v2379 = vand.u32 %v2366, 2147483648
      %v2380 = vor.u32 1.1754944e-38, %v2379
      %v2381 = vsel %vm2378, %v2380, %v2376
      %v2382 = vmul.f32 1.0, %v2381
      %v2383 = vrcp.pop %v2367
      %v2384 = vmul.f32 %v2367, %v2383
      %v2385 = vsub.f32 1.0, %v2384
      %v2386 = vmul.f32 %v2383, %v2385
      %v2387 = vadd.f32 %v2383, %v2386
      %vm2388 = vweird.f32 %v2367
      %vm2389 = vweird.f32 %v2383
      %vm2390 = vmor %vm2388, %vm2389
      %v2391 = vsel %vm2390, %v2383, %v2387
      %v2392 = vand.u32 2147483647, %v2367
      %vm2393 = vcmp.eq.f32.partialorder %v2392, 8.507059e+37
      %v2394 = vand.u32 %v2367, 2147483648
      %v2395 = vor.u32 1.1754944e-38, %v2394
      %v2396 = vsel %vm2393, %v2395, %v2391
      %v2397 = vmul.f32 1.0, %v2396
      %v2398 = vmul.f32 %v2342, %v1375
      %v2399 = vmul.f32 %v2357, %v1377
      %v2400 = vmul.f32 %v2304, %v2358
      %v2401 = vmul.f32 %v2319, %v2359
      %v2402 = vadd.f32 %v2398, %v2400
      %v2403 = vadd.f32 %v2399, %v2401
      %v2404 = vtanh.pop %v2402
      %v2405 = vtanh.pop %v2403
      %v2406 = vmul.f32 %v2382, %v2404
      %v2407 = vmul.f32 %v2397, %v2405
      %v2408 = vxor.u32 %v2274, 2147483648
      %v2409 = vxor.u32 %v2278, 2147483648
      %v2410 = vmul.f32 %v2408, 1.442695
      %v2411 = vpow.pop %v2410
      %v2412 = vmul.f32 %v2409, 1.442695
      %v2413 = vpow.pop %v2412
      %v2414 = vadd.f32 %v2411, 1.0
      %v2415 = vadd.f32 %v2413, 1.0
      %v2416 = vrcp.pop %v2414
      %v2417 = vmul.f32 %v2414, %v2416
      %v2418 = vsub.f32 1.0, %v2417
      %v2419 = vmul.f32 %v2416, %v2418
      %v2420 = vadd.f32 %v2416, %v2419
      %vm2421 = vweird.f32 %v2414
      %vm2422 = vweird.f32 %v2416
      %vm2423 = vmor %vm2421, %vm2422
      %v2424 = vsel %vm2423, %v2416, %v2420
      %v2425 = vand.u32 2147483647, %v2414
      %vm2426 = vcmp.eq.f32.partialorder %v2425, 8.507059e+37
      %v2427 = vand.u32 %v2414, 2147483648
      %v2428 = vor.u32 1.1754944e-38, %v2427
      %v2429 = vsel %vm2426, %v2428, %v2424
      %v2430 = vmul.f32 1.0, %v2429
      %v2431 = vrcp.pop %v2415
      %v2432 = vmul.f32 %v2415, %v2431
      %v2433 = vsub.f32 1.0, %v2432
      %v2434 = vmul.f32 %v2431, %v2433
      %v2435 = vadd.f32 %v2431, %v2434
      %vm2436 = vweird.f32 %v2415
      %vm2437 = vweird.f32 %v2431
      %vm2438 = vmor %vm2436, %vm2437
      %v2439 = vsel %vm2438, %v2431, %v2435
      %v2440 = vand.u32 2147483647, %v2415
      %vm2441 = vcmp.eq.f32.partialorder %v2440, 8.507059e+37
      %v2442 = vand.u32 %v2415, 2147483648
      %v2443 = vor.u32 1.1754944e-38, %v2442
      %v2444 = vsel %vm2441, %v2443, %v2439
      %v2445 = vmul.f32 1.0, %v2444
      %v2446 = vxor.u32 %v2275, 2147483648
      %v2447 = vxor.u32 %v2279, 2147483648
      %v2448 = vmul.f32 %v2446, 1.442695
      %v2449 = vpow.pop %v2448
      %v2450 = vmul.f32 %v2447, 1.442695
      %v2451 = vpow.pop %v2450
      %v2452 = vadd.f32 %v2449, 1.0
      %v2453 = vadd.f32 %v2451, 1.0
      %v2454 = vrcp.pop %v2452
      %v2455 = vmul.f32 %v2452, %v2454
      %v2456 = vsub.f32 1.0, %v2455
      %v2457 = vmul.f32 %v2454, %v2456
      %v2458 = vadd.f32 %v2454, %v2457
      %vm2459 = vweird.f32 %v2452
      %vm2460 = vweird.f32 %v2454
      %vm2461 = vmor %vm2459, %vm2460
      %v2462 = vsel %vm2461, %v2454, %v2458
      %v2463 = vand.u32 2147483647, %v2452
      %vm2464 = vcmp.eq.f32.partialorder %v2463, 8.507059e+37
      %v2465 = vand.u32 %v2452, 2147483648
      %v2466 = vor.u32 1.1754944e-38, %v2465
      %v2467 = vsel %vm2464, %v2466, %v2462
      %v2468 = vmul.f32 1.0, %v2467
      %v2469 = vrcp.pop %v2453
      %v2470 = vmul.f32 %v2453, %v2469
      %v2471 = vsub.f32 1.0, %v2470
      %v2472 = vmul.f32 %v2469, %v2471
      %v2473 = vadd.f32 %v2469, %v2472
      %vm2474 = vweird.f32 %v2453
      %vm2475 = vweird.f32 %v2469
      %vm2476 = vmor %vm2474, %vm2475
      %v2477 = vsel %vm2476, %v2469, %v2473
      %v2478 = vand.u32 2147483647, %v2453
      %vm2479 = vcmp.eq.f32.partialorder %v2478, 8.507059e+37
      %v2480 = vand.u32 %v2453, 2147483648
      %v2481 = vor.u32 1.1754944e-38, %v2480
      %v2482 = vsel %vm2479, %v2481, %v2477
      %v2483 = vmul.f32 1.0, %v2482
      %v2484 = vtanh.pop %v2276
      %v2485 = vtanh.pop %v2280
      %v2486 = vxor.u32 %v2277, 2147483648
      %v2487 = vxor.u32 %v2281, 2147483648
      %v2488 = vmul.f32 %v2486, 1.442695
      %v2489 = vpow.pop %v2488
      %v2490 = vmul.f32 %v2487, 1.442695
      %v2491 = vpow.pop %v2490
      %v2492 = vadd.f32 %v2489, 1.0
      %v2493 = vadd.f32 %v2491, 1.0
      %v2494 = vrcp.pop %v2492
      %v2495 = vmul.f32 %v2492, %v2494
      %v2496 = vsub.f32 1.0, %v2495
      %v2497 = vmul.f32 %v2494, %v2496
      %v2498 = vadd.f32 %v2494, %v2497
      %vm2499 = vweird.f32 %v2492
      %vm2500 = vweird.f32 %v2494
      %vm2501 = vmor %vm2499, %vm2500
      %v2502 = vsel %vm2501, %v2494, %v2498
      %v2503 = vand.u32 2147483647, %v2492
      %vm2504 = vcmp.eq.f32.partialorder %v2503, 8.507059e+37
      %v2505 = vand.u32 %v2492, 2147483648
      %v2506 = vor.u32 1.1754944e-38, %v2505
      %v2507 = vsel %vm2504, %v2506, %v2502
      %v2508 = vmul.f32 1.0, %v2507
      %v2509 = vrcp.pop %v2493
      %v2510 = vmul.f32 %v2493, %v2509
      %v2511 = vsub.f32 1.0, %v2510
      %v2512 = vmul.f32 %v2509, %v2511
      %v2513 = vadd.f32 %v2509, %v2512
      %vm2514 = vweird.f32 %v2493
      %vm2515 = vweird.f32 %v2509
      %vm2516 = vmor %vm2514, %vm2515
      %v2517 = vsel %vm2516, %v2509, %v2513
      %v2518 = vand.u32 2147483647, %v2493
      %vm2519 = vcmp.eq.f32.partialorder %v2518, 8.507059e+37
      %v2520 = vand.u32 %v2493, 2147483648
      %v2521 = vor.u32 1.1754944e-38, %v2520
      %v2522 = vsel %vm2519, %v2521, %v2517
      %v2523 = vmul.f32 1.0, %v2522
      %v2524 = vmul.f32 %v2468, %v1376
      %v2525 = vmul.f32 %v2483, %v1378
      %v2526 = vmul.f32 %v2430, %v2484
      %v2527 = vmul.f32 %v2445, %v2485
      %v2528 = vadd.f32 %v2524, %v2526
      %v2529 = vadd.f32 %v2525, %v2527
      %v2530 = vtanh.pop %v2528
      %v2531 = vtanh.pop %v2529
      %v2532 = vmul.f32 %v2508, %v2530
      %v2533 = vmul.f32 %v2523, %v2531
      %v2534 = vmax.f32 %v1379, %v2406
      %v2535 = vmax.f32 %v1380, %v2532
      %v2536 = vmax.f32 %v1381, %v2407
      %v2537 = vmax.f32 %v1382, %v2533
      %v2538 = vpack.c.bf16 %v2407, %v2406
      %v2539 = vpack.c.bf16 %v2533, %v2532
      %2540 = vmatpush.bf16.msra.mxu0 %v1825
      %2541 = vmatpush.bf16.msra.mxu0 %v1817
      %2542 = vmatpush.bf16.msra.mxu0 %v1809
      %2543 = vmatpush.bf16.msra.mxu0 %v1801
      %2544 = vmatpush.bf16.msra.mxu0 %v1793
      %2545 = vmatpush.bf16.msra.mxu0 %v1785
      %2546 = vmatpush.bf16.msra.mxu0 %v1777
      %2547 = vmatpush.bf16.msra.mxu0 %v1769
      %2548 = vmatmul.bf16.gmra.mxu0 %v2538
      %v2549 = vpop.f32.mrf.mxu0
      %v2550 = vadd.f32 0.0, %v2549
      %v2551 = vpop.f32.mrf.mxu0
      %v2552 = vadd.f32 0.0, %v2551
      %2553 = vdwg.mxu0
      %2554 = vmatpush.bf16.msra.mxu0 %v1889
      %2555 = vmatpush.bf16.msra.mxu0 %v1881
      %2556 = vmatpush.bf16.msra.mxu0 %v1873
      %2557 = vmatpush.bf16.msra.mxu0 %v1865
      %2558 = vmatpush.bf16.msra.mxu0 %v1857
      %2559 = vmatpush.bf16.msra.mxu0 %v1849
      %2560 = vmatpush.bf16.msra.mxu0 %v1841
      %2561 = vmatpush.bf16.msra.mxu0 %v1833
      %2562 = vmatmul.bf16.gmra.mxu0 %v2539
      %v2563 = vpop.f32.mrf.mxu0
      %v2564 = vadd.f32 %v2550, %v2563
      %v2565 = vpop.f32.mrf.mxu0
      %v2566 = vadd.f32 %v2552, %v2565
      %2567 = vdwg.mxu0
      %2568 = vmatpush.bf16.msra.mxu0 %v1826
      %2569 = vmatpush.bf16.msra.mxu0 %v1818
      %2570 = vmatpush.bf16.msra.mxu0 %v1810
      %2571 = vmatpush.bf16.msra.mxu0 %v1802
      %2572 = vmatpush.bf16.msra.mxu0 %v1794
      %2573 = vmatpush.bf16.msra.mxu0 %v1786
      %2574 = vmatpush.bf16.msra.mxu0 %v1778
      %2575 = vmatpush.bf16.msra.mxu0 %v1770
      %2576 = vmatmul.bf16.gmra.mxu0 %v2538
      %v2577 = vpop.f32.mrf.mxu0
      %v2578 = vadd.f32 0.0, %v2577
      %v2579 = vpop.f32.mrf.mxu0
      %v2580 = vadd.f32 0.0, %v2579
      %2581 = vdwg.mxu0
      %2582 = vmatpush.bf16.msra.mxu0 %v1890
      %2583 = vmatpush.bf16.msra.mxu0 %v1882
      %2584 = vmatpush.bf16.msra.mxu0 %v1874
      %2585 = vmatpush.bf16.msra.mxu0 %v1866
      %2586 = vmatpush.bf16.msra.mxu0 %v1858
      %2587 = vmatpush.bf16.msra.mxu0 %v1850
      %2588 = vmatpush.bf16.msra.mxu0 %v1842
      %2589 = vmatpush.bf16.msra.mxu0 %v1834
      %2590 = vmatmul.bf16.gmra.mxu0 %v2539
      %v2591 = vpop.f32.mrf.mxu0
      %v2592 = vadd.f32 %v2578, %v2591
      %v2593 = vpop.f32.mrf.mxu0
      %v2594 = vadd.f32 %v2580, %v2593
      %2595 = vdwg.mxu0
      %2596 = vmatpush.bf16.msra.mxu0 %v1827
      %2597 = vmatpush.bf16.msra.mxu0 %v1819
      %2598 = vmatpush.bf16.msra.mxu0 %v1811
      %2599 = vmatpush.bf16.msra.mxu0 %v1803
      %2600 = vmatpush.bf16.msra.mxu0 %v1795
      %2601 = vmatpush.bf16.msra.mxu0 %v1787
      %2602 = vmatpush.bf16.msra.mxu0 %v1779
      %2603 = vmatpush.bf16.msra.mxu0 %v1771
      %2604 = vmatmul.bf16.gmra.mxu0 %v2538
      %v2605 = vpop.f32.mrf.mxu0
      %v2606 = vadd.f32 0.0, %v2605
      %v2607 = vpop.f32.mrf.mxu0
      %v2608 = vadd.f32 0.0, %v2607
      %2609 = vdwg.mxu0
      %2610 = vmatpush.bf16.msra.mxu0 %v1891
      %2611 = vmatpush.bf16.msra.mxu0 %v1883
      %2612 = vmatpush.bf16.msra.mxu0 %v1875
      %2613 = vmatpush.bf16.msra.mxu0 %v1867
      %2614 = vmatpush.bf16.msra.mxu0 %v1859
      %2615 = vmatpush.bf16.msra.mxu0 %v1851
      %2616 = vmatpush.bf16.msra.mxu0 %v1843
      %2617 = vmatpush.bf16.msra.mxu0 %v1835
      %2618 = vmatmul.bf16.gmra.mxu0 %v2539
      %v2619 = vpop.f32.mrf.mxu0
      %v2620 = vadd.f32 %v2606, %v2619
      %v2621 = vpop.f32.mrf.mxu0
      %v2622 = vadd.f32 %v2608, %v2621
      %2623 = vdwg.mxu0
      %2624 = vmatpush.bf16.msra.mxu0 %v1828
      %2625 = vmatpush.bf16.msra.mxu0 %v1820
      %2626 = vmatpush.bf16.msra.mxu0 %v1812
      %2627 = vmatpush.bf16.msra.mxu0 %v1804
      %2628 = vmatpush.bf16.msra.mxu0 %v1796
      %2629 = vmatpush.bf16.msra.mxu0 %v1788
      %2630 = vmatpush.bf16.msra.mxu0 %v1780
      %2631 = vmatpush.bf16.msra.mxu0 %v1772
      %2632 = vmatmul.bf16.gmra.mxu0 %v2538
      %v2633 = vpop.f32.mrf.mxu0
      %v2634 = vadd.f32 0.0, %v2633
      %v2635 = vpop.f32.mrf.mxu0
      %v2636 = vadd.f32 0.0, %v2635
      %2637 = vdwg.mxu0
      %2638 = vmatpush.bf16.msra.mxu0 %v1892
      %2639 = vmatpush.bf16.msra.mxu0 %v1884
      %2640 = vmatpush.bf16.msra.mxu0 %v1876
      %2641 = vmatpush.bf16.msra.mxu0 %v1868
      %2642 = vmatpush.bf16.msra.mxu0 %v1860
      %2643 = vmatpush.bf16.msra.mxu0 %v1852
      %2644 = vmatpush.bf16.msra.mxu0 %v1844
      %2645 = vmatpush.bf16.msra.mxu0 %v1836
      %2646 = vmatmul.bf16.gmra.mxu0 %v2539
      %v2647 = vpop.f32.mrf.mxu0
      %v2648 = vadd.f32 %v2634, %v2647
      %v2649 = vpop.f32.mrf.mxu0
      %v2650 = vadd.f32 %v2636, %v2649
      %2651 = vdwg.mxu0
      %2652 = vmatpush.bf16.msra.mxu0 %v1829
      %2653 = vmatpush.bf16.msra.mxu0 %v1821
      %2654 = vmatpush.bf16.msra.mxu0 %v1813
      %2655 = vmatpush.bf16.msra.mxu0 %v1805
      %2656 = vmatpush.bf16.msra.mxu0 %v1797
      %2657 = vmatpush.bf16.msra.mxu0 %v1789
      %2658 = vmatpush.bf16.msra.mxu0 %v1781
      %2659 = vmatpush.bf16.msra.mxu0 %v1773
      %2660 = vmatmul.bf16.gmra.mxu0 %v2538
      %v2661 = vpop.f32.mrf.mxu0
      %v2662 = vadd.f32 0.0, %v2661
      %v2663 = vpop.f32.mrf.mxu0
      %v2664 = vadd.f32 0.0, %v2663
      %2665 = vdwg.mxu0
      %2666 = vmatpush.bf16.msra.mxu0 %v1893
      %2667 = vmatpush.bf16.msra.mxu0 %v1885
      %2668 = vmatpush.bf16.msra.mxu0 %v1877
      %2669 = vmatpush.bf16.msra.mxu0 %v1869
      %2670 = vmatpush.bf16.msra.mxu0 %v1861
      %2671 = vmatpush.bf16.msra.mxu0 %v1853
      %2672 = vmatpush.bf16.msra.mxu0 %v1845
      %2673 = vmatpush.bf16.msra.mxu0 %v1837
      %2674 = vmatmul.bf16.gmra.mxu0 %v2539
      %v2675 = vpop.f32.mrf.mxu0
      %v2676 = vadd.f32 %v2662, %v2675
      %v2677 = vpop.f32.mrf.mxu0
      %v2678 = vadd.f32 %v2664, %v2677
      %2679 = vdwg.mxu0
      %2680 = vmatpush.bf16.msra.mxu0 %v1830
      %2681 = vmatpush.bf16.msra.mxu0 %v1822
      %2682 = vmatpush.bf16.msra.mxu0 %v1814
      %2683 = vmatpush.bf16.msra.mxu0 %v1806
      %2684 = vmatpush.bf16.msra.mxu0 %v1798
      %2685 = vmatpush.bf16.msra.mxu0 %v1790
      %2686 = vmatpush.bf16.msra.mxu0 %v1782
      %2687 = vmatpush.bf16.msra.mxu0 %v1774
      %2688 = vmatmul.bf16.gmra.mxu0 %v2538
      %v2689 = vpop.f32.mrf.mxu0
      %v2690 = vadd.f32 0.0, %v2689
      %v2691 = vpop.f32.mrf.mxu0
      %v2692 = vadd.f32 0.0, %v2691
      %2693 = vdwg.mxu0
      %2694 = vmatpush.bf16.msra.mxu0 %v1894
      %2695 = vmatpush.bf16.msra.mxu0 %v1886
      %2696 = vmatpush.bf16.msra.mxu0 %v1878
      %2697 = vmatpush.bf16.msra.mxu0 %v1870
      %2698 = vmatpush.bf16.msra.mxu0 %v1862
      %2699 = vmatpush.bf16.msra.mxu0 %v1854
      %2700 = vmatpush.bf16.msra.mxu0 %v1846
      %2701 = vmatpush.bf16.msra.mxu0 %v1838
      %2702 = vmatmul.bf16.gmra.mxu0 %v2539
      %v2703 = vpop.f32.mrf.mxu0
      %v2704 = vadd.f32 %v2690, %v2703
      %v2705 = vpop.f32.mrf.mxu0
      %v2706 = vadd.f32 %v2692, %v2705
      %2707 = vdwg.mxu0
      %2708 = vmatpush.bf16.msra.mxu0 %v1831
      %2709 = vmatpush.bf16.msra.mxu0 %v1823
      %2710 = vmatpush.bf16.msra.mxu0 %v1815
      %2711 = vmatpush.bf16.msra.mxu0 %v1807
      %2712 = vmatpush.bf16.msra.mxu0 %v1799
      %2713 = vmatpush.bf16.msra.mxu0 %v1791
      %2714 = vmatpush.bf16.msra.mxu0 %v1783
      %2715 = vmatpush.bf16.msra.mxu0 %v1775
      %2716 = vmatmul.bf16.gmra.mxu0 %v2538
      %v2717 = vpop.f32.mrf.mxu0
      %v2718 = vadd.f32 0.0, %v2717
      %v2719 = vpop.f32.mrf.mxu0
      %v2720 = vadd.f32 0.0, %v2719
      %2721 = vdwg.mxu0
      %2722 = vmatpush.bf16.msra.mxu0 %v1895
      %2723 = vmatpush.bf16.msra.mxu0 %v1887
      %2724 = vmatpush.bf16.msra.mxu0 %v1879
      %2725 = vmatpush.bf16.msra.mxu0 %v1871
      %2726 = vmatpush.bf16.msra.mxu0 %v1863
      %2727 = vmatpush.bf16.msra.mxu0 %v1855
      %2728 = vmatpush.bf16.msra.mxu0 %v1847
      %2729 = vmatpush.bf16.msra.mxu0 %v1839
      %2730 = vmatmul.bf16.gmra.mxu0 %v2539
      %v2731 = vpop.f32.mrf.mxu0
      %v2732 = vadd.f32 %v2718, %v2731
      %v2733 = vpop.f32.mrf.mxu0
      %v2734 = vadd.f32 %v2720, %v2733
      %2735 = vdwg.mxu0
      %2736 = vmatpush.bf16.msra.mxu0 %v1832
      %2737 = vmatpush.bf16.msra.mxu0 %v1824
      %2738 = vmatpush.bf16.msra.mxu0 %v1816
      %2739 = vmatpush.bf16.msra.mxu0 %v1808
      %2740 = vmatpush.bf16.msra.mxu0 %v1800
      %2741 = vmatpush.bf16.msra.mxu0 %v1792
      %2742 = vmatpush.bf16.msra.mxu0 %v1784
      %2743 = vmatpush.bf16.msra.mxu0 %v1776
      %2744 = vmatmul.bf16.gmra.mxu0 %v2538
      %v2745 = vpop.f32.mrf.mxu0
      %v2746 = vadd.f32 0.0, %v2745
      %v2747 = vpop.f32.mrf.mxu0
      %v2748 = vadd.f32 0.0, %v2747
      %2749 = vdwg.mxu0
      %2750 = vmatpush.bf16.msra.mxu0 %v1896
      %2751 = vmatpush.bf16.msra.mxu0 %v1888
      %2752 = vmatpush.bf16.msra.mxu0 %v1880
      %2753 = vmatpush.bf16.msra.mxu0 %v1872
      %2754 = vmatpush.bf16.msra.mxu0 %v1864
      %2755 = vmatpush.bf16.msra.mxu0 %v1856
      %2756 = vmatpush.bf16.msra.mxu0 %v1848
      %2757 = vmatpush.bf16.msra.mxu0 %v1840
      %2758 = vmatmul.bf16.gmra.mxu0 %v2539
      %v2759 = vpop.f32.mrf.mxu0
      %v2760 = vadd.f32 %v2746, %v2759
      %v2761 = vpop.f32.mrf.mxu0
      %v2762 = vadd.f32 %v2748, %v2761
      %2763 = vdwg.mxu0
      %s2764 = scalar_lea.vmem [#allocation2], 64
      %v2765 = vld [vmem:[%s2764] sm:$0xff]
      %v2766 = vld [vmem:[%s2764 + $0x8] sm:$0xff]
      %v2767 = vld [vmem:[%s2764 + $0x10] sm:$0xff]
      %v2768 = vld [vmem:[%s2764 + $0x18] sm:$0xff]
      %v2769 = vld [vmem:[%s2764 + $0x20] sm:$0xff]
      %v2770 = vld [vmem:[%s2764 + $0x28] sm:$0xff]
      %v2771 = vld [vmem:[%s2764 + $0x30] sm:$0xff]
      %v2772 = vld [vmem:[%s2764 + $0x38] sm:$0xff]
      %v2773 = vadd.f32 %v2765, %v2564
      %v2774 = vadd.f32 %v2766, %v2592
      %v2775 = vadd.f32 %v2767, %v2620
      %v2776 = vadd.f32 %v2768, %v2648
      %v2777 = vadd.f32 %v2769, %v2566
      %v2778 = vadd.f32 %v2770, %v2594
      %v2779 = vadd.f32 %v2771, %v2622
      %v2780 = vadd.f32 %v2772, %v2650
      %s2781 = scalar_lea.vmem [#allocation3], 128
      %v2782 = vld [vmem:[%s2781] sm:$0xff]
      %v2783 = vld [vmem:[%s2781 + $0x8] sm:$0xff]
      %v2784 = vld [vmem:[%s2781 + $0x10] sm:$0xff]
      %v2785 = vld [vmem:[%s2781 + $0x18] sm:$0xff]
      %v2786 = vld [vmem:[%s2781 + $0x20] sm:$0xff]
      %v2787 = vld [vmem:[%s2781 + $0x28] sm:$0xff]
      %v2788 = vld [vmem:[%s2781 + $0x30] sm:$0xff]
      %v2789 = vld [vmem:[%s2781 + $0x38] sm:$0xff]
      %v2790 = vadd.f32 %v2782, %v2676
      %v2791 = vadd.f32 %v2783, %v2704
      %v2792 = vadd.f32 %v2784, %v2732
      %v2793 = vadd.f32 %v2785, %v2760
      %v2794 = vadd.f32 %v2786, %v2678
      %v2795 = vadd.f32 %v2787, %v2706
      %v2796 = vadd.f32 %v2788, %v2734
      %v2797 = vadd.f32 %v2789, %v2762
      %v2798 = vxor.u32 %v2773, 2147483648
      %v2799 = vxor.u32 %v2777, 2147483648
      %v2800 = vmul.f32 %v2798, 1.442695
      %v2801 = vpow.pop %v2800
      %v2802 = vmul.f32 %v2799, 1.442695
      %v2803 = vpow.pop %v2802
      %v2804 = vadd.f32 %v2801, 1.0
      %v2805 = vadd.f32 %v2803, 1.0
      %v2806 = vrcp.pop %v2804
      %v2807 = vmul.f32 %v2804, %v2806
      %v2808 = vsub.f32 1.0, %v2807
      %v2809 = vmul.f32 %v2806, %v2808
      %v2810 = vadd.f32 %v2806, %v2809
      %vm2811 = vweird.f32 %v2804
      %vm2812 = vweird.f32 %v2806
      %vm2813 = vmor %vm2811, %vm2812
      %v2814 = vsel %vm2813, %v2806, %v2810
      %v2815 = vand.u32 2147483647, %v2804
      %vm2816 = vcmp.eq.f32.partialorder %v2815, 8.507059e+37
      %v2817 = vand.u32 %v2804, 2147483648
      %v2818 = vor.u32 1.1754944e-38, %v2817
      %v2819 = vsel %vm2816, %v2818, %v2814
      %v2820 = vmul.f32 1.0, %v2819
      %v2821 = vrcp.pop %v2805
      %v2822 = vmul.f32 %v2805, %v2821
      %v2823 = vsub.f32 1.0, %v2822
      %v2824 = vmul.f32 %v2821, %v2823
      %v2825 = vadd.f32 %v2821, %v2824
      %vm2826 = vweird.f32 %v2805
      %vm2827 = vweird.f32 %v2821
      %vm2828 = vmor %vm2826, %vm2827
      %v2829 = vsel %vm2828, %v2821, %v2825
      %v2830 = vand.u32 2147483647, %v2805
      %vm2831 = vcmp.eq.f32.partialorder %v2830, 8.507059e+37
      %v2832 = vand.u32 %v2805, 2147483648
      %v2833 = vor.u32 1.1754944e-38, %v2832
      %v2834 = vsel %vm2831, %v2833, %v2829
      %v2835 = vmul.f32 1.0, %v2834
      %v2836 = vxor.u32 %v2774, 2147483648
      %v2837 = vxor.u32 %v2778, 2147483648
      %v2838 = vmul.f32 %v2836, 1.442695
      %v2839 = vpow.pop %v2838
      %v2840 = vmul.f32 %v2837, 1.442695
      %v2841 = vpow.pop %v2840
      %v2842 = vadd.f32 %v2839, 1.0
      %v2843 = vadd.f32 %v2841, 1.0
      %v2844 = vrcp.pop %v2842
      %v2845 = vmul.f32 %v2842, %v2844
      %v2846 = vsub.f32 1.0, %v2845
      %v2847 = vmul.f32 %v2844, %v2846
      %v2848 = vadd.f32 %v2844, %v2847
      %vm2849 = vweird.f32 %v2842
      %vm2850 = vweird.f32 %v2844
      %vm2851 = vmor %vm2849, %vm2850
      %v2852 = vsel %vm2851, %v2844, %v2848
      %v2853 = vand.u32 2147483647, %v2842
      %vm2854 = vcmp.eq.f32.partialorder %v2853, 8.507059e+37
      %v2855 = vand.u32 %v2842, 2147483648
      %v2856 = vor.u32 1.1754944e-38, %v2855
      %v2857 = vsel %vm2854, %v2856, %v2852
      %v2858 = vmul.f32 1.0, %v2857
      %v2859 = vrcp.pop %v2843
      %v2860 = vmul.f32 %v2843, %v2859
      %v2861 = vsub.f32 1.0, %v2860
      %v2862 = vmul.f32 %v2859, %v2861
      %v2863 = vadd.f32 %v2859, %v2862
      %vm2864 = vweird.f32 %v2843
      %vm2865 = vweird.f32 %v2859
      %vm2866 = vmor %vm2864, %vm2865
      %v2867 = vsel %vm2866, %v2859, %v2863
      %v2868 = vand.u32 2147483647, %v2843
      %vm2869 = vcmp.eq.f32.partialorder %v2868, 8.507059e+37
      %v2870 = vand.u32 %v2843, 2147483648
      %v2871 = vor.u32 1.1754944e-38, %v2870
      %v2872 = vsel %vm2869, %v2871, %v2867
      %v2873 = vmul.f32 1.0, %v2872
      %v2874 = vtanh.pop %v2775
      %v2875 = vtanh.pop %v2779
      %v2876 = vxor.u32 %v2776, 2147483648
      %v2877 = vxor.u32 %v2780, 2147483648
      %v2878 = vmul.f32 %v2876, 1.442695
      %v2879 = vpow.pop %v2878
      %v2880 = vmul.f32 %v2877, 1.442695
      %v2881 = vpow.pop %v2880
      %v2882 = vadd.f32 %v2879, 1.0
      %v2883 = vadd.f32 %v2881, 1.0
      %v2884 = vrcp.pop %v2882
      %v2885 = vmul.f32 %v2882, %v2884
      %v2886 = vsub.f32 1.0, %v2885
      %v2887 = vmul.f32 %v2884, %v2886
      %v2888 = vadd.f32 %v2884, %v2887
      %vm2889 = vweird.f32 %v2882
      %vm2890 = vweird.f32 %v2884
      %vm2891 = vmor %vm2889, %vm2890
      %v2892 = vsel %vm2891, %v2884, %v2888
      %v2893 = vand.u32 2147483647, %v2882
      %vm2894 = vcmp.eq.f32.partialorder %v2893, 8.507059e+37
      %v2895 = vand.u32 %v2882, 2147483648
      %v2896 = vor.u32 1.1754944e-38, %v2895
      %v2897 = vsel %vm2894, %v2896, %v2892
      %v2898 = vmul.f32 1.0, %v2897
      %v2899 = vrcp.pop %v2883
      %v2900 = vmul.f32 %v2883, %v2899
      %v2901 = vsub.f32 1.0, %v2900
      %v2902 = vmul.f32 %v2899, %v2901
      %v2903 = vadd.f32 %v2899, %v2902
      %vm2904 = vweird.f32 %v2883
      %vm2905 = vweird.f32 %v2899
      %vm2906 = vmor %vm2904, %vm2905
      %v2907 = vsel %vm2906, %v2899, %v2903
      %v2908 = vand.u32 2147483647, %v2883
      %vm2909 = vcmp.eq.f32.partialorder %v2908, 8.507059e+37
      %v2910 = vand.u32 %v2883, 2147483648
      %v2911 = vor.u32 1.1754944e-38, %v2910
      %v2912 = vsel %vm2909, %v2911, %v2907
      %v2913 = vmul.f32 1.0, %v2912
      %v2914 = vmul.f32 %v2858, %v2402
      %v2915 = vmul.f32 %v2873, %v2403
      %v2916 = vmul.f32 %v2820, %v2874
      %v2917 = vmul.f32 %v2835, %v2875
      %v2918 = vadd.f32 %v2914, %v2916
      %v2919 = vadd.f32 %v2915, %v2917
      %v2920 = vtanh.pop %v2918
      %v2921 = vtanh.pop %v2919
      %v2922 = vmul.f32 %v2898, %v2920
      %v2923 = vmul.f32 %v2913, %v2921
      %v2924 = vxor.u32 %v2790, 2147483648
      %v2925 = vxor.u32 %v2794, 2147483648
      %v2926 = vmul.f32 %v2924, 1.442695
      %v2927 = vpow.pop %v2926
      %v2928 = vmul.f32 %v2925, 1.442695
      %v2929 = vpow.pop %v2928
      %v2930 = vadd.f32 %v2927, 1.0
      %v2931 = vadd.f32 %v2929, 1.0
      %v2932 = vrcp.pop %v2930
      %v2933 = vmul.f32 %v2930, %v2932
      %v2934 = vsub.f32 1.0, %v2933
      %v2935 = vmul.f32 %v2932, %v2934
      %v2936 = vadd.f32 %v2932, %v2935
      %vm2937 = vweird.f32 %v2930
      %vm2938 = vweird.f32 %v2932
      %vm2939 = vmor %vm2937, %vm2938
      %v2940 = vsel %vm2939, %v2932, %v2936
      %v2941 = vand.u32 2147483647, %v2930
      %vm2942 = vcmp.eq.f32.partialorder %v2941, 8.507059e+37
      %v2943 = vand.u32 %v2930, 2147483648
      %v2944 = vor.u32 1.1754944e-38, %v2943
      %v2945 = vsel %vm2942, %v2944, %v2940
      %v2946 = vmul.f32 1.0, %v2945
      %v2947 = vrcp.pop %v2931
      %v2948 = vmul.f32 %v2931, %v2947
      %v2949 = vsub.f32 1.0, %v2948
      %v2950 = vmul.f32 %v2947, %v2949
      %v2951 = vadd.f32 %v2947, %v2950
      %vm2952 = vweird.f32 %v2931
      %vm2953 = vweird.f32 %v2947
      %vm2954 = vmor %vm2952, %vm2953
      %v2955 = vsel %vm2954, %v2947, %v2951
      %v2956 = vand.u32 2147483647, %v2931
      %vm2957 = vcmp.eq.f32.partialorder %v2956, 8.507059e+37
      %v2958 = vand.u32 %v2931, 2147483648
      %v2959 = vor.u32 1.1754944e-38, %v2958
      %v2960 = vsel %vm2957, %v2959, %v2955
      %v2961 = vmul.f32 1.0, %v2960
      %v2962 = vxor.u32 %v2791, 2147483648
      %v2963 = vxor.u32 %v2795, 2147483648
      %v2964 = vmul.f32 %v2962, 1.442695
      %v2965 = vpow.pop %v2964
      %v2966 = vmul.f32 %v2963, 1.442695
      %v2967 = vpow.pop %v2966
      %v2968 = vadd.f32 %v2965, 1.0
      %v2969 = vadd.f32 %v2967, 1.0
      %v2970 = vrcp.pop %v2968
      %v2971 = vmul.f32 %v2968, %v2970
      %v2972 = vsub.f32 1.0, %v2971
      %v2973 = vmul.f32 %v2970, %v2972
      %v2974 = vadd.f32 %v2970, %v2973
      %vm2975 = vweird.f32 %v2968
      %vm2976 = vweird.f32 %v2970
      %vm2977 = vmor %vm2975, %vm2976
      %v2978 = vsel %vm2977, %v2970, %v2974
      %v2979 = vand.u32 2147483647, %v2968
      %vm2980 = vcmp.eq.f32.partialorder %v2979, 8.507059e+37
      %v2981 = vand.u32 %v2968, 2147483648
      %v2982 = vor.u32 1.1754944e-38, %v2981
      %v2983 = vsel %vm2980, %v2982, %v2978
      %v2984 = vmul.f32 1.0, %v2983
      %v2985 = vrcp.pop %v2969
      %v2986 = vmul.f32 %v2969, %v2985
      %v2987 = vsub.f32 1.0, %v2986
      %v2988 = vmul.f32 %v2985, %v2987
      %v2989 = vadd.f32 %v2985, %v2988
      %vm2990 = vweird.f32 %v2969
      %vm2991 = vweird.f32 %v2985
      %vm2992 = vmor %vm2990, %vm2991
      %v2993 = vsel %vm2992, %v2985, %v2989
      %v2994 = vand.u32 2147483647, %v2969
      %vm2995 = vcmp.eq.f32.partialorder %v2994, 8.507059e+37
      %v2996 = vand.u32 %v2969, 2147483648
      %v2997 = vor.u32 1.1754944e-38, %v2996
      %v2998 = vsel %vm2995, %v2997, %v2993
      %v2999 = vmul.f32 1.0, %v2998
      %v3000 = vtanh.pop %v2792
      %v3001 = vtanh.pop %v2796
      %v3002 = vxor.u32 %v2793, 2147483648
      %v3003 = vxor.u32 %v2797, 2147483648
      %v3004 = vmul.f32 %v3002, 1.442695
      %v3005 = vpow.pop %v3004
      %v3006 = vmul.f32 %v3003, 1.442695
      %v3007 = vpow.pop %v3006
      %v3008 = vadd.f32 %v3005, 1.0
      %v3009 = vadd.f32 %v3007, 1.0
      %v3010 = vrcp.pop %v3008
      %v3011 = vmul.f32 %v3008, %v3010
      %v3012 = vsub.f32 1.0, %v3011
      %v3013 = vmul.f32 %v3010, %v3012
      %v3014 = vadd.f32 %v3010, %v3013
      %vm3015 = vweird.f32 %v3008
      %vm3016 = vweird.f32 %v3010
      %vm3017 = vmor %vm3015, %vm3016
      %v3018 = vsel %vm3017, %v3010, %v3014
      %v3019 = vand.u32 2147483647, %v3008
      %vm3020 = vcmp.eq.f32.partialorder %v3019, 8.507059e+37
      %v3021 = vand.u32 %v3008, 2147483648
      %v3022 = vor.u32 1.1754944e-38, %v3021
      %v3023 = vsel %vm3020, %v3022, %v3018
      %v3024 = vmul.f32 1.0, %v3023
      %v3025 = vrcp.pop %v3009
      %v3026 = vmul.f32 %v3009, %v3025
      %v3027 = vsub.f32 1.0, %v3026
      %v3028 = vmul.f32 %v3025, %v3027
      %v3029 = vadd.f32 %v3025, %v3028
      %vm3030 = vweird.f32 %v3009
      %vm3031 = vweird.f32 %v3025
      %vm3032 = vmor %vm3030, %vm3031
      %v3033 = vsel %vm3032, %v3025, %v3029
      %v3034 = vand.u32 2147483647, %v3009
      %vm3035 = vcmp.eq.f32.partialorder %v3034, 8.507059e+37
      %v3036 = vand.u32 %v3009, 2147483648
      %v3037 = vor.u32 1.1754944e-38, %v3036
      %v3038 = vsel %vm3035, %v3037, %v3033
      %v3039 = vmul.f32 1.0, %v3038
      %v3040 = vmul.f32 %v2984, %v2528
      %v3041 = vmul.f32 %v2999, %v2529
      %v3042 = vmul.f32 %v2946, %v3000
      %v3043 = vmul.f32 %v2961, %v3001
      %v3044 = vadd.f32 %v3040, %v3042
      %v3045 = vadd.f32 %v3041, %v3043
      %v3046 = vtanh.pop %v3044
      %v3047 = vtanh.pop %v3045
      %v3048 = vmul.f32 %v3024, %v3046
      %v3049 = vmul.f32 %v3039, %v3047
      %v3050 = vmax.f32 %v2534, %v2922
      %v3051 = vmax.f32 %v2535, %v3048
      %v3052 = vmax.f32 %v2536, %v2923
      %v3053 = vmax.f32 %v2537, %v3049
      %v3054 = vpack.c.bf16 %v2923, %v2922
      %v3055 = vpack.c.bf16 %v3049, %v3048
      %3056 = vmatpush.bf16.msra.mxu0 %v1825
      %3057 = vmatpush.bf16.msra.mxu0 %v1817
      %3058 = vmatpush.bf16.msra.mxu0 %v1809
      %3059 = vmatpush.bf16.msra.mxu0 %v1801
      %3060 = vmatpush.bf16.msra.mxu0 %v1793
      %3061 = vmatpush.bf16.msra.mxu0 %v1785
      %3062 = vmatpush.bf16.msra.mxu0 %v1777
      %3063 = vmatpush.bf16.msra.mxu0 %v1769
      %3064 = vmatmul.bf16.gmra.mxu0 %v3054
      %v3065 = vpop.f32.mrf.mxu0
      %v3066 = vadd.f32 0.0, %v3065
      %v3067 = vpop.f32.mrf.mxu0
      %v3068 = vadd.f32 0.0, %v3067
      %3069 = vdwg.mxu0
      %3070 = vmatpush.bf16.msra.mxu0 %v1889
      %3071 = vmatpush.bf16.msra.mxu0 %v1881
      %3072 = vmatpush.bf16.msra.mxu0 %v1873
      %3073 = vmatpush.bf16.msra.mxu0 %v1865
      %3074 = vmatpush.bf16.msra.mxu0 %v1857
      %3075 = vmatpush.bf16.msra.mxu0 %v1849
      %3076 = vmatpush.bf16.msra.mxu0 %v1841
      %3077 = vmatpush.bf16.msra.mxu0 %v1833
      %3078 = vmatmul.bf16.gmra.mxu0 %v3055
      %v3079 = vpop.f32.mrf.mxu0
      %v3080 = vadd.f32 %v3066, %v3079
      %v3081 = vpop.f32.mrf.mxu0
      %v3082 = vadd.f32 %v3068, %v3081
      %3083 = vdwg.mxu0
      %3084 = vmatpush.bf16.msra.mxu0 %v1826
      %3085 = vmatpush.bf16.msra.mxu0 %v1818
      %3086 = vmatpush.bf16.msra.mxu0 %v1810
      %3087 = vmatpush.bf16.msra.mxu0 %v1802
      %3088 = vmatpush.bf16.msra.mxu0 %v1794
      %3089 = vmatpush.bf16.msra.mxu0 %v1786
      %3090 = vmatpush.bf16.msra.mxu0 %v1778
      %3091 = vmatpush.bf16.msra.mxu0 %v1770
      %3092 = vmatmul.bf16.gmra.mxu0 %v3054
      %v3093 = vpop.f32.mrf.mxu0
      %v3094 = vadd.f32 0.0, %v3093
      %v3095 = vpop.f32.mrf.mxu0
      %v3096 = vadd.f32 0.0, %v3095
      %3097 = vdwg.mxu0
      %3098 = vmatpush.bf16.msra.mxu0 %v1890
      %3099 = vmatpush.bf16.msra.mxu0 %v1882
      %3100 = vmatpush.bf16.msra.mxu0 %v1874
      %3101 = vmatpush.bf16.msra.mxu0 %v1866
      %3102 = vmatpush.bf16.msra.mxu0 %v1858
      %3103 = vmatpush.bf16.msra.mxu0 %v1850
      %3104 = vmatpush.bf16.msra.mxu0 %v1842
      %3105 = vmatpush.bf16.msra.mxu0 %v1834
      %3106 = vmatmul.bf16.gmra.mxu0 %v3055
      %v3107 = vpop.f32.mrf.mxu0
      %v3108 = vadd.f32 %v3094, %v3107
      %v3109 = vpop.f32.mrf.mxu0
      %v3110 = vadd.f32 %v3096, %v3109
      %3111 = vdwg.mxu0
      %3112 = vmatpush.bf16.msra.mxu0 %v1827
      %3113 = vmatpush.bf16.msra.mxu0 %v1819
      %3114 = vmatpush.bf16.msra.mxu0 %v1811
      %3115 = vmatpush.bf16.msra.mxu0 %v1803
      %3116 = vmatpush.bf16.msra.mxu0 %v1795
      %3117 = vmatpush.bf16.msra.mxu0 %v1787
      %3118 = vmatpush.bf16.msra.mxu0 %v1779
      %3119 = vmatpush.bf16.msra.mxu0 %v1771
      %3120 = vmatmul.bf16.gmra.mxu0 %v3054
      %v3121 = vpop.f32.mrf.mxu0
      %v3122 = vadd.f32 0.0, %v3121
      %v3123 = vpop.f32.mrf.mxu0
      %v3124 = vadd.f32 0.0, %v3123
      %3125 = vdwg.mxu0
      %3126 = vmatpush.bf16.msra.mxu0 %v1891
      %3127 = vmatpush.bf16.msra.mxu0 %v1883
      %3128 = vmatpush.bf16.msra.mxu0 %v1875
      %3129 = vmatpush.bf16.msra.mxu0 %v1867
      %3130 = vmatpush.bf16.msra.mxu0 %v1859
      %3131 = vmatpush.bf16.msra.mxu0 %v1851
      %3132 = vmatpush.bf16.msra.mxu0 %v1843
      %3133 = vmatpush.bf16.msra.mxu0 %v1835
      %3134 = vmatmul.bf16.gmra.mxu0 %v3055
      %v3135 = vpop.f32.mrf.mxu0
      %v3136 = vadd.f32 %v3122, %v3135
      %v3137 = vpop.f32.mrf.mxu0
      %v3138 = vadd.f32 %v3124, %v3137
      %3139 = vdwg.mxu0
      %3140 = vmatpush.bf16.msra.mxu0 %v1828
      %3141 = vmatpush.bf16.msra.mxu0 %v1820
      %3142 = vmatpush.bf16.msra.mxu0 %v1812
      %3143 = vmatpush.bf16.msra.mxu0 %v1804
      %3144 = vmatpush.bf16.msra.mxu0 %v1796
      %3145 = vmatpush.bf16.msra.mxu0 %v1788
      %3146 = vmatpush.bf16.msra.mxu0 %v1780
      %3147 = vmatpush.bf16.msra.mxu0 %v1772
      %3148 = vmatmul.bf16.gmra.mxu0 %v3054
      %v3149 = vpop.f32.mrf.mxu0
      %v3150 = vadd.f32 0.0, %v3149
      %v3151 = vpop.f32.mrf.mxu0
      %v3152 = vadd.f32 0.0, %v3151
      %3153 = vdwg.mxu0
      %3154 = vmatpush.bf16.msra.mxu0 %v1892
      %3155 = vmatpush.bf16.msra.mxu0 %v1884
      %3156 = vmatpush.bf16.msra.mxu0 %v1876
      %3157 = vmatpush.bf16.msra.mxu0 %v1868
      %3158 = vmatpush.bf16.msra.mxu0 %v1860
      %3159 = vmatpush.bf16.msra.mxu0 %v1852
      %3160 = vmatpush.bf16.msra.mxu0 %v1844
      %3161 = vmatpush.bf16.msra.mxu0 %v1836
      %3162 = vmatmul.bf16.gmra.mxu0 %v3055
      %v3163 = vpop.f32.mrf.mxu0
      %v3164 = vadd.f32 %v3150, %v3163
      %v3165 = vpop.f32.mrf.mxu0
      %v3166 = vadd.f32 %v3152, %v3165
      %3167 = vdwg.mxu0
      %3168 = vmatpush.bf16.msra.mxu0 %v1829
      %3169 = vmatpush.bf16.msra.mxu0 %v1821
      %3170 = vmatpush.bf16.msra.mxu0 %v1813
      %3171 = vmatpush.bf16.msra.mxu0 %v1805
      %3172 = vmatpush.bf16.msra.mxu0 %v1797
      %3173 = vmatpush.bf16.msra.mxu0 %v1789
      %3174 = vmatpush.bf16.msra.mxu0 %v1781
      %3175 = vmatpush.bf16.msra.mxu0 %v1773
      %3176 = vmatmul.bf16.gmra.mxu0 %v3054
      %v3177 = vpop.f32.mrf.mxu0
      %v3178 = vadd.f32 0.0, %v3177
      %v3179 = vpop.f32.mrf.mxu0
      %v3180 = vadd.f32 0.0, %v3179
      %3181 = vdwg.mxu0
      %3182 = vmatpush.bf16.msra.mxu0 %v1893
      %3183 = vmatpush.bf16.msra.mxu0 %v1885
      %3184 = vmatpush.bf16.msra.mxu0 %v1877
      %3185 = vmatpush.bf16.msra.mxu0 %v1869
      %3186 = vmatpush.bf16.msra.mxu0 %v1861
      %3187 = vmatpush.bf16.msra.mxu0 %v1853
      %3188 = vmatpush.bf16.msra.mxu0 %v1845
      %3189 = vmatpush.bf16.msra.mxu0 %v1837
      %3190 = vmatmul.bf16.gmra.mxu0 %v3055
      %v3191 = vpop.f32.mrf.mxu0
      %v3192 = vadd.f32 %v3178, %v3191
      %v3193 = vpop.f32.mrf.mxu0
      %v3194 = vadd.f32 %v3180, %v3193
      %3195 = vdwg.mxu0
      %3196 = vmatpush.bf16.msra.mxu0 %v1830
      %3197 = vmatpush.bf16.msra.mxu0 %v1822
      %3198 = vmatpush.bf16.msra.mxu0 %v1814
      %3199 = vmatpush.bf16.msra.mxu0 %v1806
      %3200 = vmatpush.bf16.msra.mxu0 %v1798
      %3201 = vmatpush.bf16.msra.mxu0 %v1790
      %3202 = vmatpush.bf16.msra.mxu0 %v1782
      %3203 = vmatpush.bf16.msra.mxu0 %v1774
      %3204 = vmatmul.bf16.gmra.mxu0 %v3054
      %v3205 = vpop.f32.mrf.mxu0
      %v3206 = vadd.f32 0.0, %v3205
      %v3207 = vpop.f32.mrf.mxu0
      %v3208 = vadd.f32 0.0, %v3207
      %3209 = vdwg.mxu0
      %3210 = vmatpush.bf16.msra.mxu0 %v1894
      %3211 = vmatpush.bf16.msra.mxu0 %v1886
      %3212 = vmatpush.bf16.msra.mxu0 %v1878
      %3213 = vmatpush.bf16.msra.mxu0 %v1870
      %3214 = vmatpush.bf16.msra.mxu0 %v1862
      %3215 = vmatpush.bf16.msra.mxu0 %v1854
      %3216 = vmatpush.bf16.msra.mxu0 %v1846
      %3217 = vmatpush.bf16.msra.mxu0 %v1838
      %3218 = vmatmul.bf16.gmra.mxu0 %v3055
      %v3219 = vpop.f32.mrf.mxu0
      %v3220 = vadd.f32 %v3206, %v3219
      %v3221 = vpop.f32.mrf.mxu0
      %v3222 = vadd.f32 %v3208, %v3221
      %3223 = vdwg.mxu0
      %3224 = vmatpush.bf16.msra.mxu0 %v1831
      %3225 = vmatpush.bf16.msra.mxu0 %v1823
      %3226 = vmatpush.bf16.msra.mxu0 %v1815
      %3227 = vmatpush.bf16.msra.mxu0 %v1807
      %3228 = vmatpush.bf16.msra.mxu0 %v1799
      %3229 = vmatpush.bf16.msra.mxu0 %v1791
      %3230 = vmatpush.bf16.msra.mxu0 %v1783
      %3231 = vmatpush.bf16.msra.mxu0 %v1775
      %3232 = vmatmul.bf16.gmra.mxu0 %v3054
      %v3233 = vpop.f32.mrf.mxu0
      %v3234 = vadd.f32 0.0, %v3233
      %v3235 = vpop.f32.mrf.mxu0
      %v3236 = vadd.f32 0.0, %v3235
      %3237 = vdwg.mxu0
      %3238 = vmatpush.bf16.msra.mxu0 %v1895
      %3239 = vmatpush.bf16.msra.mxu0 %v1887
      %3240 = vmatpush.bf16.msra.mxu0 %v1879
      %3241 = vmatpush.bf16.msra.mxu0 %v1871
      %3242 = vmatpush.bf16.msra.mxu0 %v1863
      %3243 = vmatpush.bf16.msra.mxu0 %v1855
      %3244 = vmatpush.bf16.msra.mxu0 %v1847
      %3245 = vmatpush.bf16.msra.mxu0 %v1839
      %3246 = vmatmul.bf16.gmra.mxu0 %v3055
      %v3247 = vpop.f32.mrf.mxu0
      %v3248 = vadd.f32 %v3234, %v3247
      %v3249 = vpop.f32.mrf.mxu0
      %v3250 = vadd.f32 %v3236, %v3249
      %3251 = vdwg.mxu0
      %3252 = vmatpush.bf16.msra.mxu0 %v1832
      %3253 = vmatpush.bf16.msra.mxu0 %v1824
      %3254 = vmatpush.bf16.msra.mxu0 %v1816
      %3255 = vmatpush.bf16.msra.mxu0 %v1808
      %3256 = vmatpush.bf16.msra.mxu0 %v1800
      %3257 = vmatpush.bf16.msra.mxu0 %v1792
      %3258 = vmatpush.bf16.msra.mxu0 %v1784
      %3259 = vmatpush.bf16.msra.mxu0 %v1776
      %3260 = vmatmul.bf16.gmra.mxu0 %v3054
      %v3261 = vpop.f32.mrf.mxu0
      %v3262 = vadd.f32 0.0, %v3261
      %v3263 = vpop.f32.mrf.mxu0
      %v3264 = vadd.f32 0.0, %v3263
      %3265 = vdwg.mxu0
      %3266 = vmatpush.bf16.msra.mxu0 %v1896
      %3267 = vmatpush.bf16.msra.mxu0 %v1888
      %3268 = vmatpush.bf16.msra.mxu0 %v1880
      %3269 = vmatpush.bf16.msra.mxu0 %v1872
      %3270 = vmatpush.bf16.msra.mxu0 %v1864
      %3271 = vmatpush.bf16.msra.mxu0 %v1856
      %3272 = vmatpush.bf16.msra.mxu0 %v1848
      %3273 = vmatpush.bf16.msra.mxu0 %v1840
      %3274 = vmatmul.bf16.gmra.mxu0 %v3055
      %v3275 = vpop.f32.mrf.mxu0
      %v3276 = vadd.f32 %v3262, %v3275
      %v3277 = vpop.f32.mrf.mxu0
      %v3278 = vadd.f32 %v3264, %v3277
      %3279 = vdwg.mxu0
      %s3280 = scalar_lea.vmem [#allocation2], 128
      %v3281 = vld [vmem:[%s3280] sm:$0xff]
      %v3282 = vld [vmem:[%s3280 + $0x8] sm:$0xff]
      %v3283 = vld [vmem:[%s3280 + $0x10] sm:$0xff]
      %v3284 = vld [vmem:[%s3280 + $0x18] sm:$0xff]
      %v3285 = vld [vmem:[%s3280 + $0x20] sm:$0xff]
      %v3286 = vld [vmem:[%s3280 + $0x28] sm:$0xff]
      %v3287 = vld [vmem:[%s3280 + $0x30] sm:$0xff]
      %v3288 = vld [vmem:[%s3280 + $0x38] sm:$0xff]
      %v3289 = vadd.f32 %v3281, %v3080
      %v3290 = vadd.f32 %v3282, %v3108
      %v3291 = vadd.f32 %v3283, %v3136
      %v3292 = vadd.f32 %v3284, %v3164
      %v3293 = vadd.f32 %v3285, %v3082
      %v3294 = vadd.f32 %v3286, %v3110
      %v3295 = vadd.f32 %v3287, %v3138
      %v3296 = vadd.f32 %v3288, %v3166
      %s3297 = scalar_lea.vmem [#allocation3], 64
      %v3298 = vld [vmem:[%s3297] sm:$0xff]
      %v3299 = vld [vmem:[%s3297 + $0x8] sm:$0xff]
      %v3300 = vld [vmem:[%s3297 + $0x10] sm:$0xff]
      %v3301 = vld [vmem:[%s3297 + $0x18] sm:$0xff]
      %v3302 = vld [vmem:[%s3297 + $0x20] sm:$0xff]
      %v3303 = vld [vmem:[%s3297 + $0x28] sm:$0xff]
      %v3304 = vld [vmem:[%s3297 + $0x30] sm:$0xff]
      %v3305 = vld [vmem:[%s3297 + $0x38] sm:$0xff]
      %v3306 = vadd.f32 %v3298, %v3192
      %v3307 = vadd.f32 %v3299, %v3220
      %v3308 = vadd.f32 %v3300, %v3248
      %v3309 = vadd.f32 %v3301, %v3276
      %v3310 = vadd.f32 %v3302, %v3194
      %v3311 = vadd.f32 %v3303, %v3222
      %v3312 = vadd.f32 %v3304, %v3250
      %v3313 = vadd.f32 %v3305, %v3278
      %v3314 = vxor.u32 %v3289, 2147483648
      %v3315 = vxor.u32 %v3293, 2147483648
      %v3316 = vmul.f32 %v3314, 1.442695
      %v3317 = vpow.pop %v3316
      %v3318 = vmul.f32 %v3315, 1.442695
      %v3319 = vpow.pop %v3318
      %v3320 = vadd.f32 %v3317, 1.0
      %v3321 = vadd.f32 %v3319, 1.0
      %v3322 = vrcp.pop %v3320
      %v3323 = vmul.f32 %v3320, %v3322
      %v3324 = vsub.f32 1.0, %v3323
      %v3325 = vmul.f32 %v3322, %v3324
      %v3326 = vadd.f32 %v3322, %v3325
      %vm3327 = vweird.f32 %v3320
      %vm3328 = vweird.f32 %v3322
      %vm3329 = vmor %vm3327, %vm3328
      %v3330 = vsel %vm3329, %v3322, %v3326
      %v3331 = vand.u32 2147483647, %v3320
      %vm3332 = vcmp.eq.f32.partialorder %v3331, 8.507059e+37
      %v3333 = vand.u32 %v3320, 2147483648
      %v3334 = vor.u32 1.1754944e-38, %v3333
      %v3335 = vsel %vm3332, %v3334, %v3330
      %v3336 = vmul.f32 1.0, %v3335
      %v3337 = vrcp.pop %v3321
      %v3338 = vmul.f32 %v3321, %v3337
      %v3339 = vsub.f32 1.0, %v3338
      %v3340 = vmul.f32 %v3337, %v3339
      %v3341 = vadd.f32 %v3337, %v3340
      %vm3342 = vweird.f32 %v3321
      %vm3343 = vweird.f32 %v3337
      %vm3344 = vmor %vm3342, %vm3343
      %v3345 = vsel %vm3344, %v3337, %v3341
      %v3346 = vand.u32 2147483647, %v3321
      %vm3347 = vcmp.eq.f32.partialorder %v3346, 8.507059e+37
      %v3348 = vand.u32 %v3321, 2147483648
      %v3349 = vor.u32 1.1754944e-38, %v3348
      %v3350 = vsel %vm3347, %v3349, %v3345
      %v3351 = vmul.f32 1.0, %v3350
      %v3352 = vxor.u32 %v3290, 2147483648
      %v3353 = vxor.u32 %v3294, 2147483648
      %v3354 = vmul.f32 %v3352, 1.442695
      %v3355 = vpow.pop %v3354
      %v3356 = vmul.f32 %v3353, 1.442695
      %v3357 = vpow.pop %v3356
      %v3358 = vadd.f32 %v3355, 1.0
      %v3359 = vadd.f32 %v3357, 1.0
      %v3360 = vrcp.pop %v3358
      %v3361 = vmul.f32 %v3358, %v3360
      %v3362 = vsub.f32 1.0, %v3361
      %v3363 = vmul.f32 %v3360, %v3362
      %v3364 = vadd.f32 %v3360, %v3363
      %vm3365 = vweird.f32 %v3358
      %vm3366 = vweird.f32 %v3360
      %vm3367 = vmor %vm3365, %vm3366
      %v3368 = vsel %vm3367, %v3360, %v3364
      %v3369 = vand.u32 2147483647, %v3358
      %vm3370 = vcmp.eq.f32.partialorder %v3369, 8.507059e+37
      %v3371 = vand.u32 %v3358, 2147483648
      %v3372 = vor.u32 1.1754944e-38, %v3371
      %v3373 = vsel %vm3370, %v3372, %v3368
      %v3374 = vmul.f32 1.0, %v3373
      %v3375 = vrcp.pop %v3359
      %v3376 = vmul.f32 %v3359, %v3375
      %v3377 = vsub.f32 1.0, %v3376
      %v3378 = vmul.f32 %v3375, %v3377
      %v3379 = vadd.f32 %v3375, %v3378
      %vm3380 = vweird.f32 %v3359
      %vm3381 = vweird.f32 %v3375
      %vm3382 = vmor %vm3380, %vm3381
      %v3383 = vsel %vm3382, %v3375, %v3379
      %v3384 = vand.u32 2147483647, %v3359
      %vm3385 = vcmp.eq.f32.partialorder %v3384, 8.507059e+37
      %v3386 = vand.u32 %v3359, 2147483648
      %v3387 = vor.u32 1.1754944e-38, %v3386
      %v3388 = vsel %vm3385, %v3387, %v3383
      %v3389 = vmul.f32 1.0, %v3388
      %v3390 = vtanh.pop %v3291
      %v3391 = vtanh.pop %v3295
      %v3392 = vxor.u32 %v3292, 2147483648
      %v3393 = vxor.u32 %v3296, 2147483648
      %v3394 = vmul.f32 %v3392, 1.442695
      %v3395 = vpow.pop %v3394
      %v3396 = vmul.f32 %v3393, 1.442695
      %v3397 = vpow.pop %v3396
      %v3398 = vadd.f32 %v3395, 1.0
      %v3399 = vadd.f32 %v3397, 1.0
      %v3400 = vrcp.pop %v3398
      %v3401 = vmul.f32 %v3398, %v3400
      %v3402 = vsub.f32 1.0, %v3401
      %v3403 = vmul.f32 %v3400, %v3402
      %v3404 = vadd.f32 %v3400, %v3403
      %vm3405 = vweird.f32 %v3398
      %vm3406 = vweird.f32 %v3400
      %vm3407 = vmor %vm3405, %vm3406
      %v3408 = vsel %vm3407, %v3400, %v3404
      %v3409 = vand.u32 2147483647, %v3398
      %vm3410 = vcmp.eq.f32.partialorder %v3409, 8.507059e+37
      %v3411 = vand.u32 %v3398, 2147483648
      %v3412 = vor.u32 1.1754944e-38, %v3411
      %v3413 = vsel %vm3410, %v3412, %v3408
      %v3414 = vmul.f32 1.0, %v3413
      %v3415 = vrcp.pop %v3399
      %v3416 = vmul.f32 %v3399, %v3415
      %v3417 = vsub.f32 1.0, %v3416
      %v3418 = vmul.f32 %v3415, %v3417
      %v3419 = vadd.f32 %v3415, %v3418
      %vm3420 = vweird.f32 %v3399
      %vm3421 = vweird.f32 %v3415
      %vm3422 = vmor %vm3420, %vm3421
      %v3423 = vsel %vm3422, %v3415, %v3419
      %v3424 = vand.u32 2147483647, %v3399
      %vm3425 = vcmp.eq.f32.partialorder %v3424, 8.507059e+37
      %v3426 = vand.u32 %v3399, 2147483648
      %v3427 = vor.u32 1.1754944e-38, %v3426
      %v3428 = vsel %vm3425, %v3427, %v3423
      %v3429 = vmul.f32 1.0, %v3428
      %v3430 = vmul.f32 %v3374, %v2918
      %v3431 = vmul.f32 %v3389, %v2919
      %v3432 = vmul.f32 %v3336, %v3390
      %v3433 = vmul.f32 %v3351, %v3391
      %v3434 = vadd.f32 %v3430, %v3432
      %v3435 = vadd.f32 %v3431, %v3433
      %v3436 = vtanh.pop %v3434
      %v3437 = vtanh.pop %v3435
      %v3438 = vmul.f32 %v3414, %v3436
      %v3439 = vmul.f32 %v3429, %v3437
      %v3440 = vxor.u32 %v3306, 2147483648
      %v3441 = vxor.u32 %v3310, 2147483648
      %v3442 = vmul.f32 %v3440, 1.442695
      %v3443 = vpow.pop %v3442
      %v3444 = vmul.f32 %v3441, 1.442695
      %v3445 = vpow.pop %v3444
      %v3446 = vadd.f32 %v3443, 1.0
      %v3447 = vadd.f32 %v3445, 1.0
      %v3448 = vrcp.pop %v3446
      %v3449 = vmul.f32 %v3446, %v3448
      %v3450 = vsub.f32 1.0, %v3449
      %v3451 = vmul.f32 %v3448, %v3450
      %v3452 = vadd.f32 %v3448, %v3451
      %vm3453 = vweird.f32 %v3446
      %vm3454 = vweird.f32 %v3448
      %vm3455 = vmor %vm3453, %vm3454
      %v3456 = vsel %vm3455, %v3448, %v3452
      %v3457 = vand.u32 2147483647, %v3446
      %vm3458 = vcmp.eq.f32.partialorder %v3457, 8.507059e+37
      %v3459 = vand.u32 %v3446, 2147483648
      %v3460 = vor.u32 1.1754944e-38, %v3459
      %v3461 = vsel %vm3458, %v3460, %v3456
      %v3462 = vmul.f32 1.0, %v3461
      %v3463 = vrcp.pop %v3447
      %v3464 = vmul.f32 %v3447, %v3463
      %v3465 = vsub.f32 1.0, %v3464
      %v3466 = vmul.f32 %v3463, %v3465
      %v3467 = vadd.f32 %v3463, %v3466
      %vm3468 = vweird.f32 %v3447
      %vm3469 = vweird.f32 %v3463
      %vm3470 = vmor %vm3468, %vm3469
      %v3471 = vsel %vm3470, %v3463, %v3467
      %v3472 = vand.u32 2147483647, %v3447
      %vm3473 = vcmp.eq.f32.partialorder %v3472, 8.507059e+37
      %v3474 = vand.u32 %v3447, 2147483648
      %v3475 = vor.u32 1.1754944e-38, %v3474
      %v3476 = vsel %vm3473, %v3475, %v3471
      %v3477 = vmul.f32 1.0, %v3476
      %v3478 = vxor.u32 %v3307, 2147483648
      %v3479 = vxor.u32 %v3311, 2147483648
      %v3480 = vmul.f32 %v3478, 1.442695
      %v3481 = vpow.pop %v3480
      %v3482 = vmul.f32 %v3479, 1.442695
      %v3483 = vpow.pop %v3482
      %v3484 = vadd.f32 %v3481, 1.0
      %v3485 = vadd.f32 %v3483, 1.0
      %v3486 = vrcp.pop %v3484
      %v3487 = vmul.f32 %v3484, %v3486
      %v3488 = vsub.f32 1.0, %v3487
      %v3489 = vmul.f32 %v3486, %v3488
      %v3490 = vadd.f32 %v3486, %v3489
      %vm3491 = vweird.f32 %v3484
      %vm3492 = vweird.f32 %v3486
      %vm3493 = vmor %vm3491, %vm3492
      %v3494 = vsel %vm3493, %v3486, %v3490
      %v3495 = vand.u32 2147483647, %v3484
      %vm3496 = vcmp.eq.f32.partialorder %v3495, 8.507059e+37
      %v3497 = vand.u32 %v3484, 2147483648
      %v3498 = vor.u32 1.1754944e-38, %v3497
      %v3499 = vsel %vm3496, %v3498, %v3494
      %v3500 = vmul.f32 1.0, %v3499
      %v3501 = vrcp.pop %v3485
      %v3502 = vmul.f32 %v3485, %v3501
      %v3503 = vsub.f32 1.0, %v3502
      %v3504 = vmul.f32 %v3501, %v3503
      %v3505 = vadd.f32 %v3501, %v3504
      %vm3506 = vweird.f32 %v3485
      %vm3507 = vweird.f32 %v3501
      %vm3508 = vmor %vm3506, %vm3507
      %v3509 = vsel %vm3508, %v3501, %v3505
      %v3510 = vand.u32 2147483647, %v3485
      %vm3511 = vcmp.eq.f32.partialorder %v3510, 8.507059e+37
      %v3512 = vand.u32 %v3485, 2147483648
      %v3513 = vor.u32 1.1754944e-38, %v3512
      %v3514 = vsel %vm3511, %v3513, %v3509
      %v3515 = vmul.f32 1.0, %v3514
      %v3516 = vtanh.pop %v3308
      %v3517 = vtanh.pop %v3312
      %v3518 = vxor.u32 %v3309, 2147483648
      %v3519 = vxor.u32 %v3313, 2147483648
      %v3520 = vmul.f32 %v3518, 1.442695
      %v3521 = vpow.pop %v3520
      %v3522 = vmul.f32 %v3519, 1.442695
      %v3523 = vpow.pop %v3522
      %v3524 = vadd.f32 %v3521, 1.0
      %v3525 = vadd.f32 %v3523, 1.0
      %v3526 = vrcp.pop %v3524
      %v3527 = vmul.f32 %v3524, %v3526
      %v3528 = vsub.f32 1.0, %v3527
      %v3529 = vmul.f32 %v3526, %v3528
      %v3530 = vadd.f32 %v3526, %v3529
      %vm3531 = vweird.f32 %v3524
      %vm3532 = vweird.f32 %v3526
      %vm3533 = vmor %vm3531, %vm3532
      %v3534 = vsel %vm3533, %v3526, %v3530
      %v3535 = vand.u32 2147483647, %v3524
      %vm3536 = vcmp.eq.f32.partialorder %v3535, 8.507059e+37
      %v3537 = vand.u32 %v3524, 2147483648
      %v3538 = vor.u32 1.1754944e-38, %v3537
      %v3539 = vsel %vm3536, %v3538, %v3534
      %v3540 = vmul.f32 1.0, %v3539
      %v3541 = vrcp.pop %v3525
      %v3542 = vmul.f32 %v3525, %v3541
      %v3543 = vsub.f32 1.0, %v3542
      %v3544 = vmul.f32 %v3541, %v3543
      %v3545 = vadd.f32 %v3541, %v3544
      %vm3546 = vweird.f32 %v3525
      %vm3547 = vweird.f32 %v3541
      %vm3548 = vmor %vm3546, %vm3547
      %v3549 = vsel %vm3548, %v3541, %v3545
      %v3550 = vand.u32 2147483647, %v3525
      %vm3551 = vcmp.eq.f32.partialorder %v3550, 8.507059e+37
      %v3552 = vand.u32 %v3525, 2147483648
      %v3553 = vor.u32 1.1754944e-38, %v3552
      %v3554 = vsel %vm3551, %v3553, %v3549
      %v3555 = vmul.f32 1.0, %v3554
      %v3556 = vmul.f32 %v3500, %v3044
      %v3557 = vmul.f32 %v3515, %v3045
      %v3558 = vmul.f32 %v3462, %v3516
      %v3559 = vmul.f32 %v3477, %v3517
      %v3560 = vadd.f32 %v3556, %v3558
      %v3561 = vadd.f32 %v3557, %v3559
      %v3562 = vtanh.pop %v3560
      %v3563 = vtanh.pop %v3561
      %v3564 = vmul.f32 %v3540, %v3562
      %v3565 = vmul.f32 %v3555, %v3563
      %v3566 = vmax.f32 %v3050, %v3438
      %v3567 = vmax.f32 %v3051, %v3564
      %v3568 = vmax.f32 %v3052, %v3439
      %v3569 = vmax.f32 %v3053, %v3565
      %v3570 = vpack.c.bf16 %v3439, %v3438
      %v3571 = vpack.c.bf16 %v3565, %v3564
      %3572 = vmatpush.bf16.msra.mxu0 %v1825
      %3573 = vmatpush.bf16.msra.mxu0 %v1817
      %3574 = vmatpush.bf16.msra.mxu0 %v1809
      %3575 = vmatpush.bf16.msra.mxu0 %v1801
      %3576 = vmatpush.bf16.msra.mxu0 %v1793
      %3577 = vmatpush.bf16.msra.mxu0 %v1785
      %3578 = vmatpush.bf16.msra.mxu0 %v1777
      %3579 = vmatpush.bf16.msra.mxu0 %v1769
      %3580 = vmatmul.bf16.gmra.mxu0 %v3570
      %v3581 = vpop.f32.mrf.mxu0
      %v3582 = vadd.f32 0.0, %v3581
      %v3583 = vpop.f32.mrf.mxu0
      %v3584 = vadd.f32 0.0, %v3583
      %3585 = vdwg.mxu0
      %3586 = vmatpush.bf16.msra.mxu0 %v1889
      %3587 = vmatpush.bf16.msra.mxu0 %v1881
      %3588 = vmatpush.bf16.msra.mxu0 %v1873
      %3589 = vmatpush.bf16.msra.mxu0 %v1865
      %3590 = vmatpush.bf16.msra.mxu0 %v1857
      %3591 = vmatpush.bf16.msra.mxu0 %v1849
      %3592 = vmatpush.bf16.msra.mxu0 %v1841
      %3593 = vmatpush.bf16.msra.mxu0 %v1833
      %3594 = vmatmul.bf16.gmra.mxu0 %v3571
      %v3595 = vpop.f32.mrf.mxu0
      %v3596 = vadd.f32 %v3582, %v3595
      %v3597 = vpop.f32.mrf.mxu0
      %v3598 = vadd.f32 %v3584, %v3597
      %3599 = vdwg.mxu0
      %3600 = vmatpush.bf16.msra.mxu0 %v1826
      %3601 = vmatpush.bf16.msra.mxu0 %v1818
      %3602 = vmatpush.bf16.msra.mxu0 %v1810
      %3603 = vmatpush.bf16.msra.mxu0 %v1802
      %3604 = vmatpush.bf16.msra.mxu0 %v1794
      %3605 = vmatpush.bf16.msra.mxu0 %v1786
      %3606 = vmatpush.bf16.msra.mxu0 %v1778
      %3607 = vmatpush.bf16.msra.mxu0 %v1770
      %3608 = vmatmul.bf16.gmra.mxu0 %v3570
      %v3609 = vpop.f32.mrf.mxu0
      %v3610 = vadd.f32 0.0, %v3609
      %v3611 = vpop.f32.mrf.mxu0
      %v3612 = vadd.f32 0.0, %v3611
      %3613 = vdwg.mxu0
      %3614 = vmatpush.bf16.msra.mxu0 %v1890
      %3615 = vmatpush.bf16.msra.mxu0 %v1882
      %3616 = vmatpush.bf16.msra.mxu0 %v1874
      %3617 = vmatpush.bf16.msra.mxu0 %v1866
      %3618 = vmatpush.bf16.msra.mxu0 %v1858
      %3619 = vmatpush.bf16.msra.mxu0 %v1850
      %3620 = vmatpush.bf16.msra.mxu0 %v1842
      %3621 = vmatpush.bf16.msra.mxu0 %v1834
      %3622 = vmatmul.bf16.gmra.mxu0 %v3571
      %v3623 = vpop.f32.mrf.mxu0
      %v3624 = vadd.f32 %v3610, %v3623
      %v3625 = vpop.f32.mrf.mxu0
      %v3626 = vadd.f32 %v3612, %v3625
      %3627 = vdwg.mxu0
      %3628 = vmatpush.bf16.msra.mxu0 %v1827
      %3629 = vmatpush.bf16.msra.mxu0 %v1819
      %3630 = vmatpush.bf16.msra.mxu0 %v1811
      %3631 = vmatpush.bf16.msra.mxu0 %v1803
      %3632 = vmatpush.bf16.msra.mxu0 %v1795
      %3633 = vmatpush.bf16.msra.mxu0 %v1787
      %3634 = vmatpush.bf16.msra.mxu0 %v1779
      %3635 = vmatpush.bf16.msra.mxu0 %v1771
      %3636 = vmatmul.bf16.gmra.mxu0 %v3570
      %v3637 = vpop.f32.mrf.mxu0
      %v3638 = vadd.f32 0.0, %v3637
      %v3639 = vpop.f32.mrf.mxu0
      %v3640 = vadd.f32 0.0, %v3639
      %3641 = vdwg.mxu0
      %3642 = vmatpush.bf16.msra.mxu0 %v1891
      %3643 = vmatpush.bf16.msra.mxu0 %v1883
      %3644 = vmatpush.bf16.msra.mxu0 %v1875
      %3645 = vmatpush.bf16.msra.mxu0 %v1867
      %3646 = vmatpush.bf16.msra.mxu0 %v1859
      %3647 = vmatpush.bf16.msra.mxu0 %v1851
      %3648 = vmatpush.bf16.msra.mxu0 %v1843
      %3649 = vmatpush.bf16.msra.mxu0 %v1835
      %3650 = vmatmul.bf16.gmra.mxu0 %v3571
      %v3651 = vpop.f32.mrf.mxu0
      %v3652 = vadd.f32 %v3638, %v3651
      %v3653 = vpop.f32.mrf.mxu0
      %v3654 = vadd.f32 %v3640, %v3653
      %3655 = vdwg.mxu0
      %3656 = vmatpush.bf16.msra.mxu0 %v1828
      %3657 = vmatpush.bf16.msra.mxu0 %v1820
      %3658 = vmatpush.bf16.msra.mxu0 %v1812
      %3659 = vmatpush.bf16.msra.mxu0 %v1804
      %3660 = vmatpush.bf16.msra.mxu0 %v1796
      %3661 = vmatpush.bf16.msra.mxu0 %v1788
      %3662 = vmatpush.bf16.msra.mxu0 %v1780
      %3663 = vmatpush.bf16.msra.mxu0 %v1772
      %3664 = vmatmul.bf16.gmra.mxu0 %v3570
      %v3665 = vpop.f32.mrf.mxu0
      %v3666 = vadd.f32 0.0, %v3665
      %v3667 = vpop.f32.mrf.mxu0
      %v3668 = vadd.f32 0.0, %v3667
      %3669 = vdwg.mxu0
      %3670 = vmatpush.bf16.msra.mxu0 %v1892
      %3671 = vmatpush.bf16.msra.mxu0 %v1884
      %3672 = vmatpush.bf16.msra.mxu0 %v1876
      %3673 = vmatpush.bf16.msra.mxu0 %v1868
      %3674 = vmatpush.bf16.msra.mxu0 %v1860
      %3675 = vmatpush.bf16.msra.mxu0 %v1852
      %3676 = vmatpush.bf16.msra.mxu0 %v1844
      %3677 = vmatpush.bf16.msra.mxu0 %v1836
      %3678 = vmatmul.bf16.gmra.mxu0 %v3571
      %v3679 = vpop.f32.mrf.mxu0
      %v3680 = vadd.f32 %v3666, %v3679
      %v3681 = vpop.f32.mrf.mxu0
      %v3682 = vadd.f32 %v3668, %v3681
      %3683 = vdwg.mxu0
      %3684 = vmatpush.bf16.msra.mxu0 %v1829
      %3685 = vmatpush.bf16.msra.mxu0 %v1821
      %3686 = vmatpush.bf16.msra.mxu0 %v1813
      %3687 = vmatpush.bf16.msra.mxu0 %v1805
      %3688 = vmatpush.bf16.msra.mxu0 %v1797
      %3689 = vmatpush.bf16.msra.mxu0 %v1789
      %3690 = vmatpush.bf16.msra.mxu0 %v1781
      %3691 = vmatpush.bf16.msra.mxu0 %v1773
      %3692 = vmatmul.bf16.gmra.mxu0 %v3570
      %v3693 = vpop.f32.mrf.mxu0
      %v3694 = vadd.f32 0.0, %v3693
      %v3695 = vpop.f32.mrf.mxu0
      %v3696 = vadd.f32 0.0, %v3695
      %3697 = vdwg.mxu0
      %3698 = vmatpush.bf16.msra.mxu0 %v1893
      %3699 = vmatpush.bf16.msra.mxu0 %v1885
      %3700 = vmatpush.bf16.msra.mxu0 %v1877
      %3701 = vmatpush.bf16.msra.mxu0 %v1869
      %3702 = vmatpush.bf16.msra.mxu0 %v1861
      %3703 = vmatpush.bf16.msra.mxu0 %v1853
      %3704 = vmatpush.bf16.msra.mxu0 %v1845
      %3705 = vmatpush.bf16.msra.mxu0 %v1837
      %3706 = vmatmul.bf16.gmra.mxu0 %v3571
      %v3707 = vpop.f32.mrf.mxu0
      %v3708 = vadd.f32 %v3694, %v3707
      %v3709 = vpop.f32.mrf.mxu0
      %v3710 = vadd.f32 %v3696, %v3709
      %3711 = vdwg.mxu0
      %3712 = vmatpush.bf16.msra.mxu0 %v1830
      %3713 = vmatpush.bf16.msra.mxu0 %v1822
      %3714 = vmatpush.bf16.msra.mxu0 %v1814
      %3715 = vmatpush.bf16.msra.mxu0 %v1806
      %3716 = vmatpush.bf16.msra.mxu0 %v1798
      %3717 = vmatpush.bf16.msra.mxu0 %v1790
      %3718 = vmatpush.bf16.msra.mxu0 %v1782
      %3719 = vmatpush.bf16.msra.mxu0 %v1774
      %3720 = vmatmul.bf16.gmra.mxu0 %v3570
      %v3721 = vpop.f32.mrf.mxu0
      %v3722 = vadd.f32 0.0, %v3721
      %v3723 = vpop.f32.mrf.mxu0
      %v3724 = vadd.f32 0.0, %v3723
      %3725 = vdwg.mxu0
      %3726 = vmatpush.bf16.msra.mxu0 %v1894
      %3727 = vmatpush.bf16.msra.mxu0 %v1886
      %3728 = vmatpush.bf16.msra.mxu0 %v1878
      %3729 = vmatpush.bf16.msra.mxu0 %v1870
      %3730 = vmatpush.bf16.msra.mxu0 %v1862
      %3731 = vmatpush.bf16.msra.mxu0 %v1854
      %3732 = vmatpush.bf16.msra.mxu0 %v1846
      %3733 = vmatpush.bf16.msra.mxu0 %v1838
      %3734 = vmatmul.bf16.gmra.mxu0 %v3571
      %v3735 = vpop.f32.mrf.mxu0
      %v3736 = vadd.f32 %v3722, %v3735
      %v3737 = vpop.f32.mrf.mxu0
      %v3738 = vadd.f32 %v3724, %v3737
      %3739 = vdwg.mxu0
      %3740 = vmatpush.bf16.msra.mxu0 %v1831
      %3741 = vmatpush.bf16.msra.mxu0 %v1823
      %3742 = vmatpush.bf16.msra.mxu0 %v1815
      %3743 = vmatpush.bf16.msra.mxu0 %v1807
      %3744 = vmatpush.bf16.msra.mxu0 %v1799
      %3745 = vmatpush.bf16.msra.mxu0 %v1791
      %3746 = vmatpush.bf16.msra.mxu0 %v1783
      %3747 = vmatpush.bf16.msra.mxu0 %v1775
      %3748 = vmatmul.bf16.gmra.mxu0 %v3570
      %v3749 = vpop.f32.mrf.mxu0
      %v3750 = vadd.f32 0.0, %v3749
      %v3751 = vpop.f32.mrf.mxu0
      %v3752 = vadd.f32 0.0, %v3751
      %3753 = vdwg.mxu0
      %3754 = vmatpush.bf16.msra.mxu0 %v1895
      %3755 = vmatpush.bf16.msra.mxu0 %v1887
      %3756 = vmatpush.bf16.msra.mxu0 %v1879
      %3757 = vmatpush.bf16.msra.mxu0 %v1871
      %3758 = vmatpush.bf16.msra.mxu0 %v1863
      %3759 = vmatpush.bf16.msra.mxu0 %v1855
      %3760 = vmatpush.bf16.msra.mxu0 %v1847
      %3761 = vmatpush.bf16.msra.mxu0 %v1839
      %3762 = vmatmul.bf16.gmra.mxu0 %v3571
      %v3763 = vpop.f32.mrf.mxu0
      %v3764 = vadd.f32 %v3750, %v3763
      %v3765 = vpop.f32.mrf.mxu0
      %v3766 = vadd.f32 %v3752, %v3765
      %3767 = vdwg.mxu0
      %3768 = vmatpush.bf16.msra.mxu0 %v1832
      %3769 = vmatpush.bf16.msra.mxu0 %v1824
      %3770 = vmatpush.bf16.msra.mxu0 %v1816
      %3771 = vmatpush.bf16.msra.mxu0 %v1808
      %3772 = vmatpush.bf16.msra.mxu0 %v1800
      %3773 = vmatpush.bf16.msra.mxu0 %v1792
      %3774 = vmatpush.bf16.msra.mxu0 %v1784
      %3775 = vmatpush.bf16.msra.mxu0 %v1776
      %3776 = vmatmul.bf16.gmra.mxu0 %v3570
      %v3777 = vpop.f32.mrf.mxu0
      %v3778 = vadd.f32 0.0, %v3777
      %v3779 = vpop.f32.mrf.mxu0
      %v3780 = vadd.f32 0.0, %v3779
      %3781 = vdwg.mxu0
      %3782 = vmatpush.bf16.msra.mxu0 %v1896
      %3783 = vmatpush.bf16.msra.mxu0 %v1888
      %3784 = vmatpush.bf16.msra.mxu0 %v1880
      %3785 = vmatpush.bf16.msra.mxu0 %v1872
      %3786 = vmatpush.bf16.msra.mxu0 %v1864
      %3787 = vmatpush.bf16.msra.mxu0 %v1856
      %3788 = vmatpush.bf16.msra.mxu0 %v1848
      %3789 = vmatpush.bf16.msra.mxu0 %v1840
      %3790 = vmatmul.bf16.gmra.mxu0 %v3571
      %v3791 = vpop.f32.mrf.mxu0
      %v3792 = vadd.f32 %v3778, %v3791
      %v3793 = vpop.f32.mrf.mxu0
      %v3794 = vadd.f32 %v3780, %v3793
      %3795 = vdwg.mxu0
      %s3796 = scalar_lea.vmem [#allocation2], 192
      %v3797 = vld [vmem:[%s3796] sm:$0xff]
      %v3798 = vld [vmem:[%s3796 + $0x8] sm:$0xff]
      %v3799 = vld [vmem:[%s3796 + $0x10] sm:$0xff]
      %v3800 = vld [vmem:[%s3796 + $0x18] sm:$0xff]
      %v3801 = vld [vmem:[%s3796 + $0x20] sm:$0xff]
      %v3802 = vld [vmem:[%s3796 + $0x28] sm:$0xff]
      %v3803 = vld [vmem:[%s3796 + $0x30] sm:$0xff]
      %v3804 = vld [vmem:[%s3796 + $0x38] sm:$0xff]
      %v3805 = vadd.f32 %v3797, %v3596
      %v3806 = vadd.f32 %v3798, %v3624
      %v3807 = vadd.f32 %v3799, %v3652
      %v3808 = vadd.f32 %v3800, %v3680
      %v3809 = vadd.f32 %v3801, %v3598
      %v3810 = vadd.f32 %v3802, %v3626
      %v3811 = vadd.f32 %v3803, %v3654
      %v3812 = vadd.f32 %v3804, %v3682
      %v3813 = vld [vmem:[#allocation3] sm:$0xff]
      %v3814 = vld [vmem:[#allocation3 + $0x8] sm:$0xff]
      %v3815 = vld [vmem:[#allocation3 + $0x10] sm:$0xff]
      %v3816 = vld [vmem:[#allocation3 + $0x18] sm:$0xff]
      %v3817 = vld [vmem:[#allocation3 + $0x20] sm:$0xff]
      %v3818 = vld [vmem:[#allocation3 + $0x28] sm:$0xff]
      %v3819 = vld [vmem:[#allocation3 + $0x30] sm:$0xff]
      %v3820 = vld [vmem:[#allocation3 + $0x38] sm:$0xff]
      %v3821 = vadd.f32 %v3813, %v3708
      %v3822 = vadd.f32 %v3814, %v3736
      %v3823 = vadd.f32 %v3815, %v3764
      %v3824 = vadd.f32 %v3816, %v3792
      %v3825 = vadd.f32 %v3817, %v3710
      %v3826 = vadd.f32 %v3818, %v3738
      %v3827 = vadd.f32 %v3819, %v3766
      %v3828 = vadd.f32 %v3820, %v3794
      %v3829 = vxor.u32 %v3805, 2147483648
      %v3830 = vxor.u32 %v3809, 2147483648
      %v3831 = vmul.f32 %v3829, 1.442695
      %v3832 = vpow.pop %v3831
      %v3833 = vmul.f32 %v3830, 1.442695
      %v3834 = vpow.pop %v3833
      %v3835 = vadd.f32 %v3832, 1.0
      %v3836 = vadd.f32 %v3834, 1.0
      %v3837 = vrcp.pop %v3835
      %v3838 = vmul.f32 %v3835, %v3837
      %v3839 = vsub.f32 1.0, %v3838
      %v3840 = vmul.f32 %v3837, %v3839
      %v3841 = vadd.f32 %v3837, %v3840
      %vm3842 = vweird.f32 %v3835
      %vm3843 = vweird.f32 %v3837
      %vm3844 = vmor %vm3842, %vm3843
      %v3845 = vsel %vm3844, %v3837, %v3841
      %v3846 = vand.u32 2147483647, %v3835
      %vm3847 = vcmp.eq.f32.partialorder %v3846, 8.507059e+37
      %v3848 = vand.u32 %v3835, 2147483648
      %v3849 = vor.u32 1.1754944e-38, %v3848
      %v3850 = vsel %vm3847, %v3849, %v3845
      %v3851 = vmul.f32 1.0, %v3850
      %v3852 = vrcp.pop %v3836
      %v3853 = vmul.f32 %v3836, %v3852
      %v3854 = vsub.f32 1.0, %v3853
      %v3855 = vmul.f32 %v3852, %v3854
      %v3856 = vadd.f32 %v3852, %v3855
      %vm3857 = vweird.f32 %v3836
      %vm3858 = vweird.f32 %v3852
      %vm3859 = vmor %vm3857, %vm3858
      %v3860 = vsel %vm3859, %v3852, %v3856
      %v3861 = vand.u32 2147483647, %v3836
      %vm3862 = vcmp.eq.f32.partialorder %v3861, 8.507059e+37
      %v3863 = vand.u32 %v3836, 2147483648
      %v3864 = vor.u32 1.1754944e-38, %v3863
      %v3865 = vsel %vm3862, %v3864, %v3860
      %v3866 = vmul.f32 1.0, %v3865
      %v3867 = vxor.u32 %v3806, 2147483648
      %v3868 = vxor.u32 %v3810, 2147483648
      %v3869 = vmul.f32 %v3867, 1.442695
      %v3870 = vpow.pop %v3869
      %v3871 = vmul.f32 %v3868, 1.442695
      %v3872 = vpow.pop %v3871
      %v3873 = vadd.f32 %v3870, 1.0
      %v3874 = vadd.f32 %v3872, 1.0
      %v3875 = vrcp.pop %v3873
      %v3876 = vmul.f32 %v3873, %v3875
      %v3877 = vsub.f32 1.0, %v3876
      %v3878 = vmul.f32 %v3875, %v3877
      %v3879 = vadd.f32 %v3875, %v3878
      %vm3880 = vweird.f32 %v3873
      %vm3881 = vweird.f32 %v3875
      %vm3882 = vmor %vm3880, %vm3881
      %v3883 = vsel %vm3882, %v3875, %v3879
      %v3884 = vand.u32 2147483647, %v3873
      %vm3885 = vcmp.eq.f32.partialorder %v3884, 8.507059e+37
      %v3886 = vand.u32 %v3873, 2147483648
      %v3887 = vor.u32 1.1754944e-38, %v3886
      %v3888 = vsel %vm3885, %v3887, %v3883
      %v3889 = vmul.f32 1.0, %v3888
      %v3890 = vrcp.pop %v3874
      %v3891 = vmul.f32 %v3874, %v3890
      %v3892 = vsub.f32 1.0, %v3891
      %v3893 = vmul.f32 %v3890, %v3892
      %v3894 = vadd.f32 %v3890, %v3893
      %vm3895 = vweird.f32 %v3874
      %vm3896 = vweird.f32 %v3890
      %vm3897 = vmor %vm3895, %vm3896
      %v3898 = vsel %vm3897, %v3890, %v3894
      %v3899 = vand.u32 2147483647, %v3874
      %vm3900 = vcmp.eq.f32.partialorder %v3899, 8.507059e+37
      %v3901 = vand.u32 %v3874, 2147483648
      %v3902 = vor.u32 1.1754944e-38, %v3901
      %v3903 = vsel %vm3900, %v3902, %v3898
      %v3904 = vmul.f32 1.0, %v3903
      %v3905 = vtanh.pop %v3807
      %v3906 = vtanh.pop %v3811
      %v3907 = vxor.u32 %v3808, 2147483648
      %v3908 = vxor.u32 %v3812, 2147483648
      %v3909 = vmul.f32 %v3907, 1.442695
      %v3910 = vpow.pop %v3909
      %v3911 = vmul.f32 %v3908, 1.442695
      %v3912 = vpow.pop %v3911
      %v3913 = vadd.f32 %v3910, 1.0
      %v3914 = vadd.f32 %v3912, 1.0
      %v3915 = vrcp.pop %v3913
      %v3916 = vmul.f32 %v3913, %v3915
      %v3917 = vsub.f32 1.0, %v3916
      %v3918 = vmul.f32 %v3915, %v3917
      %v3919 = vadd.f32 %v3915, %v3918
      %vm3920 = vweird.f32 %v3913
      %vm3921 = vweird.f32 %v3915
      %vm3922 = vmor %vm3920, %vm3921
      %v3923 = vsel %vm3922, %v3915, %v3919
      %v3924 = vand.u32 2147483647, %v3913
      %vm3925 = vcmp.eq.f32.partialorder %v3924, 8.507059e+37
      %v3926 = vand.u32 %v3913, 2147483648
      %v3927 = vor.u32 1.1754944e-38, %v3926
      %v3928 = vsel %vm3925, %v3927, %v3923
      %v3929 = vmul.f32 1.0, %v3928
      %v3930 = vrcp.pop %v3914
      %v3931 = vmul.f32 %v3914, %v3930
      %v3932 = vsub.f32 1.0, %v3931
      %v3933 = vmul.f32 %v3930, %v3932
      %v3934 = vadd.f32 %v3930, %v3933
      %vm3935 = vweird.f32 %v3914
      %vm3936 = vweird.f32 %v3930
      %vm3937 = vmor %vm3935, %vm3936
      %v3938 = vsel %vm3937, %v3930, %v3934
      %v3939 = vand.u32 2147483647, %v3914
      %vm3940 = vcmp.eq.f32.partialorder %v3939, 8.507059e+37
      %v3941 = vand.u32 %v3914, 2147483648
      %v3942 = vor.u32 1.1754944e-38, %v3941
      %v3943 = vsel %vm3940, %v3942, %v3938
      %v3944 = vmul.f32 1.0, %v3943
      %v3945 = vmul.f32 %v3889, %v3434
      %v3946 = vmul.f32 %v3904, %v3435
      %v3947 = vmul.f32 %v3851, %v3905
      %v3948 = vmul.f32 %v3866, %v3906
      %v3949 = vadd.f32 %v3945, %v3947
      %v3950 = vadd.f32 %v3946, %v3948
      %v3951 = vtanh.pop %v3949
      %v3952 = vtanh.pop %v3950
      %v3953 = vmul.f32 %v3929, %v3951
      %v3954 = vmul.f32 %v3944, %v3952
      %v3955 = vxor.u32 %v3821, 2147483648
      %v3956 = vxor.u32 %v3825, 2147483648
      %v3957 = vmul.f32 %v3955, 1.442695
      %v3958 = vpow.pop %v3957
      %v3959 = vmul.f32 %v3956, 1.442695
      %v3960 = vpow.pop %v3959
      %v3961 = vadd.f32 %v3958, 1.0
      %v3962 = vadd.f32 %v3960, 1.0
      %v3963 = vrcp.pop %v3961
      %v3964 = vmul.f32 %v3961, %v3963
      %v3965 = vsub.f32 1.0, %v3964
      %v3966 = vmul.f32 %v3963, %v3965
      %v3967 = vadd.f32 %v3963, %v3966
      %vm3968 = vweird.f32 %v3961
      %vm3969 = vweird.f32 %v3963
      %vm3970 = vmor %vm3968, %vm3969
      %v3971 = vsel %vm3970, %v3963, %v3967
      %v3972 = vand.u32 2147483647, %v3961
      %vm3973 = vcmp.eq.f32.partialorder %v3972, 8.507059e+37
      %v3974 = vand.u32 %v3961, 2147483648
      %v3975 = vor.u32 1.1754944e-38, %v3974
      %v3976 = vsel %vm3973, %v3975, %v3971
      %v3977 = vmul.f32 1.0, %v3976
      %v3978 = vrcp.pop %v3962
      %v3979 = vmul.f32 %v3962, %v3978
      %v3980 = vsub.f32 1.0, %v3979
      %v3981 = vmul.f32 %v3978, %v3980
      %v3982 = vadd.f32 %v3978, %v3981
      %vm3983 = vweird.f32 %v3962
      %vm3984 = vweird.f32 %v3978
      %vm3985 = vmor %vm3983, %vm3984
      %v3986 = vsel %vm3985, %v3978, %v3982
      %v3987 = vand.u32 2147483647, %v3962
      %vm3988 = vcmp.eq.f32.partialorder %v3987, 8.507059e+37
      %v3989 = vand.u32 %v3962, 2147483648
      %v3990 = vor.u32 1.1754944e-38, %v3989
      %v3991 = vsel %vm3988, %v3990, %v3986
      %v3992 = vmul.f32 1.0, %v3991
      %v3993 = vxor.u32 %v3822, 2147483648
      %v3994 = vxor.u32 %v3826, 2147483648
      %v3995 = vmul.f32 %v3993, 1.442695
      %v3996 = vpow.pop %v3995
      %v3997 = vmul.f32 %v3994, 1.442695
      %v3998 = vpow.pop %v3997
      %v3999 = vadd.f32 %v3996, 1.0
      %v4000 = vadd.f32 %v3998, 1.0
      %v4001 = vrcp.pop %v3999
      %v4002 = vmul.f32 %v3999, %v4001
      %v4003 = vsub.f32 1.0, %v4002
      %v4004 = vmul.f32 %v4001, %v4003
      %v4005 = vadd.f32 %v4001, %v4004
      %vm4006 = vweird.f32 %v3999
      %vm4007 = vweird.f32 %v4001
      %vm4008 = vmor %vm4006, %vm4007
      %v4009 = vsel %vm4008, %v4001, %v4005
      %v4010 = vand.u32 2147483647, %v3999
      %vm4011 = vcmp.eq.f32.partialorder %v4010, 8.507059e+37
      %v4012 = vand.u32 %v3999, 2147483648
      %v4013 = vor.u32 1.1754944e-38, %v4012
      %v4014 = vsel %vm4011, %v4013, %v4009
      %v4015 = vmul.f32 1.0, %v4014
      %v4016 = vrcp.pop %v4000
      %v4017 = vmul.f32 %v4000, %v4016
      %v4018 = vsub.f32 1.0, %v4017
      %v4019 = vmul.f32 %v4016, %v4018
      %v4020 = vadd.f32 %v4016, %v4019
      %vm4021 = vweird.f32 %v4000
      %vm4022 = vweird.f32 %v4016
      %vm4023 = vmor %vm4021, %vm4022
      %v4024 = vsel %vm4023, %v4016, %v4020
      %v4025 = vand.u32 2147483647, %v4000
      %vm4026 = vcmp.eq.f32.partialorder %v4025, 8.507059e+37
      %v4027 = vand.u32 %v4000, 2147483648
      %v4028 = vor.u32 1.1754944e-38, %v4027
      %v4029 = vsel %vm4026, %v4028, %v4024
      %v4030 = vmul.f32 1.0, %v4029
      %v4031 = vtanh.pop %v3823
      %v4032 = vtanh.pop %v3827
      %v4033 = vxor.u32 %v3824, 2147483648
      %v4034 = vxor.u32 %v3828, 2147483648
      %v4035 = vmul.f32 %v4033, 1.442695
      %v4036 = vpow.pop %v4035
      %v4037 = vmul.f32 %v4034, 1.442695
      %v4038 = vpow.pop %v4037
      %v4039 = vadd.f32 %v4036, 1.0
      %v4040 = vadd.f32 %v4038, 1.0
      %v4041 = vrcp.pop %v4039
      %v4042 = vmul.f32 %v4039, %v4041
      %v4043 = vsub.f32 1.0, %v4042
      %v4044 = vmul.f32 %v4041, %v4043
      %v4045 = vadd.f32 %v4041, %v4044
      %vm4046 = vweird.f32 %v4039
      %vm4047 = vweird.f32 %v4041
      %vm4048 = vmor %vm4046, %vm4047
      %v4049 = vsel %vm4048, %v4041, %v4045
      %v4050 = vand.u32 2147483647, %v4039
      %vm4051 = vcmp.eq.f32.partialorder %v4050, 8.507059e+37
      %v4052 = vand.u32 %v4039, 2147483648
      %v4053 = vor.u32 1.1754944e-38, %v4052
      %v4054 = vsel %vm4051, %v4053, %v4049
      %v4055 = vmul.f32 1.0, %v4054
      %v4056 = vrcp.pop %v4040
      %v4057 = vmul.f32 %v4040, %v4056
      %v4058 = vsub.f32 1.0, %v4057
      %v4059 = vmul.f32 %v4056, %v4058
      %v4060 = vadd.f32 %v4056, %v4059
      %vm4061 = vweird.f32 %v4040
      %vm4062 = vweird.f32 %v4056
      %vm4063 = vmor %vm4061, %vm4062
      %v4064 = vsel %vm4063, %v4056, %v4060
      %v4065 = vand.u32 2147483647, %v4040
      %vm4066 = vcmp.eq.f32.partialorder %v4065, 8.507059e+37
      %v4067 = vand.u32 %v4040, 2147483648
      %v4068 = vor.u32 1.1754944e-38, %v4067
      %v4069 = vsel %vm4066, %v4068, %v4064
      %v4070 = vmul.f32 1.0, %v4069
      %v4071 = vmul.f32 %v4015, %v3560
      %v4072 = vmul.f32 %v4030, %v3561
      %v4073 = vmul.f32 %v3977, %v4031
      %v4074 = vmul.f32 %v3992, %v4032
      %v4075 = vadd.f32 %v4071, %v4073
      %v4076 = vadd.f32 %v4072, %v4074
      %v4077 = vtanh.pop %v4075
      %v4078 = vtanh.pop %v4076
      %v4079 = vmul.f32 %v4055, %v4077
      %v4080 = vmul.f32 %v4070, %v4078
      %v4081 = vmax.f32 %v3566, %v3953
      %v4082 = vmax.f32 %v3567, %v4079
      %v4083 = vmax.f32 %v3568, %v3954
      %v4084 = vmax.f32 %v3569, %v4080
      %4085 = vst [vmem:[#allocation4] sm:$0xff] %v3953
      %4086 = vst [vmem:[#allocation4 + $0x8] sm:$0xff] %v4079
      %4087 = vst [vmem:[#allocation4 + $0x10] sm:$0xff] %v3954
      %4088 = vst [vmem:[#allocation4 + $0x18] sm:$0xff] %v4080
      %4089 = vst [vmem:[#allocation5] sm:$0xff] %v3949
      %4090 = vst [vmem:[#allocation5 + $0x8] sm:$0xff] %v4075
      %4091 = vst [vmem:[#allocation5 + $0x10] sm:$0xff] %v3950
      %4092 = vst [vmem:[#allocation5 + $0x18] sm:$0xff] %v4076
      %4093 = vst [vmem:[#allocation6] sm:$0xff] %v4081
      %4094 = vst [vmem:[#allocation6 + $0x8] sm:$0xff] %v4082
      %4095 = vst [vmem:[#allocation6 + $0x10] sm:$0xff] %v4083
      %4096 = vst [vmem:[#allocation6 + $0x18] sm:$0xff] %v4084
      %p4097 = scmp.eq.s32.totalorder %s24, 1
      // Predicated region
      $region77: #{sentence_classifier_forward.1} parent=71 // pred_check
        %p4098 = pneg %p4097
      $region78: #{sentence_classifier_forward.1} parent=71 // pred_check_branch
        %4100 = sbr.rel (%p4098) target = $region80
      $region79: #{sentence_classifier_forward.1} parent=71 // pred_region
        %v4101 = vmul.f32 %v4081, %v4083
        %v4102 = vmul.f32 %v4082, %v4084
        %v4103 = vsub.f32 %v4081, %v4083
        %v4104 = vsub.f32 %v4082, %v4084
        %v4105 = vand.u32 2147483647, %v4103
        %v4106 = vand.u32 2147483647, %v4104
        %v4107 = vpack.c.bf16 %v4081, %v4081
        %v4108 = vpack.c.bf16 %v4082, %v4082
        %v4109 = vpack.c.bf16 %v4083, %v4083
        %v4110 = vpack.c.bf16 %v4084, %v4084
        %v4111 = vpack.c.bf16 %v4101, %v4101
        %v4112 = vpack.c.bf16 %v4102, %v4102
        %v4113 = vpack.c.bf16 %v4105, %v4105
        %v4114 = vpack.c.bf16 %v4106, %v4106
        %v4115 = vld [vmem:[%s7] sm:$0xf]
        %v4116 = vld [vmem:[%s7 + $0x4] sm:$0xf]
        %v4117 = vld [vmem:[%s7 + $0x8] sm:$0xf]
        %v4118 = vld [vmem:[%s7 + $0xc] sm:$0xf]
        %v4119 = vld [vmem:[%s7 + $0x10] sm:$0xf]
        %v4120 = vld [vmem:[%s7 + $0x14] sm:$0xf]
        %v4121 = vld [vmem:[%s7 + $0x18] sm:$0xf]
        %v4122 = vld [vmem:[%s7 + $0x1c] sm:$0xf]
        %v4123 = vld [vmem:[%s7 + $0x20] sm:$0xf]
        %v4124 = vld [vmem:[%s7 + $0x24] sm:$0xf]
        %v4125 = vld [vmem:[%s7 + $0x28] sm:$0xf]
        %v4126 = vld [vmem:[%s7 + $0x2c] sm:$0xf]
        %v4127 = vld [vmem:[%s7 + $0x30] sm:$0xf]
        %v4128 = vld [vmem:[%s7 + $0x34] sm:$0xf]
        %v4129 = vld [vmem:[%s7 + $0x38] sm:$0xf]
        %v4130 = vld [vmem:[%s7 + $0x3c] sm:$0xf]
        %v4131 = vld [vmem:[%s7 + $0x40] sm:$0xf]
        %v4132 = vld [vmem:[%s7 + $0x44] sm:$0xf]
        %v4133 = vld [vmem:[%s7 + $0x48] sm:$0xf]
        %v4134 = vld [vmem:[%s7 + $0x4c] sm:$0xf]
        %v4135 = vld [vmem:[%s7 + $0x50] sm:$0xf]
        %v4136 = vld [vmem:[%s7 + $0x54] sm:$0xf]
        %v4137 = vld [vmem:[%s7 + $0x58] sm:$0xf]
        %v4138 = vld [vmem:[%s7 + $0x5c] sm:$0xf]
        %v4139 = vld [vmem:[%s7 + $0x60] sm:$0xf]
        %v4140 = vld [vmem:[%s7 + $0x64] sm:$0xf]
        %v4141 = vld [vmem:[%s7 + $0x68] sm:$0xf]
        %v4142 = vld [vmem:[%s7 + $0x6c] sm:$0xf]
        %v4143 = vld [vmem:[%s7 + $0x70] sm:$0xf]
        %v4144 = vld [vmem:[%s7 + $0x74] sm:$0xf]
        %v4145 = vld [vmem:[%s7 + $0x78] sm:$0xf]
        %v4146 = vld [vmem:[%s7 + $0x7c] sm:$0xf]
        %v4147 = vld [vmem:[%s7 + $0x80] sm:$0xf]
        %v4148 = vld [vmem:[%s7 + $0x84] sm:$0xf]
        %v4149 = vld [vmem:[%s7 + $0x88] sm:$0xf]
        %v4150 = vld [vmem:[%s7 + $0x8c] sm:$0xf]
        %v4151 = vld [vmem:[%s7 + $0x90] sm:$0xf]
        %v4152 = vld [vmem:[%s7 + $0x94] sm:$0xf]
        %v4153 = vld [vmem:[%s7 + $0x98] sm:$0xf]
        %v4154 = vld [vmem:[%s7 + $0x9c] sm:$0xf]
        %v4155 = vld [vmem:[%s7 + $0xa0] sm:$0xf]
        %v4156 = vld [vmem:[%s7 + $0xa4] sm:$0xf]
        %v4157 = vld [vmem:[%s7 + $0xa8] sm:$0xf]
        %v4158 = vld [vmem:[%s7 + $0xac] sm:$0xf]
        %v4159 = vld [vmem:[%s7 + $0xb0] sm:$0xf]
        %v4160 = vld [vmem:[%s7 + $0xb4] sm:$0xf]
        %v4161 = vld [vmem:[%s7 + $0xb8] sm:$0xf]
        %v4162 = vld [vmem:[%s7 + $0xbc] sm:$0xf]
        %v4163 = vld [vmem:[%s7 + $0xc0] sm:$0xf]
        %v4164 = vld [vmem:[%s7 + $0xc4] sm:$0xf]
        %v4165 = vld [vmem:[%s7 + $0xc8] sm:$0xf]
        %v4166 = vld [vmem:[%s7 + $0xcc] sm:$0xf]
        %v4167 = vld [vmem:[%s7 + $0xd0] sm:$0xf]
        %v4168 = vld [vmem:[%s7 + $0xd4] sm:$0xf]
        %v4169 = vld [vmem:[%s7 + $0xd8] sm:$0xf]
        %v4170 = vld [vmem:[%s7 + $0xdc] sm:$0xf]
        %v4171 = vld [vmem:[%s7 + $0xe0] sm:$0xf]
        %v4172 = vld [vmem:[%s7 + $0xe4] sm:$0xf]
        %v4173 = vld [vmem:[%s7 + $0xe8] sm:$0xf]
        %v4174 = vld [vmem:[%s7 + $0xec] sm:$0xf]
        %v4175 = vld [vmem:[%s7 + $0xf0] sm:$0xf]
        %v4176 = vld [vmem:[%s7 + $0xf4] sm:$0xf]
        %v4177 = vld [vmem:[%s7 + $0xf8] sm:$0xf]
        %v4178 = vld [vmem:[%s7 + $0xfc] sm:$0xf]
        %v4179 = vld [vmem:[%s7 + $0x100] sm:$0xf]
        %v4180 = vld [vmem:[%s7 + $0x104] sm:$0xf]
        %v4181 = vld [vmem:[%s7 + $0x108] sm:$0xf]
        %v4182 = vld [vmem:[%s7 + $0x10c] sm:$0xf]
        %v4183 = vld [vmem:[%s7 + $0x110] sm:$0xf]
        %v4184 = vld [vmem:[%s7 + $0x114] sm:$0xf]
        %v4185 = vld [vmem:[%s7 + $0x118] sm:$0xf]
        %v4186 = vld [vmem:[%s7 + $0x11c] sm:$0xf]
        %v4187 = vld [vmem:[%s7 + $0x120] sm:$0xf]
        %v4188 = vld [vmem:[%s7 + $0x124] sm:$0xf]
        %v4189 = vld [vmem:[%s7 + $0x128] sm:$0xf]
        %v4190 = vld [vmem:[%s7 + $0x12c] sm:$0xf]
        %v4191 = vld [vmem:[%s7 + $0x130] sm:$0xf]
        %v4192 = vld [vmem:[%s7 + $0x134] sm:$0xf]
        %v4193 = vld [vmem:[%s7 + $0x138] sm:$0xf]
        %v4194 = vld [vmem:[%s7 + $0x13c] sm:$0xf]
        %v4195 = vld [vmem:[%s7 + $0x140] sm:$0xf]
        %v4196 = vld [vmem:[%s7 + $0x144] sm:$0xf]
        %v4197 = vld [vmem:[%s7 + $0x148] sm:$0xf]
        %v4198 = vld [vmem:[%s7 + $0x14c] sm:$0xf]
        %v4199 = vld [vmem:[%s7 + $0x150] sm:$0xf]
        %v4200 = vld [vmem:[%s7 + $0x154] sm:$0xf]
        %v4201 = vld [vmem:[%s7 + $0x158] sm:$0xf]
        %v4202 = vld [vmem:[%s7 + $0x15c] sm:$0xf]
        %v4203 = vld [vmem:[%s7 + $0x160] sm:$0xf]
        %v4204 = vld [vmem:[%s7 + $0x164] sm:$0xf]
        %v4205 = vld [vmem:[%s7 + $0x168] sm:$0xf]
        %v4206 = vld [vmem:[%s7 + $0x16c] sm:$0xf]
        %v4207 = vld [vmem:[%s7 + $0x170] sm:$0xf]
        %v4208 = vld [vmem:[%s7 + $0x174] sm:$0xf]
        %v4209 = vld [vmem:[%s7 + $0x178] sm:$0xf]
        %v4210 = vld [vmem:[%s7 + $0x17c] sm:$0xf]
        %v4211 = vld [vmem:[%s7 + $0x180] sm:$0xf]
        %v4212 = vld [vmem:[%s7 + $0x184] sm:$0xf]
        %v4213 = vld [vmem:[%s7 + $0x188] sm:$0xf]
        %v4214 = vld [vmem:[%s7 + $0x18c] sm:$0xf]
        %v4215 = vld [vmem:[%s7 + $0x190] sm:$0xf]
        %v4216 = vld [vmem:[%s7 + $0x194] sm:$0xf]
        %v4217 = vld [vmem:[%s7 + $0x198] sm:$0xf]
        %v4218 = vld [vmem:[%s7 + $0x19c] sm:$0xf]
        %v4219 = vld [vmem:[%s7 + $0x1a0] sm:$0xf]
        %v4220 = vld [vmem:[%s7 + $0x1a4] sm:$0xf]
        %v4221 = vld [vmem:[%s7 + $0x1a8] sm:$0xf]
        %v4222 = vld [vmem:[%s7 + $0x1ac] sm:$0xf]
        %v4223 = vld [vmem:[%s7 + $0x1b0] sm:$0xf]
        %v4224 = vld [vmem:[%s7 + $0x1b4] sm:$0xf]
        %v4225 = vld [vmem:[%s7 + $0x1b8] sm:$0xf]
        %v4226 = vld [vmem:[%s7 + $0x1bc] sm:$0xf]
        %v4227 = vld [vmem:[%s7 + $0x1c0] sm:$0xf]
        %v4228 = vld [vmem:[%s7 + $0x1c4] sm:$0xf]
        %v4229 = vld [vmem:[%s7 + $0x1c8] sm:$0xf]
        %v4230 = vld [vmem:[%s7 + $0x1cc] sm:$0xf]
        %v4231 = vld [vmem:[%s7 + $0x1d0] sm:$0xf]
        %v4232 = vld [vmem:[%s7 + $0x1d4] sm:$0xf]
        %v4233 = vld [vmem:[%s7 + $0x1d8] sm:$0xf]
        %v4234 = vld [vmem:[%s7 + $0x1dc] sm:$0xf]
        %v4235 = vld [vmem:[%s7 + $0x1e0] sm:$0xf]
        %v4236 = vld [vmem:[%s7 + $0x1e4] sm:$0xf]
        %v4237 = vld [vmem:[%s7 + $0x1e8] sm:$0xf]
        %v4238 = vld [vmem:[%s7 + $0x1ec] sm:$0xf]
        %v4239 = vld [vmem:[%s7 + $0x1f0] sm:$0xf]
        %v4240 = vld [vmem:[%s7 + $0x1f4] sm:$0xf]
        %v4241 = vld [vmem:[%s7 + $0x1f8] sm:$0xf]
        %v4242 = vld [vmem:[%s7 + $0x1fc] sm:$0xf]
        %v4243 = vld [vmem:[%s8] sm:$0x1]
        %v4245 = vperm.slane %v4243, 0
        %v4375 = vunpack.c.l.b16 %v4115
        %v4376 = vunpack.c.l.b16 %v4116
        %v4377 = vunpack.c.l.b16 %v4117
        %v4378 = vunpack.c.l.b16 %v4118
        %v4379 = vunpack.c.l.b16 %v4119
        %v4380 = vunpack.c.l.b16 %v4120
        %v4381 = vunpack.c.l.b16 %v4121
        %v4382 = vunpack.c.l.b16 %v4122
        %v4383 = vunpack.c.l.b16 %v4123
        %v4384 = vunpack.c.l.b16 %v4124
        %v4385 = vunpack.c.l.b16 %v4125
        %v4386 = vunpack.c.l.b16 %v4126
        %v4387 = vunpack.c.l.b16 %v4127
        %v4388 = vunpack.c.l.b16 %v4128
        %v4389 = vunpack.c.l.b16 %v4129
        %v4390 = vunpack.c.l.b16 %v4130
        %v4391 = vunpack.c.l.b16 %v4131
        %v4392 = vunpack.c.l.b16 %v4132
        %v4393 = vunpack.c.l.b16 %v4133
        %v4394 = vunpack.c.l.b16 %v4134
        %v4395 = vunpack.c.l.b16 %v4135
        %v4396 = vunpack.c.l.b16 %v4136
        %v4397 = vunpack.c.l.b16 %v4137
        %v4398 = vunpack.c.l.b16 %v4138
        %v4399 = vunpack.c.l.b16 %v4139
        %v4400 = vunpack.c.l.b16 %v4140
        %v4401 = vunpack.c.l.b16 %v4141
        %v4402 = vunpack.c.l.b16 %v4142
        %v4403 = vunpack.c.l.b16 %v4143
        %v4404 = vunpack.c.l.b16 %v4144
        %v4405 = vunpack.c.l.b16 %v4145
        %v4406 = vunpack.c.l.b16 %v4146
        %v4407 = vunpack.c.l.b16 %v4147
        %v4408 = vunpack.c.l.b16 %v4148
        %v4409 = vunpack.c.l.b16 %v4149
        %v4410 = vunpack.c.l.b16 %v4150
        %v4411 = vunpack.c.l.b16 %v4151
        %v4412 = vunpack.c.l.b16 %v4152
        %v4413 = vunpack.c.l.b16 %v4153
        %v4414 = vunpack.c.l.b16 %v4154
        %v4415 = vunpack.c.l.b16 %v4155
        %v4416 = vunpack.c.l.b16 %v4156
        %v4417 = vunpack.c.l.b16 %v4157
        %v4418 = vunpack.c.l.b16 %v4158
        %v4419 = vunpack.c.l.b16 %v4159
        %v4420 = vunpack.c.l.b16 %v4160
        %v4421 = vunpack.c.l.b16 %v4161
        %v4422 = vunpack.c.l.b16 %v4162
        %v4423 = vunpack.c.l.b16 %v4163
        %v4424 = vunpack.c.l.b16 %v4164
        %v4425 = vunpack.c.l.b16 %v4165
        %v4426 = vunpack.c.l.b16 %v4166
        %v4427 = vunpack.c.l.b16 %v4167
        %v4428 = vunpack.c.l.b16 %v4168
        %v4429 = vunpack.c.l.b16 %v4169
        %v4430 = vunpack.c.l.b16 %v4170
        %v4431 = vunpack.c.l.b16 %v4171
        %v4432 = vunpack.c.l.b16 %v4172
        %v4433 = vunpack.c.l.b16 %v4173
        %v4434 = vunpack.c.l.b16 %v4174
        %v4435 = vunpack.c.l.b16 %v4175
        %v4436 = vunpack.c.l.b16 %v4176
        %v4437 = vunpack.c.l.b16 %v4177
        %v4438 = vunpack.c.l.b16 %v4178
        %v4439 = vunpack.c.l.b16 %v4179
        %v4440 = vunpack.c.l.b16 %v4180
        %v4441 = vunpack.c.l.b16 %v4181
        %v4442 = vunpack.c.l.b16 %v4182
        %v4443 = vunpack.c.l.b16 %v4183
        %v4444 = vunpack.c.l.b16 %v4184
        %v4445 = vunpack.c.l.b16 %v4185
        %v4446 = vunpack.c.l.b16 %v4186
        %v4447 = vunpack.c.l.b16 %v4187
        %v4448 = vunpack.c.l.b16 %v4188
        %v4449 = vunpack.c.l.b16 %v4189
        %v4450 = vunpack.c.l.b16 %v4190
        %v4451 = vunpack.c.l.b16 %v4191
        %v4452 = vunpack.c.l.b16 %v4192
        %v4453 = vunpack.c.l.b16 %v4193
        %v4454 = vunpack.c.l.b16 %v4194
        %v4455 = vunpack.c.l.b16 %v4195
        %v4456 = vunpack.c.l.b16 %v4196
        %v4457 = vunpack.c.l.b16 %v4197
        %v4458 = vunpack.c.l.b16 %v4198
        %v4459 = vunpack.c.l.b16 %v4199
        %v4460 = vunpack.c.l.b16 %v4200
        %v4461 = vunpack.c.l.b16 %v4201
        %v4462 = vunpack.c.l.b16 %v4202
        %v4463 = vunpack.c.l.b16 %v4203
        %v4464 = vunpack.c.l.b16 %v4204
        %v4465 = vunpack.c.l.b16 %v4205
        %v4466 = vunpack.c.l.b16 %v4206
        %v4467 = vunpack.c.l.b16 %v4207
        %v4468 = vunpack.c.l.b16 %v4208
        %v4469 = vunpack.c.l.b16 %v4209
        %v4470 = vunpack.c.l.b16 %v4210
        %v4471 = vunpack.c.l.b16 %v4211
        %v4472 = vunpack.c.l.b16 %v4212
        %v4473 = vunpack.c.l.b16 %v4213
        %v4474 = vunpack.c.l.b16 %v4214
        %v4475 = vunpack.c.l.b16 %v4215
        %v4476 = vunpack.c.l.b16 %v4216
        %v4477 = vunpack.c.l.b16 %v4217
        %v4478 = vunpack.c.l.b16 %v4218
        %v4479 = vunpack.c.l.b16 %v4219
        %v4480 = vunpack.c.l.b16 %v4220
        %v4481 = vunpack.c.l.b16 %v4221
        %v4482 = vunpack.c.l.b16 %v4222
        %v4483 = vunpack.c.l.b16 %v4223
        %v4484 = vunpack.c.l.b16 %v4224
        %v4485 = vunpack.c.l.b16 %v4225
        %v4486 = vunpack.c.l.b16 %v4226
        %v4487 = vunpack.c.l.b16 %v4227
        %v4488 = vunpack.c.l.b16 %v4228
        %v4489 = vunpack.c.l.b16 %v4229
        %v4490 = vunpack.c.l.b16 %v4230
        %v4491 = vunpack.c.l.b16 %v4231
        %v4492 = vunpack.c.l.b16 %v4232
        %v4493 = vunpack.c.l.b16 %v4233
        %v4494 = vunpack.c.l.b16 %v4234
        %v4495 = vunpack.c.l.b16 %v4235
        %v4496 = vunpack.c.l.b16 %v4236
        %v4497 = vunpack.c.l.b16 %v4237
        %v4498 = vunpack.c.l.b16 %v4238
        %v4499 = vunpack.c.l.b16 %v4239
        %v4500 = vunpack.c.l.b16 %v4240
        %v4501 = vunpack.c.l.b16 %v4241
        %v4502 = vunpack.c.l.b16 %v4242
        %v4503 = vpack.c.b16 %v4376, %v4375
        %v4504 = vpack.c.b16 %v4378, %v4377
        %v4505 = vpack.c.b16 %v4380, %v4379
        %v4506 = vpack.c.b16 %v4382, %v4381
        %v4507 = vpack.c.b16 %v4384, %v4383
        %v4508 = vpack.c.b16 %v4386, %v4385
        %v4509 = vpack.c.b16 %v4388, %v4387
        %v4510 = vpack.c.b16 %v4390, %v4389
        %v4511 = vpack.c.b16 %v4392, %v4391
        %v4512 = vpack.c.b16 %v4394, %v4393
        %v4513 = vpack.c.b16 %v4396, %v4395
        %v4514 = vpack.c.b16 %v4398, %v4397
        %v4515 = vpack.c.b16 %v4400, %v4399
        %v4516 = vpack.c.b16 %v4402, %v4401
        %v4517 = vpack.c.b16 %v4404, %v4403
        %v4518 = vpack.c.b16 %v4406, %v4405
        %v4519 = vpack.c.b16 %v4408, %v4407
        %v4520 = vpack.c.b16 %v4410, %v4409
        %v4521 = vpack.c.b16 %v4412, %v4411
        %v4522 = vpack.c.b16 %v4414, %v4413
        %v4523 = vpack.c.b16 %v4416, %v4415
        %v4524 = vpack.c.b16 %v4418, %v4417
        %v4525 = vpack.c.b16 %v4420, %v4419
        %v4526 = vpack.c.b16 %v4422, %v4421
        %v4527 = vpack.c.b16 %v4424, %v4423
        %v4528 = vpack.c.b16 %v4426, %v4425
        %v4529 = vpack.c.b16 %v4428, %v4427
        %v4530 = vpack.c.b16 %v4430, %v4429
        %v4531 = vpack.c.b16 %v4432, %v4431
        %v4532 = vpack.c.b16 %v4434, %v4433
        %v4533 = vpack.c.b16 %v4436, %v4435
        %v4534 = vpack.c.b16 %v4438, %v4437
        %v4535 = vpack.c.b16 %v4440, %v4439
        %v4536 = vpack.c.b16 %v4442, %v4441
        %v4537 = vpack.c.b16 %v4444, %v4443
        %v4538 = vpack.c.b16 %v4446, %v4445
        %v4539 = vpack.c.b16 %v4448, %v4447
        %v4540 = vpack.c.b16 %v4450, %v4449
        %v4541 = vpack.c.b16 %v4452, %v4451
        %v4542 = vpack.c.b16 %v4454, %v4453
        %v4543 = vpack.c.b16 %v4456, %v4455
        %v4544 = vpack.c.b16 %v4458, %v4457
        %v4545 = vpack.c.b16 %v4460, %v4459
        %v4546 = vpack.c.b16 %v4462, %v4461
        %v4547 = vpack.c.b16 %v4464, %v4463
        %v4548 = vpack.c.b16 %v4466, %v4465
        %v4549 = vpack.c.b16 %v4468, %v4467
        %v4550 = vpack.c.b16 %v4470, %v4469
        %v4551 = vpack.c.b16 %v4472, %v4471
        %v4552 = vpack.c.b16 %v4474, %v4473
        %v4553 = vpack.c.b16 %v4476, %v4475
        %v4554 = vpack.c.b16 %v4478, %v4477
        %v4555 = vpack.c.b16 %v4480, %v4479
        %v4556 = vpack.c.b16 %v4482, %v4481
        %v4557 = vpack.c.b16 %v4484, %v4483
        %v4558 = vpack.c.b16 %v4486, %v4485
        %v4559 = vpack.c.b16 %v4488, %v4487
        %v4560 = vpack.c.b16 %v4490, %v4489
        %v4561 = vpack.c.b16 %v4492, %v4491
        %v4562 = vpack.c.b16 %v4494, %v4493
        %v4563 = vpack.c.b16 %v4496, %v4495
        %v4564 = vpack.c.b16 %v4498, %v4497
        %v4565 = vpack.c.b16 %v4500, %v4499
        %v4566 = vpack.c.b16 %v4502, %v4501
        %4631 = vmatpush.bf16.msra.mxu0 %v4510
        %4632 = vmatpush.bf16.msra.mxu0 %v4509
        %4633 = vmatpush.bf16.msra.mxu0 %v4508
        %4634 = vmatpush.bf16.msra.mxu0 %v4507
        %4635 = vmatpush.bf16.msra.mxu0 %v4506
        %4636 = vmatpush.bf16.msra.mxu0 %v4505
        %4637 = vmatpush.bf16.msra.mxu0 %v4504
        %4638 = vmatpush.bf16.msra.mxu0 %v4503
        %4639 = vmatmul.bf16.gmra.mxu0 %v4107
        %v4640 = vpop.f32.mrf.mxu0
        %v4641 = vadd.f32 %v4245, %v4640
        %v4642 = vpop.f32.mrf.mxu0
        %4643 = vdwg.mxu0
        %4644 = vmatpush.bf16.msra.mxu0 %v4518
        %4645 = vmatpush.bf16.msra.mxu0 %v4517
        %4646 = vmatpush.bf16.msra.mxu0 %v4516
        %4647 = vmatpush.bf16.msra.mxu0 %v4515
        %4648 = vmatpush.bf16.msra.mxu0 %v4514
        %4649 = vmatpush.bf16.msra.mxu0 %v4513
        %4650 = vmatpush.bf16.msra.mxu0 %v4512
        %4651 = vmatpush.bf16.msra.mxu0 %v4511
        %4652 = vmatmul.bf16.gmra.mxu0 %v4108
        %v4653 = vpop.f32.mrf.mxu0
        %v4654 = vadd.f32 %v4641, %v4653
        %v4655 = vpop.f32.mrf.mxu0
        %4656 = vdwg.mxu0
        %4657 = vmatpush.bf16.msra.mxu0 %v4526
        %4658 = vmatpush.bf16.msra.mxu0 %v4525
        %4659 = vmatpush.bf16.msra.mxu0 %v4524
        %4660 = vmatpush.bf16.msra.mxu0 %v4523
        %4661 = vmatpush.bf16.msra.mxu0 %v4522
        %4662 = vmatpush.bf16.msra.mxu0 %v4521
        %4663 = vmatpush.bf16.msra.mxu0 %v4520
        %4664 = vmatpush.bf16.msra.mxu0 %v4519
        %4665 = vmatmul.bf16.gmra.mxu0 %v4109
        %v4666 = vpop.f32.mrf.mxu0
        %v4667 = vadd.f32 %v4654, %v4666
        %v4668 = vpop.f32.mrf.mxu0
        %4669 = vdwg.mxu0
        %4670 = vmatpush.bf16.msra.mxu0 %v4534
        %4671 = vmatpush.bf16.msra.mxu0 %v4533
        %4672 = vmatpush.bf16.msra.mxu0 %v4532
        %4673 = vmatpush.bf16.msra.mxu0 %v4531
        %4674 = vmatpush.bf16.msra.mxu0 %v4530
        %4675 = vmatpush.bf16.msra.mxu0 %v4529
        %4676 = vmatpush.bf16.msra.mxu0 %v4528
        %4677 = vmatpush.bf16.msra.mxu0 %v4527
        %4678 = vmatmul.bf16.gmra.mxu0 %v4110
        %v4679 = vpop.f32.mrf.mxu0
        %v4680 = vadd.f32 %v4667, %v4679
        %v4681 = vpop.f32.mrf.mxu0
        %4682 = vdwg.mxu0
        %4683 = vmatpush.bf16.msra.mxu0 %v4542
        %4684 = vmatpush.bf16.msra.mxu0 %v4541
        %4685 = vmatpush.bf16.msra.mxu0 %v4540
        %4686 = vmatpush.bf16.msra.mxu0 %v4539
        %4687 = vmatpush.bf16.msra.mxu0 %v4538
        %4688 = vmatpush.bf16.msra.mxu0 %v4537
        %4689 = vmatpush.bf16.msra.mxu0 %v4536
        %4690 = vmatpush.bf16.msra.mxu0 %v4535
        %4691 = vmatmul.bf16.gmra.mxu0 %v4111
        %v4692 = vpop.f32.mrf.mxu0
        %v4693 = vadd.f32 %v4680, %v4692
        %v4694 = vpop.f32.mrf.mxu0
        %4695 = vdwg.mxu0
        %4696 = vmatpush.bf16.msra.mxu0 %v4550
        %4697 = vmatpush.bf16.msra.mxu0 %v4549
        %4698 = vmatpush.bf16.msra.mxu0 %v4548
        %4699 = vmatpush.bf16.msra.mxu0 %v4547
        %4700 = vmatpush.bf16.msra.mxu0 %v4546
        %4701 = vmatpush.bf16.msra.mxu0 %v4545
        %4702 = vmatpush.bf16.msra.mxu0 %v4544
        %4703 = vmatpush.bf16.msra.mxu0 %v4543
        %4704 = vmatmul.bf16.gmra.mxu0 %v4112
        %v4705 = vpop.f32.mrf.mxu0
        %v4706 = vadd.f32 %v4693, %v4705
        %v4707 = vpop.f32.mrf.mxu0
        %4708 = vdwg.mxu0
        %4709 = vmatpush.bf16.msra.mxu0 %v4558
        %4710 = vmatpush.bf16.msra.mxu0 %v4557
        %4711 = vmatpush.bf16.msra.mxu0 %v4556
        %4712 = vmatpush.bf16.msra.mxu0 %v4555
        %4713 = vmatpush.bf16.msra.mxu0 %v4554
        %4714 = vmatpush.bf16.msra.mxu0 %v4553
        %4715 = vmatpush.bf16.msra.mxu0 %v4552
        %4716 = vmatpush.bf16.msra.mxu0 %v4551
        %4717 = vmatmul.bf16.gmra.mxu0 %v4113
        %v4718 = vpop.f32.mrf.mxu0
        %v4719 = vadd.f32 %v4706, %v4718
        %v4720 = vpop.f32.mrf.mxu0
        %4721 = vdwg.mxu0
        %4722 = vmatpush.bf16.msra.mxu0 %v4566
        %4723 = vmatpush.bf16.msra.mxu0 %v4565
        %4724 = vmatpush.bf16.msra.mxu0 %v4564
        %4725 = vmatpush.bf16.msra.mxu0 %v4563
        %4726 = vmatpush.bf16.msra.mxu0 %v4562
        %4727 = vmatpush.bf16.msra.mxu0 %v4561
        %4728 = vmatpush.bf16.msra.mxu0 %v4560
        %4729 = vmatpush.bf16.msra.mxu0 %v4559
        %4730 = vmatmul.bf16.gmra.mxu0 %v4114
        %v4731 = vpop.f32.mrf.mxu0
        %v4732 = vadd.f32 %v4719, %v4731
        %v4733 = vpop.f32.mrf.mxu0
        %4734 = vdwg.mxu0
        %v4735 = vtanh.pop %v4732
        %v4736 = vpack.c.bf16 %v4735, %v4735
        %v4737 = vld [vmem:[%s9] sm:$0xf]
        %v4738 = vld [vmem:[%s9 + $0x4] sm:$0xf]
        %v4739 = vld [vmem:[%s9 + $0x8] sm:$0xf]
        %v4740 = vld [vmem:[%s9 + $0xc] sm:$0xf]
        %v4741 = vld [vmem:[%s9 + $0x10] sm:$0xf]
        %v4742 = vld [vmem:[%s9 + $0x14] sm:$0xf]
        %v4743 = vld [vmem:[%s9 + $0x18] sm:$0xf]
        %v4744 = vld [vmem:[%s9 + $0x1c] sm:$0xf]
        %v4745 = vld [vmem:[%s9 + $0x20] sm:$0xf]
        %v4746 = vld [vmem:[%s9 + $0x24] sm:$0xf]
        %v4747 = vld [vmem:[%s9 + $0x28] sm:$0xf]
        %v4748 = vld [vmem:[%s9 + $0x2c] sm:$0xf]
        %v4749 = vld [vmem:[%s9 + $0x30] sm:$0xf]
        %v4750 = vld [vmem:[%s9 + $0x34] sm:$0xf]
        %v4751 = vld [vmem:[%s9 + $0x38] sm:$0xf]
        %v4752 = vld [vmem:[%s9 + $0x3c] sm:$0xf]
        %v4753 = vld [vmem:[%s10] sm:$0x1]
        %v4755 = vperm.slane %v4753, 0
        %v4773 = vunpack.c.l.b16 %v4737
        %v4774 = vunpack.c.l.b16 %v4738
        %v4775 = vunpack.c.l.b16 %v4739
        %v4776 = vunpack.c.l.b16 %v4740
        %v4777 = vunpack.c.l.b16 %v4741
        %v4778 = vunpack.c.l.b16 %v4742
        %v4779 = vunpack.c.l.b16 %v4743
        %v4780 = vunpack.c.l.b16 %v4744
        %v4781 = vunpack.c.l.b16 %v4745
        %v4782 = vunpack.c.l.b16 %v4746
        %v4783 = vunpack.c.l.b16 %v4747
        %v4784 = vunpack.c.l.b16 %v4748
        %v4785 = vunpack.c.l.b16 %v4749
        %v4786 = vunpack.c.l.b16 %v4750
        %v4787 = vunpack.c.l.b16 %v4751
        %v4788 = vunpack.c.l.b16 %v4752
        %v4789 = vpack.c.b16 %v4774, %v4773
        %v4790 = vpack.c.b16 %v4776, %v4775
        %v4791 = vpack.c.b16 %v4778, %v4777
        %v4792 = vpack.c.b16 %v4780, %v4779
        %v4793 = vpack.c.b16 %v4782, %v4781
        %v4794 = vpack.c.b16 %v4784, %v4783
        %v4795 = vpack.c.b16 %v4786, %v4785
        %v4796 = vpack.c.b16 %v4788, %v4787
        %4805 = vmatpush.bf16.msra.mxu0 %v4796
        %4806 = vmatpush.bf16.msra.mxu0 %v4795
        %4807 = vmatpush.bf16.msra.mxu0 %v4794
        %4808 = vmatpush.bf16.msra.mxu0 %v4793
        %4809 = vmatpush.bf16.msra.mxu0 %v4792
        %4810 = vmatpush.bf16.msra.mxu0 %v4791
        %4811 = vmatpush.bf16.msra.mxu0 %v4790
        %4812 = vmatpush.bf16.msra.mxu0 %v4789
        %4813 = vmatmul.bf16.gmra.mxu0 %v4736
        %v4814 = vpop.f32.mrf.mxu0
        %v4815 = vadd.f32 %v4755, %v4814
        %v4816 = vpop.f32.mrf.mxu0
        %4817 = vdwg.mxu0
        %v4818 = vtanh.pop %v4815
        %v4819 = vpack.c.bf16 %v4818, %v4818
        %v4820 = vld [vmem:[%s11] sm:$0xf]
        %v4821 = vld [vmem:[%s11 + $0x4] sm:$0xf]
        %v4822 = vld [vmem:[%s11 + $0x8] sm:$0xf]
        %v4823 = vld [vmem:[%s11 + $0xc] sm:$0xf]
        %v4824 = vld [vmem:[%s11 + $0x10] sm:$0xf]
        %v4825 = vld [vmem:[%s11 + $0x14] sm:$0xf]
        %v4826 = vld [vmem:[%s11 + $0x18] sm:$0xf]
        %v4827 = vld [vmem:[%s11 + $0x1c] sm:$0xf]
        %v4828 = vld [vmem:[%s11 + $0x20] sm:$0xf]
        %v4829 = vld [vmem:[%s11 + $0x24] sm:$0xf]
        %v4830 = vld [vmem:[%s11 + $0x28] sm:$0xf]
        %v4831 = vld [vmem:[%s11 + $0x2c] sm:$0xf]
        %v4832 = vld [vmem:[%s11 + $0x30] sm:$0xf]
        %v4833 = vld [vmem:[%s11 + $0x34] sm:$0xf]
        %v4834 = vld [vmem:[%s11 + $0x38] sm:$0xf]
        %v4835 = vld [vmem:[%s11 + $0x3c] sm:$0xf]
        %v4836 = vld [vmem:[%s12] sm:$0x1]
        %v4838 = vperm.slane %v4836, 0
        %v4856 = vunpack.c.l.b16 %v4820
        %v4857 = vunpack.c.l.b16 %v4821
        %v4858 = vunpack.c.l.b16 %v4822
        %v4859 = vunpack.c.l.b16 %v4823
        %v4860 = vunpack.c.l.b16 %v4824
        %v4861 = vunpack.c.l.b16 %v4825
        %v4862 = vunpack.c.l.b16 %v4826
        %v4863 = vunpack.c.l.b16 %v4827
        %v4864 = vunpack.c.l.b16 %v4828
        %v4865 = vunpack.c.l.b16 %v4829
        %v4866 = vunpack.c.l.b16 %v4830
        %v4867 = vunpack.c.l.b16 %v4831
        %v4868 = vunpack.c.l.b16 %v4832
        %v4869 = vunpack.c.l.b16 %v4833
        %v4870 = vunpack.c.l.b16 %v4834
        %v4871 = vunpack.c.l.b16 %v4835
        %v4872 = vpack.c.b16 %v4857, %v4856
        %v4873 = vpack.c.b16 %v4859, %v4858
        %v4874 = vpack.c.b16 %v4861, %v4860
        %v4875 = vpack.c.b16 %v4863, %v4862
        %v4876 = vpack.c.b16 %v4865, %v4864
        %v4877 = vpack.c.b16 %v4867, %v4866
        %v4878 = vpack.c.b16 %v4869, %v4868
        %v4879 = vpack.c.b16 %v4871, %v4870
        %4888 = vmatpush.bf16.msra.mxu0 %v4879
        %4889 = vmatpush.bf16.msra.mxu0 %v4878
        %4890 = vmatpush.bf16.msra.mxu0 %v4877
        %4891 = vmatpush.bf16.msra.mxu0 %v4876
        %4892 = vmatpush.bf16.msra.mxu0 %v4875
        %4893 = vmatpush.bf16.msra.mxu0 %v4874
        %4894 = vmatpush.bf16.msra.mxu0 %v4873
        %4895 = vmatpush.bf16.msra.mxu0 %v4872
        %4896 = vmatmul.bf16.gmra.mxu0 %v4819
        %v4897 = vpop.f32.mrf.mxu0
        %v4898 = vadd.f32 %v4838, %v4897
        %v4899 = vpop.f32.mrf.mxu0
        %4900 = vdwg.mxu0
        %4901 = vst [vmem:[%s13] sm:$0xff] %v4898
      $region80: #{sentence_classifier_forward.1} parent=71 // pred_fallthru
        _
      // Predicated region
      $region81: #{sentence_classifier_forward.1} parent=71 // pred_check
        %p4902 = pneg %p322
      $region82: #{sentence_classifier_forward.1} parent=71 // pred_check_branch
        %4904 = sbr.rel (%p4902) target = $region84
      $region83: #{sentence_classifier_forward.1} parent=71 // pred_region
        _
      $region84: #{sentence_classifier_forward.1} parent=71 // pred_fallthru
        _
      // Predicated region
      $region85: #{sentence_classifier_forward.1} parent=71 // pred_check
        %p4905 = pneg %p322
      $region86: #{sentence_classifier_forward.1} parent=71 // pred_check_branch
        %4907 = sbr.rel (%p4905) target = $region88
      $region87: #{sentence_classifier_forward.1} parent=71 // pred_region
        _
      $region88: #{sentence_classifier_forward.1} parent=71 // pred_fallthru
        _
    $region72: #{sentence_classifier_forward.1} parent=5 // pred_fallthru
      _
    %p4908 = scmp.le.s32.totalorder 2, %s19
    // Predicated region
    $region89: #{sentence_classifier_forward.1} parent=5 // pred_check
      %p4909 = pneg %p4908
    $region90: #{sentence_classifier_forward.1} parent=5 // pred_check_branch
      %4911 = sbr.rel (%p4909) target = $region92
    $region91: #{sentence_classifier_forward.1} parent=5 // pred_region
      %s4912 = ssub.s32 %s19, 2
    $region92: #{sentence_classifier_forward.1} parent=5 // pred_fallthru
      _
  $region6: #{sentence_classifier_forward.1} parent=0 // loop_footer
    %s23 = sadd.s32 1, %s19
  $region7: #{sentence_classifier_forward.1} parent=0 // loop_footer_branch
    %18 = sbr.rel target = $region3
  $region8: #{sentence_classifier_forward.1} parent=0 // loop_exit
    _

</llo_original>
